<compile_context>
chip_gen: v7x
topology: tpu7x:2x2x1
jax: 0.10.0
libtpu: 0.0.40
codegen_flags: <defaults>
</compile_context>

<pallas_src>
import functools

import jax
import jax.numpy as jnp
from jax.experimental import pallas as pl
from jax.experimental.pallas import tpu as pltpu

# ----------------------- model hyper-params (small synthetic) ----------------
NUM_FTRS = 256        # stands in for 2048 in the original module
FEATURE_SIZE = 128
CLASSES = 16
NPAD = 128            # lane-dense padding of the class dimension
BATCH = 2
H = W = 8
CIN_PAD = NUM_FTRS    # common zero-padded cin for the three 1x1 convs
BN_EPS = 1e-5


# ----------------------------- Pallas kernels --------------------------------
def _fused_conv_pool_kernel(x_ref, w1_ref, b1_ref, w3_ref, b3_ref, o_ref,
                            ypad_ref, wide_ref, *, n, h, w):
    """Fused 1x1-conv+BN+ReLU -> 3x3-conv(pad=1)+BN+ReLU -> global max pool
    for ONE conv block (grid step) over the whole batch.

    x_ref   : (1, n*h*w, cin_pad) bf16  NHWC-flattened pixels, cin zero-padded
    w1_ref  : (1, cin_pad, feat)  bf16  BN scale folded
    b1_ref  : (1, 1, feat)        f32   BN bias folded
    w3_ref  : (1, 9*feat, cout)   bf16  taps stacked along K, BN scale folded
    b3_ref  : (1, 1, cout)        f32
    o_ref   : (n, cout)           f32   one column block of the (n,3*cout) out
    ypad_ref: VMEM (n, (h+2)*(w+2)+2, feat) f32  spatially zero-padded acts
    wide_ref: VMEM (n*h*(w+2), 9*feat) bf16      aligned per-tap windows

    "Wide rows": output row r = i*(w+2)+j; tap (ky,kx) reads the contiguous
    slice ypad[r + ky*(w+2)+kx], so all 9 taps collapse into ONE deep-K matmul.
    Wrap rows (j >= w) are zeroed AFTER the ReLU (z >= 0), so they can never
    win the max pool; keep that invariant if the activation ever changes.
    """
    wp = w + 2
    hw_wide = h * wp
    feat = w1_ref.shape[-1]

    # 1x1 conv + folded BN + ReLU over the whole batch in one MXU pass.
    y = jnp.dot(x_ref[0], w1_ref[0], preferred_element_type=jnp.float32)
    y = jnp.maximum(y + b1_ref[0], 0.0)                      # (n*h*w, feat) f32

    # Scatter rows into the spatially zero-padded buffer.
    ypad_ref[...] = jnp.zeros_like(ypad_ref)
    for b in range(n):
        for i in range(h):
            dst = (i + 1) * wp + 1
            src = (b * h + i) * w
            ypad_ref[b, dst:dst + w, :] = y[src:src + w, :]

    # Build the 9 shifted tap windows once into an aligned scratch (deep K).
    for b in range(n):
        base = b * hw_wide
        for t in range(9):
            d = (t // 3) * wp + (t % 3)
            wide_ref[base:base + hw_wide, t * feat:(t + 1) * feat] = (
                ypad_ref[b, d:d + hw_wide, :].astype(wide_ref.dtype))

    # Single deep-K MXU pass: all taps / pixels / images of this block.
    acc = jnp.dot(wide_ref[...], w3_ref[0], preferred_element_type=jnp.float32)
    z = jnp.maximum(acc + b3_ref[0], 0.0)                    # (n*hw_wide, cout)

    # Wrap-row mask built in-kernel (hw_wide is a multiple of wp, so the
    # global row index mod wp equals the in-row column j).
    rows = jax.lax.broadcasted_iota(jnp.int32, z.shape, 0)
    z = jnp.where(rows % wp < w, z, 0.0)

    # AdaptiveMaxPool2d((1, 1)) per image.
    for b in range(n):
        zb = z[b * hw_wide:(b + 1) * hw_wide, :]
        o_ref[b:b + 1, :] = jnp.max(zb, axis=0, keepdims=True)


def _classifier_kernel(xp_ref, xn_ref, w1a_ref, w1b_ref, b1_ref,
                       w2_ref, b2_ref, o_ref):
    """Folded (BN1d -> Linear -> BN1d) -> ELU -> Linear for one head.

    The concat torch.cat((xk1,xk2,xk3,xn)) is fused away: the folded first
    layer weight is split into a pooled part (w1a, 3*cout rows) and an xn part
    (w1b).  Per-scale heads have zero rows outside their own 128-column block
    and a zero w1b, so every head sees exactly its own input.
    """
    xp = xp_ref[...].astype(jnp.bfloat16)          # (n, 3*cout)
    xv = xn_ref[...].astype(jnp.bfloat16)          # (n, num_ftrs)
    h1 = (jnp.dot(xp, w1a_ref[0], preferred_element_type=jnp.float32)
          + jnp.dot(xv, w1b_ref[0], preferred_element_type=jnp.float32)
          + b1_ref[0])
    h1 = jnp.where(h1 > 0.0, h1, jnp.exp(jnp.minimum(h1, 0.0)) - 1.0)   # ELU
    o_ref[0] = (jnp.dot(h1.astype(jnp.bfloat16), w2_ref[0],
                        preferred_element_type=jnp.float32) + b2_ref[0])


# ----------------------------- kernel wrappers --------------------------------
def fused_conv_pool(x_stack, w1, b1, w3, b3):
    """Three conv blocks + global max pool in one call, grid=(3,)."""
    g, m, cin_pad = x_stack.shape
    n = m // (H * W)
    feat = w1.shape[-1]
    cout = w3.shape[-1]
    hw_wide = H * (W + 2)
    p = (H + 2) * (W + 2) + 2
    flops = g * (2 * m * cin_pad * feat + 2 * n * hw_wide * 9 * feat * cout)
    bytes_accessed = (x_stack.size * 2 + w1.size * 2 + b1.size * 4 +
                      w3.size * 2 + b3.size * 4 + n * g * cout * 4)
    return pl.pallas_call(
        functools.partial(_fused_conv_pool_kernel, n=n, h=H, w=W),
        out_shape=jax.ShapeDtypeStruct((n, g * cout), jnp.float32),
        grid_spec=pltpu.PrefetchScalarGridSpec(
            num_scalar_prefetch=0,
            grid=(g,),
            in_specs=[
                pl.BlockSpec((1, m, cin_pad), lambda i: (i, 0, 0)),
                pl.BlockSpec((1, cin_pad, feat), lambda i: (i, 0, 0)),
                pl.BlockSpec((1, 1, feat), lambda i: (i, 0, 0)),
                pl.BlockSpec((1, 9 * feat, cout), lambda i: (i, 0, 0)),
                pl.BlockSpec((1, 1, cout), lambda i: (i, 0, 0)),
            ],
            out_specs=pl.BlockSpec((n, cout), lambda i: (0, i)),
            scratch_shapes=[
                pltpu.VMEM((n, p, feat), jnp.float32),
                pltpu.VMEM((n * hw_wide, 9 * feat), jnp.bfloat16),
            ],
        ),
        compiler_params=pltpu.CompilerParams(
            dimension_semantics=("parallel",)),
        cost_estimate=pl.CostEstimate(flops=int(flops), transcendentals=0,
                                      bytes_accessed=int(bytes_accessed)),
    )(x_stack, w1, b1, w3, b3)


def classifier_heads(pooled_all, xn, w1a, w1b, b1, w2, b2):
    """classifier1/2/3 + classifier_concat in one call, grid=(4,)."""
    n, pool_w = pooled_all.shape
    xn_w = xn.shape[-1]
    g, _, feat = w1a.shape
    npad = w2.shape[-1]
    return pl.pallas_call(
        _classifier_kernel,
        out_shape=jax.ShapeDtypeStruct((g, n, npad), jnp.float32),
        grid_spec=pltpu.PrefetchScalarGridSpec(
            num_scalar_prefetch=0,
            grid=(g,),
            in_specs=[
                pl.BlockSpec((n, pool_w), lambda i: (0, 0)),
                pl.BlockSpec((n, xn_w), lambda i: (0, 0)),
                pl.BlockSpec((1, pool_w, feat), lambda i: (i, 0, 0)),
                pl.BlockSpec((1, xn_w, feat), lambda i: (i, 0, 0)),
                pl.BlockSpec((1, 1, feat), lambda i: (i, 0, 0)),
                pl.BlockSpec((1, feat, npad), lambda i: (i, 0, 0)),
                pl.BlockSpec((1, 1, npad), lambda i: (i, 0, 0)),
            ],
            out_specs=pl.BlockSpec((1, n, npad), lambda i: (i, 0, 0)),
        ),
        compiler_params=pltpu.CompilerParams(
            dimension_semantics=("parallel",)),
    )(pooled_all, xn, w1a, w1b, b1, w2, b2)


# ----------------------------- param init / folding ---------------------------
def _bn_fold(key, c):
    k1, k2, k3, k4 = jax.random.split(key, 4)
    gamma = 1.0 + 0.1 * jax.random.normal(k1, (c,), jnp.float32)
    beta = 0.1 * jax.random.normal(k2, (c,), jnp.float32)
    mean = 0.1 * jax.random.normal(k3, (c,), jnp.float32)
    var = jax.random.uniform(k4, (c,), jnp.float32, 0.5, 1.5)
    scale = gamma / jnp.sqrt(var + BN_EPS)
    bias = beta - mean * scale
    return scale, bias


def init_params(key):
    """All BN affines folded, all stacks precomputed ONCE (review item 1)."""
    half = NUM_FTRS // 2
    feat = FEATURE_SIZE
    cins = (NUM_FTRS // 4, NUM_FTRS // 2, NUM_FTRS)   # conv_block1/2/3
    keys = jax.random.split(key, 7)

    w1s, b1s, w3s, b3s = [], [], [], []
    for idx, cin in enumerate(cins):
        k = jax.random.split(keys[idx], 4)
        w1 = 0.05 * jax.random.normal(k[0], (cin, feat), jnp.float32)
        s1, b1 = _bn_fold(k[1], feat)
        w3 = 0.05 * jax.random.normal(k[2], (3, 3, feat, half), jnp.float32)
        s3, b3 = _bn_fold(k[3], half)
        # fold BN scale, zero-pad cin to the common CIN_PAD (full MXU K tile)
        w1f = jnp.zeros((CIN_PAD, feat), jnp.float32).at[:cin].set(
            w1 * s1[None, :])
        w3f = (w3 * s3[None, None, None, :]).reshape(9 * feat, half)
        w1s.append(w1f.astype(jnp.bfloat16))
        b1s.append(b1.reshape(1, feat))
        w3s.append(w3f.astype(jnp.bfloat16))
        b3s.append(b3.reshape(1, half))

    pool_w = 3 * half                  # width of concat(xk1, xk2, xk3)
    cw1a, cw1b, cb1, cw2, cb2 = [], [], [], [], []
    for i in range(4):                 # 0..2 per-scale heads, 3 = concat head
        k = jax.random.split(keys[3 + i], 6)
        cin = (pool_w + NUM_FTRS) if i == 3 else half
        s1, b1bn = _bn_fold(k[0], cin)
        w1 = 0.05 * jax.random.normal(k[1], (cin, feat), jnp.float32)
        bias1 = 0.05 * jax.random.normal(k[2], (feat,), jnp.float32)
        s2, b2bn = _bn_fold(k[3], feat)
        w2 = 0.05 * jax.random.normal(k[4], (feat, CLASSES), jnp.float32)
        bias2 = 0.05 * jax.random.normal(k[5], (CLASSES,), jnp.float32)
        w1f = s1[:, None] * w1 * s2[None, :]
        b1f = ((b1bn @ w1 + bias1) * s2 + b2bn).reshape(1, feat)
        if i == 3:
            w1a, w1b = w1f[:pool_w], w1f[pool_w:]
        else:
            w1a = jnp.zeros((pool_w, feat), jnp.float32
                            ).at[i * half:(i + 1) * half].set(w1f)
            w1b = jnp.zeros((NUM_FTRS, feat), jnp.float32)
        w2p = jnp.zeros((feat, NPAD), jnp.float32).at[:, :CLASSES].set(w2)
        b2p = jnp.zeros((1, NPAD), jnp.float32).at[0, :CLASSES].set(bias2)
        cw1a.append(w1a.astype(jnp.bfloat16))
        cw1b.append(w1b.astype(jnp.bfloat16))
        cb1.append(b1f)
        cw2.append(w2p.astype(jnp.bfloat16))
        cb2.append(b2p)

    return dict(
        w1=jnp.stack(w1s), b1=jnp.stack(b1s),
        w3=jnp.stack(w3s), b3=jnp.stack(b3s),
        cw1a=jnp.stack(cw1a), cw1b=jnp.stack(cw1b), cb1=jnp.stack(cb1),
        cw2=jnp.stack(cw2), cb2=jnp.stack(cb2))


# ----------------------------------- forward ----------------------------------
def prenet_forward(xf3, xf4, xf5, xn, params):
    half = NUM_FTRS // 2
    n = xf3.shape[0]

    def prep(t):  # NCHW -> flattened NHWC pixels, cin zero-padded, bf16
        cin = t.shape[1]
        x = jnp.transpose(t, (0, 2, 3, 1)).reshape(n * H * W, cin)
        return jnp.pad(x, ((0, 0), (0, CIN_PAD - cin))).astype(jnp.bfloat16)

    x_stack = jnp.stack([prep(xf3), prep(xf4), prep(xf5)], axis=0)

    # one pallas_call: 3x (1x1 conv -> 3x3 conv -> global max pool)
    pooled_all = fused_conv_pool(x_stack, params["w1"], params["b1"],
                                 params["w3"], params["b3"])   # (n, 3*half) f32

    # one pallas_call: classifier1/2/3 + classifier_concat (concat fused away)
    heads = classifier_heads(pooled_all, xn, params["cw1a"], params["cw1b"],
                             params["cb1"], params["cw2"], params["cb2"])

    xk1_v = pooled_all[:, 0:half]
    xk2_v = pooled_all[:, half:2 * half]
    xk3_v = pooled_all[:, 2 * half:3 * half]
    xc1 = heads[0, :, :CLASSES]
    xc2 = heads[1, :, :CLASSES]
    xc3 = heads[2, :, :CLASSES]
    x_concat = heads[3, :, :CLASSES]
    return xk1_v, xk2_v, xk3_v, x_concat, xc1, xc2, xc3


# ------------------------------ pure-JAX reference -----------------------------
def prenet_reference(xf3, xf4, xf5, xn, params):
    """f32 reference using the same folded (bf16-stored) weights."""
    half = NUM_FTRS // 2
    feat = FEATURE_SIZE
    n = xf3.shape[0]
    pooled = []
    for g, xf in enumerate((xf3, xf4, xf5)):
        cin = xf.shape[1]
        x = jnp.transpose(xf, (0, 2, 3, 1))
        w1 = params["w1"][g].astype(jnp.float32)[:cin]
        y = jnp.maximum(jnp.einsum("bhwc,cf->bhwf", x, w1)
                        + params["b1"][g][0], 0.0)
        yp = jnp.pad(y, ((0, 0), (1, 1), (1, 1), (0, 0)))
        w3 = params["w3"][g].astype(jnp.float32).reshape(3, 3, feat, half)
        z = jnp.zeros((n, H, W, half), jnp.float32)
        for ky in range(3):
            for kx in range(3):
                z = z + jnp.einsum("bhwf,fo->bhwo",
                                   yp[:, ky:ky + H, kx:kx + W, :], w3[ky, kx])
        z = jnp.maximum(z + params["b3"][g][0], 0.0)
        pooled.append(jnp.max(z, axis=(1, 2)))
    pooled_all = jnp.concatenate(pooled, axis=1)

    def head(i):
        h1 = (pooled_all @ params["cw1a"][i].astype(jnp.float32)
              + xn @ params["cw1b"][i].astype(jnp.float32) + params["cb1"][i])
        h1 = jnp.where(h1 > 0, h1, jnp.exp(jnp.minimum(h1, 0.0)) - 1.0)
        out = h1 @ params["cw2"][i].astype(jnp.float32) + params["cb2"][i]
        return out[:, :CLASSES]

    return (pooled[0], pooled[1], pooled[2], head(3), head(0), head(1), head(2))


# ----------------------------------- main --------------------------------------
if __name__ == "__main__":
    key = jax.random.PRNGKey(0)
    kp, kx3, kx4, kx5, kxn = jax.random.split(key, 5)
    params = init_params(kp)

    # backbone outputs (self.features is external to PRENet) — NCHW
    xf3 = jax.random.normal(kx3, (BATCH, NUM_FTRS // 4, H, W), jnp.float32)
    xf4 = jax.random.normal(kx4, (BATCH, NUM_FTRS // 2, H, W), jnp.float32)
    xf5 = jax.random.normal(kx5, (BATCH, NUM_FTRS, H, W), jnp.float32)
    xn = jax.random.normal(kxn, (BATCH, NUM_FTRS), jnp.float32)

    fwd = jax.jit(prenet_forward)
    outs = jax.block_until_ready(fwd(xf3, xf4, xf5, xn, params))
    xk1_v, xk2_v, xk3_v, x_concat, xc1, xc2, xc3 = outs

    half = NUM_FTRS // 2
    assert xk1_v.shape == xk2_v.shape == xk3_v.shape == (BATCH, half)
    assert x_concat.shape == (BATCH, CLASSES)
    assert xc1.shape == xc2.shape == xc3.shape == (BATCH, CLASSES)
    assert all(bool(jnp.all(jnp.isfinite(o))) for o in outs)

    # tolerance-checked pure-JAX reference (bf16 activation casts in-kernel)
    refs = prenet_reference(xf3, xf4, xf5, xn, params)
    for o, r in zip(outs, refs):
        ok = bool(jnp.all(jnp.abs(o - r) <= 0.05 + 0.05 * jnp.abs(r)))
        assert ok, "kernel output deviates from pure-JAX reference"

    print("KERNEL_OK")
</pallas_src>

<mosaic_0001>
module attributes {stable_mosaic.version = 11 : i64} {
  func.func @_classifier_kernel(%arg0: i32, %arg1: memref<2x384xf32, #tpu.memory_space<vmem>>, %arg2: memref<2x256xf32, #tpu.memory_space<vmem>>, %arg3: memref<1x384x128xbf16, #tpu.memory_space<vmem>>, %arg4: memref<1x256x128xbf16, #tpu.memory_space<vmem>>, %arg5: memref<1x1x128xf32, #tpu.memory_space<vmem>>, %arg6: memref<1x128x128xbf16, #tpu.memory_space<vmem>>, %arg7: memref<1x1x128xf32, #tpu.memory_space<vmem>>, %arg8: memref<1x2x128xf32, #tpu.memory_space<vmem>>) attributes {dimension_semantics = [#tpu.dimension_semantics<parallel>], iteration_bounds = array<i64: 4>, scalar_prefetch = 0 : i64, scratch_operands = 0 : i64, tpu.core_type = #tpu.core_type<tc>, window_params = [{pipeline_mode = #tpu.pipeline_mode<synchronous>, transform_indices = @transform_0, window_bounds = array<i64: 2, 384>}, {pipeline_mode = #tpu.pipeline_mode<synchronous>, transform_indices = @transform_1, window_bounds = array<i64: 2, 256>}, {transform_indices = @transform_2, window_bounds = array<i64: 1, 384, 128>}, {transform_indices = @transform_3, window_bounds = array<i64: 1, 256, 128>}, {transform_indices = @transform_4, window_bounds = array<i64: 1, 1, 128>}, {transform_indices = @transform_5, window_bounds = array<i64: 1, 128, 128>}, {transform_indices = @transform_6, window_bounds = array<i64: 1, 1, 128>}, {transform_indices = @transform_7, window_bounds = array<i64: 1, 2, 128>}]} {
    %c0 = arith.constant 0 : index
    %c0_0 = arith.constant 0 : index
    %0 = vector.load %arg1[%c0, %c0_0] : memref<2x384xf32, #tpu.memory_space<vmem>>, vector<2x384xf32>
    %1 = arith.truncf %0 : vector<2x384xf32> to vector<2x384xbf16>
    %c0_1 = arith.constant 0 : index
    %c0_2 = arith.constant 0 : index
    %2 = vector.load %arg2[%c0_1, %c0_2] : memref<2x256xf32, #tpu.memory_space<vmem>>, vector<2x256xf32>
    %3 = arith.truncf %2 : vector<2x256xf32> to vector<2x256xbf16>
    %c0_3 = arith.constant 0 : index
    %c0_4 = arith.constant 0 : index
    %c0_5 = arith.constant 0 : index
    %4 = vector.load %arg3[%c0_3, %c0_4, %c0_5] : memref<1x384x128xbf16, #tpu.memory_space<vmem>>, vector<1x384x128xbf16>
    %5 = vector.shape_cast %4 : vector<1x384x128xbf16> to vector<384x128xbf16>
    %cst = arith.constant dense<0.000000e+00> : vector<2x128xf32>
    %6 = tpu.matmul %1, %5, %cst {dimension_numbers = #tpu.dot_dimension_numbers<[1], [0], [0], [1], [0, 0, 1, 1], [], []>} : vector<2x384xbf16>, vector<384x128xbf16>, vector<2x128xf32> -> vector<2x128xf32>
    %c0_6 = arith.constant 0 : index
    %c0_7 = arith.constant 0 : index
    %c0_8 = arith.constant 0 : index
    %7 = vector.load %arg4[%c0_6, %c0_7, %c0_8] : memref<1x256x128xbf16, #tpu.memory_space<vmem>>, vector<1x256x128xbf16>
    %8 = vector.shape_cast %7 : vector<1x256x128xbf16> to vector<256x128xbf16>
    %cst_9 = arith.constant dense<0.000000e+00> : vector<2x128xf32>
    %9 = tpu.matmul %3, %8, %cst_9 {dimension_numbers = #tpu.dot_dimension_numbers<[1], [0], [0], [1], [0, 0, 1, 1], [], []>} : vector<2x256xbf16>, vector<256x128xbf16>, vector<2x128xf32> -> vector<2x128xf32>
    %10 = arith.addf %6, %9 : vector<2x128xf32>
    %c0_10 = arith.constant 0 : index
    %c0_11 = arith.constant 0 : index
    %c0_12 = arith.constant 0 : index
    %11 = vector.load %arg5[%c0_10, %c0_11, %c0_12] : memref<1x1x128xf32, #tpu.memory_space<vmem>>, vector<1x1x128xf32>
    %12 = vector.shape_cast %11 : vector<1x1x128xf32> to vector<1x128xf32>
    %13 = vector.broadcast %12 : vector<1x128xf32> to vector<2x128xf32>
    %14 = arith.addf %10, %13 : vector<2x128xf32>
    %cst_13 = arith.constant 0.000000e+00 : f32
    %15 = vector.broadcast %cst_13 : f32 to vector<2x128xf32>
    %16 = arith.cmpf ogt, %14, %15 : vector<2x128xf32>
    %cst_14 = arith.constant 0.000000e+00 : f32
    %17 = vector.broadcast %cst_14 : f32 to vector<2x128xf32>
    %18 = arith.minimumf %14, %17 : vector<2x128xf32>
    %19 = math.exp %18 : vector<2x128xf32>
    %cst_15 = arith.constant 1.000000e+00 : f32
    %20 = vector.broadcast %cst_15 : f32 to vector<2x128xf32>
    %21 = arith.subf %19, %20 : vector<2x128xf32>
    %22 = arith.select %16, %14, %21 : vector<2x128xi1>, vector<2x128xf32>
    %23 = arith.truncf %22 : vector<2x128xf32> to vector<2x128xbf16>
    %c0_16 = arith.constant 0 : index
    %c0_17 = arith.constant 0 : index
    %c0_18 = arith.constant 0 : index
    %24 = vector.load %arg6[%c0_16, %c0_17, %c0_18] : memref<1x128x128xbf16, #tpu.memory_space<vmem>>, vector<1x128x128xbf16>
    %25 = vector.shape_cast %24 : vector<1x128x128xbf16> to vector<128x128xbf16>
    %cst_19 = arith.constant dense<0.000000e+00> : vector<2x128xf32>
    %26 = tpu.matmul %23, %25, %cst_19 {dimension_numbers = #tpu.dot_dimension_numbers<[1], [0], [0], [1], [0, 0, 1, 1], [], []>} : vector<2x128xbf16>, vector<128x128xbf16>, vector<2x128xf32> -> vector<2x128xf32>
    %c0_20 = arith.constant 0 : index
    %c0_21 = arith.constant 0 : index
    %c0_22 = arith.constant 0 : index
    %27 = vector.load %arg7[%c0_20, %c0_21, %c0_22] : memref<1x1x128xf32, #tpu.memory_space<vmem>>, vector<1x1x128xf32>
    %28 = vector.shape_cast %27 : vector<1x1x128xf32> to vector<1x128xf32>
    %29 = vector.broadcast %28 : vector<1x128xf32> to vector<2x128xf32>
    %30 = arith.addf %26, %29 : vector<2x128xf32>
    %c0_23 = arith.constant 0 : index
    %c0_24 = arith.constant 0 : index
    %c0_25 = arith.constant 0 : index
    %31 = vector.load %arg8[%c0_23, %c0_24, %c0_25] : memref<1x2x128xf32, #tpu.memory_space<vmem>>, vector<1x2x128xf32>
    %32 = vector.shape_cast %31 : vector<1x2x128xf32> to vector<2x128xf32>
    %33 = vector.shape_cast %30 : vector<2x128xf32> to vector<1x2x128xf32>
    tpu.vector_store %arg8[%c0_23, %c0_24, %c0_25], %33 {strides = array<i32>} : memref<1x2x128xf32, #tpu.memory_space<vmem>>, vector<1x2x128xf32>,
    return
  }
  func.func @transform_0(%arg0: i32) -> (i32, i32) {
    %c0_i32 = arith.constant 0 : i32
    %c0_i32_0 = arith.constant 0 : i32
    %c0_i32_1 = arith.constant 0 : i32
    return %c0_i32, %c0_i32_0 : i32, i32
  }
  func.func @transform_1(%arg0: i32) -> (i32, i32) {
    %c0_i32 = arith.constant 0 : i32
    %c0_i32_0 = arith.constant 0 : i32
    %c0_i32_1 = arith.constant 0 : i32
    return %c0_i32, %c0_i32_0 : i32, i32
  }
  func.func @transform_2(%arg0: i32) -> (i32, i32, i32) {
    %c0_i32 = arith.constant 0 : i32
    %c0_i32_0 = arith.constant 0 : i32
    %c0_i32_1 = arith.constant 0 : i32
    return %arg0, %c0_i32, %c0_i32_0 : i32, i32, i32
  }
  func.func @transform_3(%arg0: i32) -> (i32, i32, i32) {
    %c0_i32 = arith.constant 0 : i32
    %c0_i32_0 = arith.constant 0 : i32
    %c0_i32_1 = arith.constant 0 : i32
    return %arg0, %c0_i32, %c0_i32_0 : i32, i32, i32
  }
  func.func @transform_4(%arg0: i32) -> (i32, i32, i32) {
    %c0_i32 = arith.constant 0 : i32
    %c0_i32_0 = arith.constant 0 : i32
    %c0_i32_1 = arith.constant 0 : i32
    return %arg0, %c0_i32, %c0_i32_0 : i32, i32, i32
  }
  func.func @transform_5(%arg0: i32) -> (i32, i32, i32) {
    %c0_i32 = arith.constant 0 : i32
    %c0_i32_0 = arith.constant 0 : i32
    %c0_i32_1 = arith.constant 0 : i32
    return %arg0, %c0_i32, %c0_i32_0 : i32, i32, i32
  }
  func.func @transform_6(%arg0: i32) -> (i32, i32, i32) {
    %c0_i32 = arith.constant 0 : i32
    %c0_i32_0 = arith.constant 0 : i32
    %c0_i32_1 = arith.constant 0 : i32
    return %arg0, %c0_i32, %c0_i32_0 : i32, i32, i32
  }
  func.func @transform_7(%arg0: i32) -> (i32, i32, i32) {
    %c0_i32 = arith.constant 0 : i32
    %c0_i32_0 = arith.constant 0 : i32
    %c0_i32_1 = arith.constant 0 : i32
    return %arg0, %c0_i32, %c0_i32_0 : i32, i32, i32
  }
}

module attributes {stable_mosaic.version = 11 : i64} {
  func.func @_fused_conv_pool_kernel(%arg0: i32, %arg1: memref<1x128x256xbf16, #tpu.memory_space<vmem>>, %arg2: memref<1x256x128xbf16, #tpu.memory_space<vmem>>, %arg3: memref<1x1x128xf32, #tpu.memory_space<vmem>>, %arg4: memref<1x1152x128xbf16, #tpu.memory_space<vmem>>, %arg5: memref<1x1x128xf32, #tpu.memory_space<vmem>>, %arg6: memref<2x128xf32, #tpu.memory_space<vmem>>, %arg7: memref<2x102x128xf32, #tpu.memory_space<vmem>>, %arg8: memref<160x1152xbf16, #tpu.memory_space<vmem>>) attributes {dimension_semantics = [#tpu.dimension_semantics<parallel>], iteration_bounds = array<i64: 3>, scalar_prefetch = 0 : i64, scratch_operands = 2 : i64, tpu.core_type = #tpu.core_type<tc>, window_params = [{transform_indices = @transform_0, window_bounds = array<i64: 1, 128, 256>}, {transform_indices = @transform_1, window_bounds = array<i64: 1, 256, 128>}, {transform_indices = @transform_2, window_bounds = array<i64: 1, 1, 128>}, {transform_indices = @transform_3, window_bounds = array<i64: 1, 1152, 128>}, {transform_indices = @transform_4, window_bounds = array<i64: 1, 1, 128>}, {transform_indices = @transform_5, window_bounds = array<i64: 2, 128>}]} {
    %c0 = arith.constant 0 : index
    %c0_0 = arith.constant 0 : index
    %c0_1 = arith.constant 0 : index
    %0 = vector.load %arg1[%c0, %c0_0, %c0_1] : memref<1x128x256xbf16, #tpu.memory_space<vmem>>, vector<1x128x256xbf16>
    %1 = vector.shape_cast %0 : vector<1x128x256xbf16> to vector<128x256xbf16>
    %c0_2 = arith.constant 0 : index
    %c0_3 = arith.constant 0 : index
    %c0_4 = arith.constant 0 : index
    %2 = vector.load %arg2[%c0_2, %c0_3, %c0_4] : memref<1x256x128xbf16, #tpu.memory_space<vmem>>, vector<1x256x128xbf16>
    %3 = vector.shape_cast %2 : vector<1x256x128xbf16> to vector<256x128xbf16>
    %cst = arith.constant dense<0.000000e+00> : vector<128x128xf32>
    %4 = tpu.matmul %1, %3, %cst {dimension_numbers = #tpu.dot_dimension_numbers<[1], [0], [0], [1], [0, 0, 1, 1], [], []>} : vector<128x256xbf16>, vector<256x128xbf16>, vector<128x128xf32> -> vector<128x128xf32>
    %c0_5 = arith.constant 0 : index
    %c0_6 = arith.constant 0 : index
    %c0_7 = arith.constant 0 : index
    %5 = vector.load %arg3[%c0_5, %c0_6, %c0_7] : memref<1x1x128xf32, #tpu.memory_space<vmem>>, vector<1x1x128xf32>
    %6 = vector.shape_cast %5 : vector<1x1x128xf32> to vector<1x128xf32>
    %7 = vector.broadcast %6 : vector<1x128xf32> to vector<128x128xf32>
    %8 = arith.addf %4, %7 : vector<128x128xf32>
    %cst_8 = arith.constant 0.000000e+00 : f32
    %9 = vector.broadcast %cst_8 : f32 to vector<128x128xf32>
    %10 = arith.maximumf %8, %9 : vector<128x128xf32>
    %cst_9 = arith.constant 0.000000e+00 : f32
    %11 = vector.broadcast %cst_9 : f32 to vector<2x102x128xf32>
    %c0_10 = arith.constant 0 : index
    %c0_11 = arith.constant 0 : index
    %c0_12 = arith.constant 0 : index
    %12 = vector.load %arg7[%c0_10, %c0_11, %c0_12] : memref<2x102x128xf32, #tpu.memory_space<vmem>>, vector<2x102x128xf32>
    tpu.vector_store %arg7[%c0_10, %c0_11, %c0_12], %11 {strides = array<i32>} : memref<2x102x128xf32, #tpu.memory_space<vmem>>, vector<2x102x128xf32>,
    %13 = vector.extract_strided_slice %10 {offsets = [0, 0], sizes = [8, 128], strides = [1, 1]} : vector<128x128xf32> to vector<8x128xf32>
    %c0_13 = arith.constant 0 : index
    %c11 = arith.constant 11 : index
    %c0_14 = arith.constant 0 : index
    %14 = vector.load %arg7[%c0_13, %c11, %c0_14] : memref<2x102x128xf32, #tpu.memory_space<vmem>>, vector<1x8x128xf32>
    %15 = vector.shape_cast %14 : vector<1x8x128xf32> to vector<8x128xf32>
    %16 = vector.shape_cast %13 : vector<8x128xf32> to vector<1x8x128xf32>
    tpu.vector_store %arg7[%c0_13, %c11, %c0_14], %16 {strides = array<i32>} : memref<2x102x128xf32, #tpu.memory_space<vmem>>, vector<1x8x128xf32>,
    %17 = vector.extract_strided_slice %10 {offsets = [8, 0], sizes = [8, 128], strides = [1, 1]} : vector<128x128xf32> to vector<8x128xf32>
    %c0_15 = arith.constant 0 : index
    %c21 = arith.constant 21 : index
    %c0_16 = arith.constant 0 : index
    %18 = vector.load %arg7[%c0_15, %c21, %c0_16] : memref<2x102x128xf32, #tpu.memory_space<vmem>>, vector<1x8x128xf32>
    %19 = vector.shape_cast %18 : vector<1x8x128xf32> to vector<8x128xf32>
    %20 = vector.shape_cast %17 : vector<8x128xf32> to vector<1x8x128xf32>
    tpu.vector_store %arg7[%c0_15, %c21, %c0_16], %20 {strides = array<i32>} : memref<2x102x128xf32, #tpu.memory_space<vmem>>, vector<1x8x128xf32>,
    %21 = vector.extract_strided_slice %10 {offsets = [16, 0], sizes = [8, 128], strides = [1, 1]} : vector<128x128xf32> to vector<8x128xf32>
    %c0_17 = arith.constant 0 : index
    %c31 = arith.constant 31 : index
    %c0_18 = arith.constant 0 : index
    %22 = vector.load %arg7[%c0_17, %c31, %c0_18] : memref<2x102x128xf32, #tpu.memory_space<vmem>>, vector<1x8x128xf32>
    %23 = vector.shape_cast %22 : vector<1x8x128xf32> to vector<8x128xf32>
    %24 = vector.shape_cast %21 : vector<8x128xf32> to vector<1x8x128xf32>
    tpu.vector_store %arg7[%c0_17, %c31, %c0_18], %24 {strides = array<i32>} : memref<2x102x128xf32, #tpu.memory_space<vmem>>, vector<1x8x128xf32>,
    %25 = vector.extract_strided_slice %10 {offsets = [24, 0], sizes = [8, 128], strides = [1, 1]} : vector<128x128xf32> to vector<8x128xf32>
    %c0_19 = arith.constant 0 : index
    %c41 = arith.constant 41 : index
    %c0_20 = arith.constant 0 : index
    %26 = vector.load %arg7[%c0_19, %c41, %c0_20] : memref<2x102x128xf32, #tpu.memory_space<vmem>>, vector<1x8x128xf32>
    %27 = vector.shape_cast %26 : vector<1x8x128xf32> to vector<8x128xf32>
    %28 = vector.shape_cast %25 : vector<8x128xf32> to vector<1x8x128xf32>
    tpu.vector_store %arg7[%c0_19, %c41, %c0_20], %28 {strides = array<i32>} : memref<2x102x128xf32, #tpu.memory_space<vmem>>, vector<1x8x128xf32>,
    %29 = vector.extract_strided_slice %10 {offsets = [32, 0], sizes = [8, 128], strides = [1, 1]} : vector<128x128xf32> to vector<8x128xf32>
    %c0_21 = arith.constant 0 : index
    %c51 = arith.constant 51 : index
    %c0_22 = arith.constant 0 : index
    %30 = vector.load %arg7[%c0_21, %c51, %c0_22] : memref<2x102x128xf32, #tpu.memory_space<vmem>>, vector<1x8x128xf32>
    %31 = vector.shape_cast %30 : vector<1x8x128xf32> to vector<8x128xf32>
    %32 = vector.shape_cast %29 : vector<8x128xf32> to vector<1x8x128xf32>
    tpu.vector_store %arg7[%c0_21, %c51, %c0_22], %32 {strides = array<i32>} : memref<2x102x128xf32, #tpu.memory_space<vmem>>, vector<1x8x128xf32>,
    %33 = vector.extract_strided_slice %10 {offsets = [40, 0], sizes = [8, 128], strides = [1, 1]} : vector<128x128xf32> to vector<8x128xf32>
    %c0_23 = arith.constant 0 : index
    %c61 = arith.constant 61 : index
    %c0_24 = arith.constant 0 : index
    %34 = vector.load %arg7[%c0_23, %c61, %c0_24] : memref<2x102x128xf32, #tpu.memory_space<vmem>>, vector<1x8x128xf32>
    %35 = vector.shape_cast %34 : vector<1x8x128xf32> to vector<8x128xf32>
    %36 = vector.shape_cast %33 : vector<8x128xf32> to vector<1x8x128xf32>
    tpu.vector_store %arg7[%c0_23, %c61, %c0_24], %36 {strides = array<i32>} : memref<2x102x128xf32, #tpu.memory_space<vmem>>, vector<1x8x128xf32>,
    %37 = vector.extract_strided_slice %10 {offsets = [48, 0], sizes = [8, 128], strides = [1, 1]} : vector<128x128xf32> to vector<8x128xf32>
    %c0_25 = arith.constant 0 : index
    %c71 = arith.constant 71 : index
    %c0_26 = arith.constant 0 : index
    %38 = vector.load %arg7[%c0_25, %c71, %c0_26] : memref<2x102x128xf32, #tpu.memory_space<vmem>>, vector<1x8x128xf32>
    %39 = vector.shape_cast %38 : vector<1x8x128xf32> to vector<8x128xf32>
    %40 = vector.shape_cast %37 : vector<8x128xf32> to vector<1x8x128xf32>
    tpu.vector_store %arg7[%c0_25, %c71, %c0_26], %40 {strides = array<i32>} : memref<2x102x128xf32, #tpu.memory_space<vmem>>, vector<1x8x128xf32>,
    %41 = vector.extract_strided_slice %10 {offsets = [56, 0], sizes = [8, 128], strides = [1, 1]} : vector<128x128xf32> to vector<8x128xf32>
    %c0_27 = arith.constant 0 : index
    %c81 = arith.constant 81 : index
    %c0_28 = arith.constant 0 : index
    %42 = vector.load %arg7[%c0_27, %c81, %c0_28] : memref<2x102x128xf32, #tpu.memory_space<vmem>>, vector<1x8x128xf32>
    %43 = vector.shape_cast %42 : vector<1x8x128xf32> to vector<8x128xf32>
    %44 = vector.shape_cast %41 : vector<8x128xf32> to vector<1x8x128xf32>
    tpu.vector_store %arg7[%c0_27, %c81, %c0_28], %44 {strides = array<i32>} : memref<2x102x128xf32, #tpu.memory_space<vmem>>, vector<1x8x128xf32>,
    %45 = vector.extract_strided_slice %10 {offsets = [64, 0], sizes = [8, 128], strides = [1, 1]} : vector<128x128xf32> to vector<8x128xf32>
    %c1 = arith.constant 1 : index
    %c11_29 = arith.constant 11 : index
    %c0_30 = arith.constant 0 : index
    %46 = vector.load %arg7[%c1, %c11_29, %c0_30] : memref<2x102x128xf32, #tpu.memory_space<vmem>>, vector<1x8x128xf32>
    %47 = vector.shape_cast %46 : vector<1x8x128xf32> to vector<8x128xf32>
    %48 = vector.shape_cast %45 : vector<8x128xf32> to vector<1x8x128xf32>
    tpu.vector_store %arg7[%c1, %c11_29, %c0_30], %48 {strides = array<i32>} : memref<2x102x128xf32, #tpu.memory_space<vmem>>, vector<1x8x128xf32>,
    %49 = vector.extract_strided_slice %10 {offsets = [72, 0], sizes = [8, 128], strides = [1, 1]} : vector<128x128xf32> to vector<8x128xf32>
    %c1_31 = arith.constant 1 : index
    %c21_32 = arith.constant 21 : index
    %c0_33 = arith.constant 0 : index
    %50 = vector.load %arg7[%c1_31, %c21_32, %c0_33] : memref<2x102x128xf32, #tpu.memory_space<vmem>>, vector<1x8x128xf32>
    %51 = vector.shape_cast %50 : vector<1x8x128xf32> to vector<8x128xf32>
    %52 = vector.shape_cast %49 : vector<8x128xf32> to vector<1x8x128xf32>
    tpu.vector_store %arg7[%c1_31, %c21_32, %c0_33], %52 {strides = array<i32>} : memref<2x102x128xf32, #tpu.memory_space<vmem>>, vector<1x8x128xf32>,
    %53 = vector.extract_strided_slice %10 {offsets = [80, 0], sizes = [8, 128], strides = [1, 1]} : vector<128x128xf32> to vector<8x128xf32>
    %c1_34 = arith.constant 1 : index
    %c31_35 = arith.constant 31 : index
    %c0_36 = arith.constant 0 : index
    %54 = vector.load %arg7[%c1_34, %c31_35, %c0_36] : memref<2x102x128xf32, #tpu.memory_space<vmem>>, vector<1x8x128xf32>
    %55 = vector.shape_cast %54 : vector<1x8x128xf32> to vector<8x128xf32>
    %56 = vector.shape_cast %53 : vector<8x128xf32> to vector<1x8x128xf32>
    tpu.vector_store %arg7[%c1_34, %c31_35, %c0_36], %56 {strides = array<i32>} : memref<2x102x128xf32, #tpu.memory_space<vmem>>, vector<1x8x128xf32>,
    %57 = vector.extract_strided_slice %10 {offsets = [88, 0], sizes = [8, 128], strides = [1, 1]} : vector<128x128xf32> to vector<8x128xf32>
    %c1_37 = arith.constant 1 : index
    %c41_38 = arith.constant 41 : index
    %c0_39 = arith.constant 0 : index
    %58 = vector.load %arg7[%c1_37, %c41_38, %c0_39] : memref<2x102x128xf32, #tpu.memory_space<vmem>>, vector<1x8x128xf32>
    %59 = vector.shape_cast %58 : vector<1x8x128xf32> to vector<8x128xf32>
    %60 = vector.shape_cast %57 : vector<8x128xf32> to vector<1x8x128xf32>
    tpu.vector_store %arg7[%c1_37, %c41_38, %c0_39], %60 {strides = array<i32>} : memref<2x102x128xf32, #tpu.memory_space<vmem>>, vector<1x8x128xf32>,
    %61 = vector.extract_strided_slice %10 {offsets = [96, 0], sizes = [8, 128], strides = [1, 1]} : vector<128x128xf32> to vector<8x128xf32>
    %c1_40 = arith.constant 1 : index
    %c51_41 = arith.constant 51 : index
    %c0_42 = arith.constant 0 : index
    %62 = vector.load %arg7[%c1_40, %c51_41, %c0_42] : memref<2x102x128xf32, #tpu.memory_space<vmem>>, vector<1x8x128xf32>
    %63 = vector.shape_cast %62 : vector<1x8x128xf32> to vector<8x128xf32>
    %64 = vector.shape_cast %61 : vector<8x128xf32> to vector<1x8x128xf32>
    tpu.vector_store %arg7[%c1_40, %c51_41, %c0_42], %64 {strides = array<i32>} : memref<2x102x128xf32, #tpu.memory_space<vmem>>, vector<1x8x128xf32>,
    %65 = vector.extract_strided_slice %10 {offsets = [104, 0], sizes = [8, 128], strides = [1, 1]} : vector<128x128xf32> to vector<8x128xf32>
    %c1_43 = arith.constant 1 : index
    %c61_44 = arith.constant 61 : index
    %c0_45 = arith.constant 0 : index
    %66 = vector.load %arg7[%c1_43, %c61_44, %c0_45] : memref<2x102x128xf32, #tpu.memory_space<vmem>>, vector<1x8x128xf32>
    %67 = vector.shape_cast %66 : vector<1x8x128xf32> to vector<8x128xf32>
    %68 = vector.shape_cast %65 : vector<8x128xf32> to vector<1x8x128xf32>
    tpu.vector_store %arg7[%c1_43, %c61_44, %c0_45], %68 {strides = array<i32>} : memref<2x102x128xf32, #tpu.memory_space<vmem>>, vector<1x8x128xf32>,
    %69 = vector.extract_strided_slice %10 {offsets = [112, 0], sizes = [8, 128], strides = [1, 1]} : vector<128x128xf32> to vector<8x128xf32>
    %c1_46 = arith.constant 1 : index
    %c71_47 = arith.constant 71 : index
    %c0_48 = arith.constant 0 : index
    %70 = vector.load %arg7[%c1_46, %c71_47, %c0_48] : memref<2x102x128xf32, #tpu.memory_space<vmem>>, vector<1x8x128xf32>
    %71 = vector.shape_cast %70 : vector<1x8x128xf32> to vector<8x128xf32>
    %72 = vector.shape_cast %69 : vector<8x128xf32> to vector<1x8x128xf32>
    tpu.vector_store %arg7[%c1_46, %c71_47, %c0_48], %72 {strides = array<i32>} : memref<2x102x128xf32, #tpu.memory_space<vmem>>, vector<1x8x128xf32>,
    %73 = vector.extract_strided_slice %10 {offsets = [120, 0], sizes = [8, 128], strides = [1, 1]} : vector<128x128xf32> to vector<8x128xf32>
    %c1_49 = arith.constant 1 : index
    %c81_50 = arith.constant 81 : index
    %c0_51 = arith.constant 0 : index
    %74 = vector.load %arg7[%c1_49, %c81_50, %c0_51] : memref<2x102x128xf32, #tpu.memory_space<vmem>>, vector<1x8x128xf32>
    %75 = vector.shape_cast %74 : vector<1x8x128xf32> to vector<8x128xf32>
    %76 = vector.shape_cast %73 : vector<8x128xf32> to vector<1x8x128xf32>
    tpu.vector_store %arg7[%c1_49, %c81_50, %c0_51], %76 {strides = array<i32>} : memref<2x102x128xf32, #tpu.memory_space<vmem>>, vector<1x8x128xf32>,
    %c0_52 = arith.constant 0 : index
    %c0_53 = arith.constant 0 : index
    %c0_54 = arith.constant 0 : index
    %77 = vector.load %arg7[%c0_52, %c0_53, %c0_54] : memref<2x102x128xf32, #tpu.memory_space<vmem>>, vector<1x80x128xf32>
    %78 = vector.shape_cast %77 : vector<1x80x128xf32> to vector<80x128xf32>
    %79 = arith.truncf %78 : vector<80x128xf32> to vector<80x128xbf16>
    %c0_55 = arith.constant 0 : index
    %c0_56 = arith.constant 0 : index
    %80 = vector.load %arg8[%c0_55, %c0_56] : memref<160x1152xbf16, #tpu.memory_space<vmem>>, vector<80x128xbf16>
    tpu.vector_store %arg8[%c0_55, %c0_56], %79 {strides = array<i32>} : memref<160x1152xbf16, #tpu.memory_space<vmem>>, vector<80x128xbf16>,
    %c0_57 = arith.constant 0 : index
    %c1_58 = arith.constant 1 : index
    %c0_59 = arith.constant 0 : index
    %81 = vector.load %arg7[%c0_57, %c1_58, %c0_59] : memref<2x102x128xf32, #tpu.memory_space<vmem>>, vector<1x80x128xf32>
    %82 = vector.shape_cast %81 : vector<1x80x128xf32> to vector<80x128xf32>
    %83 = arith.truncf %82 : vector<80x128xf32> to vector<80x128xbf16>
    %c0_60 = arith.constant 0 : index
    %c128 = arith.constant 128 : index
    %84 = vector.load %arg8[%c0_60, %c128] : memref<160x1152xbf16, #tpu.memory_space<vmem>>, vector<80x128xbf16>
    tpu.vector_store %arg8[%c0_60, %c128], %83 {strides = array<i32>} : memref<160x1152xbf16, #tpu.memory_space<vmem>>, vector<80x128xbf16>,
    %c0_61 = arith.constant 0 : index
    %c2 = arith.constant 2 : index
    %c0_62 = arith.constant 0 : index
    %85 = vector.load %arg7[%c0_61, %c2, %c0_62] : memref<2x102x128xf32, #tpu.memory_space<vmem>>, vector<1x80x128xf32>
    %86 = vector.shape_cast %85 : vector<1x80x128xf32> to vector<80x128xf32>
    %87 = arith.truncf %86 : vector<80x128xf32> to vector<80x128xbf16>
    %c0_63 = arith.constant 0 : index
    %c256 = arith.constant 256 : index
    %88 = vector.load %arg8[%c0_63, %c256] : memref<160x1152xbf16, #tpu.memory_space<vmem>>, vector<80x128xbf16>
    tpu.vector_store %arg8[%c0_63, %c256], %87 {strides = array<i32>} : memref<160x1152xbf16, #tpu.memory_space<vmem>>, vector<80x128xbf16>,
    %c0_64 = arith.constant 0 : index
    %c10 = arith.constant 10 : index
    %c0_65 = arith.constant 0 : index
    %89 = vector.load %arg7[%c0_64, %c10, %c0_65] : memref<2x102x128xf32, #tpu.memory_space<vmem>>, vector<1x80x128xf32>
    %90 = vector.shape_cast %89 : vector<1x80x128xf32> to vector<80x128xf32>
    %91 = arith.truncf %90 : vector<80x128xf32> to vector<80x128xbf16>
    %c0_66 = arith.constant 0 : index
    %c384 = arith.constant 384 : index
    %92 = vector.load %arg8[%c0_66, %c384] : memref<160x1152xbf16, #tpu.memory_space<vmem>>, vector<80x128xbf16>
    tpu.vector_store %arg8[%c0_66, %c384], %91 {strides = array<i32>} : memref<160x1152xbf16, #tpu.memory_space<vmem>>, vector<80x128xbf16>,
    %c0_67 = arith.constant 0 : index
    %c11_68 = arith.constant 11 : index
    %c0_69 = arith.constant 0 : index
    %93 = vector.load %arg7[%c0_67, %c11_68, %c0_69] : memref<2x102x128xf32, #tpu.memory_space<vmem>>, vector<1x80x128xf32>
    %94 = vector.shape_cast %93 : vector<1x80x128xf32> to vector<80x128xf32>
    %95 = arith.truncf %94 : vector<80x128xf32> to vector<80x128xbf16>
    %c0_70 = arith.constant 0 : index
    %c512 = arith.constant 512 : index
    %96 = vector.load %arg8[%c0_70, %c512] : memref<160x1152xbf16, #tpu.memory_space<vmem>>, vector<80x128xbf16>
    tpu.vector_store %arg8[%c0_70, %c512], %95 {strides = array<i32>} : memref<160x1152xbf16, #tpu.memory_space<vmem>>, vector<80x128xbf16>,
    %c0_71 = arith.constant 0 : index
    %c12 = arith.constant 12 : index
    %c0_72 = arith.constant 0 : index
    %97 = vector.load %arg7[%c0_71, %c12, %c0_72] : memref<2x102x128xf32, #tpu.memory_space<vmem>>, vector<1x80x128xf32>
    %98 = vector.shape_cast %97 : vector<1x80x128xf32> to vector<80x128xf32>
    %99 = arith.truncf %98 : vector<80x128xf32> to vector<80x128xbf16>
    %c0_73 = arith.constant 0 : index
    %c640 = arith.constant 640 : index
    %100 = vector.load %arg8[%c0_73, %c640] : memref<160x1152xbf16, #tpu.memory_space<vmem>>, vector<80x128xbf16>
    tpu.vector_store %arg8[%c0_73, %c640], %99 {strides = array<i32>} : memref<160x1152xbf16, #tpu.memory_space<vmem>>, vector<80x128xbf16>,
    %c0_74 = arith.constant 0 : index
    %c20 = arith.constant 20 : index
    %c0_75 = arith.constant 0 : index
    %101 = vector.load %arg7[%c0_74, %c20, %c0_75] : memref<2x102x128xf32, #tpu.memory_space<vmem>>, vector<1x80x128xf32>
    %102 = vector.shape_cast %101 : vector<1x80x128xf32> to vector<80x128xf32>
    %103 = arith.truncf %102 : vector<80x128xf32> to vector<80x128xbf16>
    %c0_76 = arith.constant 0 : index
    %c768 = arith.constant 768 : index
    %104 = vector.load %arg8[%c0_76, %c768] : memref<160x1152xbf16, #tpu.memory_space<vmem>>, vector<80x128xbf16>
    tpu.vector_store %arg8[%c0_76, %c768], %103 {strides = array<i32>} : memref<160x1152xbf16, #tpu.memory_space<vmem>>, vector<80x128xbf16>,
    %c0_77 = arith.constant 0 : index
    %c21_78 = arith.constant 21 : index
    %c0_79 = arith.constant 0 : index
    %105 = vector.load %arg7[%c0_77, %c21_78, %c0_79] : memref<2x102x128xf32, #tpu.memory_space<vmem>>, vector<1x80x128xf32>
    %106 = vector.shape_cast %105 : vector<1x80x128xf32> to vector<80x128xf32>
    %107 = arith.truncf %106 : vector<80x128xf32> to vector<80x128xbf16>
    %c0_80 = arith.constant 0 : index
    %c896 = arith.constant 896 : index
    %108 = vector.load %arg8[%c0_80, %c896] : memref<160x1152xbf16, #tpu.memory_space<vmem>>, vector<80x128xbf16>
    tpu.vector_store %arg8[%c0_80, %c896], %107 {strides = array<i32>} : memref<160x1152xbf16, #tpu.memory_space<vmem>>, vector<80x128xbf16>,
    %c0_81 = arith.constant 0 : index
    %c22 = arith.constant 22 : index
    %c0_82 = arith.constant 0 : index
    %109 = vector.load %arg7[%c0_81, %c22, %c0_82] : memref<2x102x128xf32, #tpu.memory_space<vmem>>, vector<1x80x128xf32>
    %110 = vector.shape_cast %109 : vector<1x80x128xf32> to vector<80x128xf32>
    %111 = arith.truncf %110 : vector<80x128xf32> to vector<80x128xbf16>
    %c0_83 = arith.constant 0 : index
    %c1024 = arith.constant 1024 : index
    %112 = vector.load %arg8[%c0_83, %c1024] : memref<160x1152xbf16, #tpu.memory_space<vmem>>, vector<80x128xbf16>
    tpu.vector_store %arg8[%c0_83, %c1024], %111 {strides = array<i32>} : memref<160x1152xbf16, #tpu.memory_space<vmem>>, vector<80x128xbf16>,
    %c1_84 = arith.constant 1 : index
    %c0_85 = arith.constant 0 : index
    %c0_86 = arith.constant 0 : index
    %113 = vector.load %arg7[%c1_84, %c0_85, %c0_86] : memref<2x102x128xf32, #tpu.memory_space<vmem>>, vector<1x80x128xf32>
    %114 = vector.shape_cast %113 : vector<1x80x128xf32> to vector<80x128xf32>
    %115 = arith.truncf %114 : vector<80x128xf32> to vector<80x128xbf16>
    %c80 = arith.constant 80 : index
    %c0_87 = arith.constant 0 : index
    %116 = vector.load %arg8[%c80, %c0_87] : memref<160x1152xbf16, #tpu.memory_space<vmem>>, vector<80x128xbf16>
    tpu.vector_store %arg8[%c80, %c0_87], %115 {strides = array<i32>} : memref<160x1152xbf16, #tpu.memory_space<vmem>>, vector<80x128xbf16>,
    %c1_88 = arith.constant 1 : index
    %c1_89 = arith.constant 1 : index
    %c0_90 = arith.constant 0 : index
    %117 = vector.load %arg7[%c1_88, %c1_89, %c0_90] : memref<2x102x128xf32, #tpu.memory_space<vmem>>, vector<1x80x128xf32>
    %118 = vector.shape_cast %117 : vector<1x80x128xf32> to vector<80x128xf32>
    %119 = arith.truncf %118 : vector<80x128xf32> to vector<80x128xbf16>
    %c80_91 = arith.constant 80 : index
    %c128_92 = arith.constant 128 : index
    %120 = vector.load %arg8[%c80_91, %c128_92] : memref<160x1152xbf16, #tpu.memory_space<vmem>>, vector<80x128xbf16>
    tpu.vector_store %arg8[%c80_91, %c128_92], %119 {strides = array<i32>} : memref<160x1152xbf16, #tpu.memory_space<vmem>>, vector<80x128xbf16>,
    %c1_93 = arith.constant 1 : index
    %c2_94 = arith.constant 2 : index
    %c0_95 = arith.constant 0 : index
    %121 = vector.load %arg7[%c1_93, %c2_94, %c0_95] : memref<2x102x128xf32, #tpu.memory_space<vmem>>, vector<1x80x128xf32>
    %122 = vector.shape_cast %121 : vector<1x80x128xf32> to vector<80x128xf32>
    %123 = arith.truncf %122 : vector<80x128xf32> to vector<80x128xbf16>
    %c80_96 = arith.constant 80 : index
    %c256_97 = arith.constant 256 : index
    %124 = vector.load %arg8[%c80_96, %c256_97] : memref<160x1152xbf16, #tpu.memory_space<vmem>>, vector<80x128xbf16>
    tpu.vector_store %arg8[%c80_96, %c256_97], %123 {strides = array<i32>} : memref<160x1152xbf16, #tpu.memory_space<vmem>>, vector<80x128xbf16>,
    %c1_98 = arith.constant 1 : index
    %c10_99 = arith.constant 10 : index
    %c0_100 = arith.constant 0 : index
    %125 = vector.load %arg7[%c1_98, %c10_99, %c0_100] : memref<2x102x128xf32, #tpu.memory_space<vmem>>, vector<1x80x128xf32>
    %126 = vector.shape_cast %125 : vector<1x80x128xf32> to vector<80x128xf32>
    %127 = arith.truncf %126 : vector<80x128xf32> to vector<80x128xbf16>
    %c80_101 = arith.constant 80 : index
    %c384_102 = arith.constant 384 : index
    %128 = vector.load %arg8[%c80_101, %c384_102] : memref<160x1152xbf16, #tpu.memory_space<vmem>>, vector<80x128xbf16>
    tpu.vector_store %arg8[%c80_101, %c384_102], %127 {strides = array<i32>} : memref<160x1152xbf16, #tpu.memory_space<vmem>>, vector<80x128xbf16>,
    %c1_103 = arith.constant 1 : index
    %c11_104 = arith.constant 11 : index
    %c0_105 = arith.constant 0 : index
    %129 = vector.load %arg7[%c1_103, %c11_104, %c0_105] : memref<2x102x128xf32, #tpu.memory_space<vmem>>, vector<1x80x128xf32>
    %130 = vector.shape_cast %129 : vector<1x80x128xf32> to vector<80x128xf32>
    %131 = arith.truncf %130 : vector<80x128xf32> to vector<80x128xbf16>
    %c80_106 = arith.constant 80 : index
    %c512_107 = arith.constant 512 : index
    %132 = vector.load %arg8[%c80_106, %c512_107] : memref<160x1152xbf16, #tpu.memory_space<vmem>>, vector<80x128xbf16>
    tpu.vector_store %arg8[%c80_106, %c512_107], %131 {strides = array<i32>} : memref<160x1152xbf16, #tpu.memory_space<vmem>>, vector<80x128xbf16>,
    %c1_108 = arith.constant 1 : index
    %c12_109 = arith.constant 12 : index
    %c0_110 = arith.constant 0 : index
    %133 = vector.load %arg7[%c1_108, %c12_109, %c0_110] : memref<2x102x128xf32, #tpu.memory_space<vmem>>, vector<1x80x128xf32>
    %134 = vector.shape_cast %133 : vector<1x80x128xf32> to vector<80x128xf32>
    %135 = arith.truncf %134 : vector<80x128xf32> to vector<80x128xbf16>
    %c80_111 = arith.constant 80 : index
    %c640_112 = arith.constant 640 : index
    %136 = vector.load %arg8[%c80_111, %c640_112] : memref<160x1152xbf16, #tpu.memory_space<vmem>>, vector<80x128xbf16>
    tpu.vector_store %arg8[%c80_111, %c640_112], %135 {strides = array<i32>} : memref<160x1152xbf16, #tpu.memory_space<vmem>>, vector<80x128xbf16>,
    %c1_113 = arith.constant 1 : index
    %c20_114 = arith.constant 20 : index
    %c0_115 = arith.constant 0 : index
    %137 = vector.load %arg7[%c1_113, %c20_114, %c0_115] : memref<2x102x128xf32, #tpu.memory_space<vmem>>, vector<1x80x128xf32>
    %138 = vector.shape_cast %137 : vector<1x80x128xf32> to vector<80x128xf32>
    %139 = arith.truncf %138 : vector<80x128xf32> to vector<80x128xbf16>
    %c80_116 = arith.constant 80 : index
    %c768_117 = arith.constant 768 : index
    %140 = vector.load %arg8[%c80_116, %c768_117] : memref<160x1152xbf16, #tpu.memory_space<vmem>>, vector<80x128xbf16>
    tpu.vector_store %arg8[%c80_116, %c768_117], %139 {strides = array<i32>} : memref<160x1152xbf16, #tpu.memory_space<vmem>>, vector<80x128xbf16>,
    %c1_118 = arith.constant 1 : index
    %c21_119 = arith.constant 21 : index
    %c0_120 = arith.constant 0 : index
    %141 = vector.load %arg7[%c1_118, %c21_119, %c0_120] : memref<2x102x128xf32, #tpu.memory_space<vmem>>, vector<1x80x128xf32>
    %142 = vector.shape_cast %141 : vector<1x80x128xf32> to vector<80x128xf32>
    %143 = arith.truncf %142 : vector<80x128xf32> to vector<80x128xbf16>
    %c80_121 = arith.constant 80 : index
    %c896_122 = arith.constant 896 : index
    %144 = vector.load %arg8[%c80_121, %c896_122] : memref<160x1152xbf16, #tpu.memory_space<vmem>>, vector<80x128xbf16>
    tpu.vector_store %arg8[%c80_121, %c896_122], %143 {strides = array<i32>} : memref<160x1152xbf16, #tpu.memory_space<vmem>>, vector<80x128xbf16>,
    %c1_123 = arith.constant 1 : index
    %c22_124 = arith.constant 22 : index
    %c0_125 = arith.constant 0 : index
    %145 = vector.load %arg7[%c1_123, %c22_124, %c0_125] : memref<2x102x128xf32, #tpu.memory_space<vmem>>, vector<1x80x128xf32>
    %146 = vector.shape_cast %145 : vector<1x80x128xf32> to vector<80x128xf32>
    %147 = arith.truncf %146 : vector<80x128xf32> to vector<80x128xbf16>
    %c80_126 = arith.constant 80 : index
    %c1024_127 = arith.constant 1024 : index
    %148 = vector.load %arg8[%c80_126, %c1024_127] : memref<160x1152xbf16, #tpu.memory_space<vmem>>, vector<80x128xbf16>
    tpu.vector_store %arg8[%c80_126, %c1024_127], %147 {strides = array<i32>} : memref<160x1152xbf16, #tpu.memory_space<vmem>>, vector<80x128xbf16>,
    %c0_128 = arith.constant 0 : index
    %c0_129 = arith.constant 0 : index
    %149 = vector.load %arg8[%c0_128, %c0_129] : memref<160x1152xbf16, #tpu.memory_space<vmem>>, vector<160x1152xbf16>
    %c0_130 = arith.constant 0 : index
    %c0_131 = arith.constant 0 : index
    %c0_132 = arith.constant 0 : index
    %150 = vector.load %arg4[%c0_130, %c0_131, %c0_132] : memref<1x1152x128xbf16, #tpu.memory_space<vmem>>, vector<1x1152x128xbf16>
    %151 = vector.shape_cast %150 : vector<1x1152x128xbf16> to vector<1152x128xbf16>
    %cst_133 = arith.constant dense<0.000000e+00> : vector<160x128xf32>
    %152 = tpu.matmul %149, %151, %cst_133 {dimension_numbers = #tpu.dot_dimension_numbers<[1], [0], [0], [1], [0, 0, 1, 1], [], []>} : vector<160x1152xbf16>, vector<1152x128xbf16>, vector<160x128xf32> -> vector<160x128xf32>
    %c0_134 = arith.constant 0 : index
    %c0_135 = arith.constant 0 : index
    %c0_136 = arith.constant 0 : index
    %153 = vector.load %arg5[%c0_134, %c0_135, %c0_136] : memref<1x1x128xf32, #tpu.memory_space<vmem>>, vector<1x1x128xf32>
    %154 = vector.shape_cast %153 : vector<1x1x128xf32> to vector<1x128xf32>
    %155 = vector.broadcast %154 : vector<1x128xf32> to vector<160x128xf32>
    %156 = arith.addf %152, %155 : vector<160x128xf32>
    %cst_137 = arith.constant 0.000000e+00 : f32
    %157 = vector.broadcast %cst_137 : f32 to vector<160x128xf32>
    %158 = arith.maximumf %156, %157 : vector<160x128xf32>
    %159 = tpu.iota {dimensions = array<i32: 0>} : vector<160x128xi32>
    %c10_i32 = arith.constant 10 : i32
    %c0_i32 = arith.constant 0 : i32
    %160 = arith.cmpi eq, %c10_i32, %c0_i32 : i32
    %c1_i32 = arith.constant 1 : i32
    %161 = arith.select %160, %c1_i32, %c10_i32 : i32
    %162 = vector.broadcast %161 : i32 to vector<160x128xi32>
    %163 = arith.remsi %159, %162 : vector<160x128xi32>
    %c0_i32_138 = arith.constant 0 : i32
    %164 = vector.broadcast %c0_i32_138 : i32 to vector<160x128xi32>
    %165 = arith.cmpi ne, %163, %164 : vector<160x128xi32>
    %c0_i32_139 = arith.constant 0 : i32
    %166 = vector.broadcast %c0_i32_139 : i32 to vector<160x128xi32>
    %167 = arith.cmpi slt, %163, %166 : vector<160x128xi32>
    %c0_i32_140 = arith.constant 0 : i32
    %168 = arith.cmpi slt, %161, %c0_i32_140 : i32
    %169 = vector.broadcast %168 : i1 to vector<160x128xi1>
    %170 = vector.broadcast %169 : vector<160x128xi1> to vector<160x128xi1>
    %171 = arith.xori %167, %170 : vector<160x128xi1>
    %172 = arith.andi %171, %165 : vector<160x128xi1>
    %173 = vector.broadcast %161 : i32 to vector<160x128xi32>
    %174 = arith.addi %163, %173 : vector<160x128xi32>
    %175 = arith.select %172, %174, %163 : vector<160x128xi1>, vector<160x128xi32>
    %c8_i32 = arith.constant 8 : i32
    %176 = vector.broadcast %c8_i32 : i32 to vector<160x128xi32>
    %177 = arith.cmpi slt, %175, %176 : vector<160x128xi32>
    %cst_141 = arith.constant 0.000000e+00 : f32
    %178 = vector.broadcast %cst_141 : f32 to vector<160x128xf32>
    %179 = arith.select %177, %158, %178 : vector<160x128xi1>, vector<160x128xf32>
    %180 = vector.extract_strided_slice %179 {offsets = [0, 0], sizes = [80, 128], strides = [1, 1]} : vector<160x128xf32> to vector<80x128xf32>
    %cst_142 = arith.constant dense<0xFF800000> : vector<128xf32>
    %181 = vector.multi_reduction <maximumf>, %180, %cst_142 [0] : vector<80x128xf32> to vector<128xf32>
    %182 = vector.shape_cast %181 : vector<128xf32> to vector<1x128xf32>
    %c0_143 = arith.constant 0 : index
    %c0_144 = arith.constant 0 : index
    %183 = vector.load %arg6[%c0_143, %c0_144] : memref<2x128xf32, #tpu.memory_space<vmem>>, vector<1x128xf32>
    tpu.vector_store %arg6[%c0_143, %c0_144], %182 {strides = array<i32>} : memref<2x128xf32, #tpu.memory_space<vmem>>, vector<1x128xf32>,
    %184 = vector.extract_strided_slice %179 {offsets = [80, 0], sizes = [80, 128], strides = [1, 1]} : vector<160x128xf32> to vector<80x128xf32>
    %cst_145 = arith.constant dense<0xFF800000> : vector<128xf32>
    %185 = vector.multi_reduction <maximumf>, %184, %cst_145 [0] : vector<80x128xf32> to vector<128xf32>
    %186 = vector.shape_cast %185 : vector<128xf32> to vector<1x128xf32>
    %c1_146 = arith.constant 1 : index
    %c0_147 = arith.constant 0 : index
    %187 = vector.load %arg6[%c1_146, %c0_147] : memref<2x128xf32, #tpu.memory_space<vmem>>, vector<1x128xf32>
    tpu.vector_store %arg6[%c1_146, %c0_147], %186 {strides = array<i32>} : memref<2x128xf32, #tpu.memory_space<vmem>>, vector<1x128xf32>,
    return
  }
  func.func @transform_0(%arg0: i32) -> (i32, i32, i32) {
    %c0_i32 = arith.constant 0 : i32
    %c0_i32_0 = arith.constant 0 : i32
    %c0_i32_1 = arith.constant 0 : i32
    return %arg0, %c0_i32, %c0_i32_0 : i32, i32, i32
  }
  func.func @transform_1(%arg0: i32) -> (i32, i32, i32) {
    %c0_i32 = arith.constant 0 : i32
    %c0_i32_0 = arith.constant 0 : i32
    %c0_i32_1 = arith.constant 0 : i32
    return %arg0, %c0_i32, %c0_i32_0 : i32, i32, i32
  }
  func.func @transform_2(%arg0: i32) -> (i32, i32, i32) {
    %c0_i32 = arith.constant 0 : i32
    %c0_i32_0 = arith.constant 0 : i32
    %c0_i32_1 = arith.constant 0 : i32
    return %arg0, %c0_i32, %c0_i32_0 : i32, i32, i32
  }
  func.func @transform_3(%arg0: i32) -> (i32, i32, i32) {
    %c0_i32 = arith.constant 0 : i32
    %c0_i32_0 = arith.constant 0 : i32
    %c0_i32_1 = arith.constant 0 : i32
    return %arg0, %c0_i32, %c0_i32_0 : i32, i32, i32
  }
  func.func @transform_4(%arg0: i32) -> (i32, i32, i32) {
    %c0_i32 = arith.constant 0 : i32
    %c0_i32_0 = arith.constant 0 : i32
    %c0_i32_1 = arith.constant 0 : i32
    return %arg0, %c0_i32, %c0_i32_0 : i32, i32, i32
  }
  func.func @transform_5(%arg0: i32) -> (i32, i32) {
    %c0_i32 = arith.constant 0 : i32
    %c0_i32_0 = arith.constant 0 : i32
    return %c0_i32, %arg0 : i32, i32
  }
}

</mosaic_0001>

<llo_original>
// kernel: prenet_forward.3
$region0: #{prenet_forward.3}
  #allocation0 [shape = 'u32[]', space=smem, size = 0x4, offset = 0x4, fixed_abs, tag = 'smem constant byte address 0x4 - core index']
  #allocation1 [shape = 'u32[144,128]{1,0:T(1,128)}', space=vmem, size = 0x12000, scoped, tag = 'internal scratch']
  %s0 = inlined_call_operand.vmem [shape: f32[2,384], index: 0, kind: input, shape index: {}]
  %s1 = inlined_call_operand.vmem [shape: f32[2,256], index: 1, kind: input, shape index: {}]
  %s2 = inlined_call_operand.vmem [shape: bf16[4,384,128], index: 2, kind: input, shape index: {}]
  %s3 = inlined_call_operand.vmem [shape: bf16[4,256,128], index: 3, kind: input, shape index: {}]
  %s4 = inlined_call_operand.vmem [shape: f32[4,1,128], index: 4, kind: input, shape index: {}]
  %s5 = inlined_call_operand.vmem [shape: bf16[4,128,128], index: 5, kind: input, shape index: {}]
  %s6 = inlined_call_operand.vmem [shape: f32[4,1,128], index: 6, kind: input, shape index: {}]
  %s7 = inlined_call_operand.vmem [shape: f32[4,2,128], index: 7, kind: output, shape index: {}]
  %s8 = sld [smem:[#allocation0]]
  $region61: #{prenet_forward.3} parent=0
    _
  %s10 = ssub.s32 1, %s8
  %s11 = scalar_select 0, %s10, %s8
  loop: start=0, step=1, limit=6
  $region2: #{prenet_forward.3} parent=0 // loop_pre_header
    _
  $region3: #{prenet_forward.3} parent=0 // loop_header
    %s13 = sphi 0, %s17
    %p14 = scmp.ge.s32.totalorder %s13, 6
    %s21 = sphi 0, %s21
    %s23 = sphi 0, %s21
    %s24 = sphi 0, %s23
    %s38 = sphi 0, %s24
    %s42 = sphi 0, %s42
    %s44 = sphi 0, %s42
    %s45 = sphi 0, %s44
    %s59 = sphi 0, %s45
    %s65 = sphi 0, %s67
    %s68 = sphi 0, %s65
    %s69 = sphi 0, %s68
    %s85 = sphi 0, %s69
    %s91 = sphi 0, %s93
    %s94 = sphi 0, %s91
    %s95 = sphi 0, %s94
    %s111 = sphi 0, %s95
    %s117 = sphi 0, %s119
    %s120 = sphi 0, %s117
    %s121 = sphi 0, %s120
    %s137 = sphi 0, %s121
    %s143 = sphi 0, %s145
    %s146 = sphi 0, %s143
    %s147 = sphi 0, %s146
    %s163 = sphi 0, %s147
    %s169 = sphi 0, %s171
    %s172 = sphi 0, %s169
    %s173 = sphi 0, %s172
    %s189 = sphi 0, %s173
    %s195 = sphi 0, %s197
    %s198 = sphi 0, %s195
    %s199 = sphi 0, %s198
    %s215 = sphi 0, %s199
  $region4: #{prenet_forward.3} parent=0 // loop_header_branch
    %16 = sbr.rel (%p14) target = $region8
  $region5: #{prenet_forward.3} parent=0 // loop_body
    %s18 = ssub.s32 %s13, 1
    %s19 = ssub.s32 %s13, 2
    %s20 = sadd.s32 %s13, 1
    %s22 = sadd.s32 %s21, 1
    %p25 = scmp.eq.s32.totalorder %s13, 3
    %p26 = scmp.ne.s32.totalorder %s21, %s23
    %p27 = scmp.eq.s32.totalorder %s13, 0
    %p28 = por %p26, %p27
    %p29 = scmp.ne.s32.totalorder %s21, %s23
    %p30 = scmp.eq.s32.totalorder %s18, 3
    %p31 = por %p29, %p30
    %p32 = scmp.ne.s32.totalorder %s23, %s24
    %p33 = scmp.eq.s32.totalorder %s18, 0
    %p34 = por %p32, %p33
    %p35 = scmp.ne.s32.totalorder %s23, %s24
    %p36 = scmp.eq.s32.totalorder %s19, 3
    %p37 = por %p35, %p36
    %p39 = scmp.ne.s32.totalorder %s24, %s38
    %p40 = scmp.eq.s32.totalorder %s19, 0
    %p41 = por %p39, %p40
    %s43 = sadd.s32 %s42, 1
    %p46 = scmp.eq.s32.totalorder %s13, 3
    %p47 = scmp.ne.s32.totalorder %s42, %s44
    %p48 = scmp.eq.s32.totalorder %s13, 0
    %p49 = por %p47, %p48
    %p50 = scmp.ne.s32.totalorder %s42, %s44
    %p51 = scmp.eq.s32.totalorder %s18, 3
    %p52 = por %p50, %p51
    %p53 = scmp.ne.s32.totalorder %s44, %s45
    %p54 = scmp.eq.s32.totalorder %s18, 0
    %p55 = por %p53, %p54
    %p56 = scmp.ne.s32.totalorder %s44, %s45
    %p57 = scmp.eq.s32.totalorder %s19, 3
    %p58 = por %p56, %p57
    %p60 = scmp.ne.s32.totalorder %s45, %s59
    %p61 = scmp.eq.s32.totalorder %s19, 0
    %p62 = por %p60, %p61
    %s63 = ssub.s32 %s13, %s20
    %p64 = scmp.eq.s32.totalorder %s63, 0
    %s66 = sadd.s32 %s65, 1
    %s67 = scalar_select %p64, %s65, %s66
    %p70 = pneg %p64
    %p71 = scmp.eq.s32.totalorder %s13, 3
    %p72 = por %p70, %p71
    %p73 = scmp.ne.s32.totalorder %s65, %s68
    %p74 = scmp.eq.s32.totalorder %s13, 0
    %p75 = por %p73, %p74
    %p76 = scmp.ne.s32.totalorder %s65, %s68
    %p77 = scmp.eq.s32.totalorder %s18, 3
    %p78 = por %p76, %p77
    %p79 = scmp.ne.s32.totalorder %s68, %s69
    %p80 = scmp.eq.s32.totalorder %s18, 0
    %p81 = por %p79, %p80
    %p82 = scmp.ne.s32.totalorder %s68, %s69
    %p83 = scmp.eq.s32.totalorder %s19, 3
    %p84 = por %p82, %p83
    %p86 = scmp.ne.s32.totalorder %s69, %s85
    %p87 = scmp.eq.s32.totalorder %s19, 0
    %p88 = por %p86, %p87
    %s89 = ssub.s32 %s13, %s20
    %p90 = scmp.eq.s32.totalorder %s89, 0
    %s92 = sadd.s32 %s91, 1
    %s93 = scalar_select %p90, %s91, %s92
    %p96 = pneg %p90
    %p97 = scmp.eq.s32.totalorder %s13, 3
    %p98 = por %p96, %p97
    %p99 = scmp.ne.s32.totalorder %s91, %s94
    %p100 = scmp.eq.s32.totalorder %s13, 0
    %p101 = por %p99, %p100
    %p102 = scmp.ne.s32.totalorder %s91, %s94
    %p103 = scmp.eq.s32.totalorder %s18, 3
    %p104 = por %p102, %p103
    %p105 = scmp.ne.s32.totalorder %s94, %s95
    %p106 = scmp.eq.s32.totalorder %s18, 0
    %p107 = por %p105, %p106
    %p108 = scmp.ne.s32.totalorder %s94, %s95
    %p109 = scmp.eq.s32.totalorder %s19, 3
    %p110 = por %p108, %p109
    %p112 = scmp.ne.s32.totalorder %s95, %s111
    %p113 = scmp.eq.s32.totalorder %s19, 0
    %p114 = por %p112, %p113
    %s115 = ssub.s32 %s13, %s20
    %p116 = scmp.eq.s32.totalorder %s115, 0
    %s118 = sadd.s32 %s117, 1
    %s119 = scalar_select %p116, %s117, %s118
    %p122 = pneg %p116
    %p123 = scmp.eq.s32.totalorder %s13, 3
    %p124 = por %p122, %p123
    %p125 = scmp.ne.s32.totalorder %s117, %s120
    %p126 = scmp.eq.s32.totalorder %s13, 0
    %p127 = por %p125, %p126
    %p128 = scmp.ne.s32.totalorder %s117, %s120
    %p129 = scmp.eq.s32.totalorder %s18, 3
    %p130 = por %p128, %p129
    %p131 = scmp.ne.s32.totalorder %s120, %s121
    %p132 = scmp.eq.s32.totalorder %s18, 0
    %p133 = por %p131, %p132
    %p134 = scmp.ne.s32.totalorder %s120, %s121
    %p135 = scmp.eq.s32.totalorder %s19, 3
    %p136 = por %p134, %p135
    %p138 = scmp.ne.s32.totalorder %s121, %s137
    %p139 = scmp.eq.s32.totalorder %s19, 0
    %p140 = por %p138, %p139
    %s141 = ssub.s32 %s13, %s20
    %p142 = scmp.eq.s32.totalorder %s141, 0
    %s144 = sadd.s32 %s143, 1
    %s145 = scalar_select %p142, %s143, %s144
    %p148 = pneg %p142
    %p149 = scmp.eq.s32.totalorder %s13, 3
    %p150 = por %p148, %p149
    %p151 = scmp.ne.s32.totalorder %s143, %s146
    %p152 = scmp.eq.s32.totalorder %s13, 0
    %p153 = por %p151, %p152
    %p154 = scmp.ne.s32.totalorder %s143, %s146
    %p155 = scmp.eq.s32.totalorder %s18, 3
    %p156 = por %p154, %p155
    %p157 = scmp.ne.s32.totalorder %s146, %s147
    %p158 = scmp.eq.s32.totalorder %s18, 0
    %p159 = por %p157, %p158
    %p160 = scmp.ne.s32.totalorder %s146, %s147
    %p161 = scmp.eq.s32.totalorder %s19, 3
    %p162 = por %p160, %p161
    %p164 = scmp.ne.s32.totalorder %s147, %s163
    %p165 = scmp.eq.s32.totalorder %s19, 0
    %p166 = por %p164, %p165
    %s167 = ssub.s32 %s13, %s20
    %p168 = scmp.eq.s32.totalorder %s167, 0
    %s170 = sadd.s32 %s169, 1
    %s171 = scalar_select %p168, %s169, %s170
    %p174 = pneg %p168
    %p175 = scmp.eq.s32.totalorder %s13, 3
    %p176 = por %p174, %p175
    %p177 = scmp.ne.s32.totalorder %s169, %s172
    %p178 = scmp.eq.s32.totalorder %s13, 0
    %p179 = por %p177, %p178
    %p180 = scmp.ne.s32.totalorder %s169, %s172
    %p181 = scmp.eq.s32.totalorder %s18, 3
    %p182 = por %p180, %p181
    %p183 = scmp.ne.s32.totalorder %s172, %s173
    %p184 = scmp.eq.s32.totalorder %s18, 0
    %p185 = por %p183, %p184
    %p186 = scmp.ne.s32.totalorder %s172, %s173
    %p187 = scmp.eq.s32.totalorder %s19, 3
    %p188 = por %p186, %p187
    %p190 = scmp.ne.s32.totalorder %s173, %s189
    %p191 = scmp.eq.s32.totalorder %s19, 0
    %p192 = por %p190, %p191
    %s193 = ssub.s32 %s13, %s20
    %p194 = scmp.eq.s32.totalorder %s193, 0
    %s196 = sadd.s32 %s195, 1
    %s197 = scalar_select %p194, %s195, %s196
    %p200 = pneg %p194
    %p201 = scmp.eq.s32.totalorder %s13, 3
    %p202 = por %p200, %p201
    %p203 = scmp.ne.s32.totalorder %s195, %s198
    %p204 = scmp.eq.s32.totalorder %s13, 0
    %p205 = por %p203, %p204
    %p206 = scmp.ne.s32.totalorder %s195, %s198
    %p207 = scmp.eq.s32.totalorder %s18, 3
    %p208 = por %p206, %p207
    %p209 = scmp.ne.s32.totalorder %s198, %s199
    %p210 = scmp.eq.s32.totalorder %s18, 0
    %p211 = por %p209, %p210
    %p212 = scmp.ne.s32.totalorder %s198, %s199
    %p213 = scmp.eq.s32.totalorder %s19, 3
    %p214 = por %p212, %p213
    %p216 = scmp.ne.s32.totalorder %s199, %s215
    %p217 = scmp.eq.s32.totalorder %s19, 0
    %p218 = por %p216, %p217
    %p219 = scmp.le.s32.totalorder 1, %s13
    %p220 = scmp.lt.s32.totalorder %s13, 5
    %p221 = pnand %p219, %p220
    %p222 = pneg %p221
    // Predicated region
    $region9: #{prenet_forward.3} parent=5 // pred_check
      _
    $region10: #{prenet_forward.3} parent=5 // pred_check_branch
      %224 = sbr.rel (%p221) target = $region12
    $region11: #{prenet_forward.3} parent=5 // pred_region
      %s225 = ssub.s32 %s13, 1
      // Predicated region
      $region13: #{prenet_forward.3} parent=11 // pred_check
        %p226 = pneg %p34
      $region14: #{prenet_forward.3} parent=11 // pred_check_branch
        %228 = sbr.rel (%p226) target = $region16
      $region15: #{prenet_forward.3} parent=11 // pred_region
        _
      $region16: #{prenet_forward.3} parent=11 // pred_fallthru
        _
      // Predicated region
      $region17: #{prenet_forward.3} parent=11 // pred_check
        %p229 = pneg %p55
      $region18: #{prenet_forward.3} parent=11 // pred_check_branch
        %231 = sbr.rel (%p229) target = $region20
      $region19: #{prenet_forward.3} parent=11 // pred_region
        _
      $region20: #{prenet_forward.3} parent=11 // pred_fallthru
        _
    $region12: #{prenet_forward.3} parent=5 // pred_fallthru
      _
    %p232 = scmp.lt.s32.totalorder %s13, 4
    // Predicated region
    $region21: #{prenet_forward.3} parent=5 // pred_check
      %p233 = pneg %p232
    $region22: #{prenet_forward.3} parent=5 // pred_check_branch
      %235 = sbr.rel (%p233) target = $region24
    $region23: #{prenet_forward.3} parent=5 // pred_region
      // Predicated region
      $region25: #{prenet_forward.3} parent=23 // pred_check
        %p236 = pneg %p75
      $region26: #{prenet_forward.3} parent=23 // pred_check_branch
        %238 = sbr.rel (%p236) target = $region28
      $region27: #{prenet_forward.3} parent=23 // pred_region
        %p239 = scmp.lt.s32.totalorder %s13, 3
        %s240 = scalar_select %p239, %s13, 3
        %s241 = smul.addr %s240, 48
        %s242 = smul.addr %s241, 4
        %s243 = scalar_lea.vmem %s2, %s242
      $region28: #{prenet_forward.3} parent=23 // pred_fallthru
        _
      // Predicated region
      $region29: #{prenet_forward.3} parent=23 // pred_check
        %p244 = pneg %p101
      $region30: #{prenet_forward.3} parent=23 // pred_check_branch
        %246 = sbr.rel (%p244) target = $region32
      $region31: #{prenet_forward.3} parent=23 // pred_region
        %p247 = scmp.lt.s32.totalorder %s13, 3
        %s248 = scalar_select %p247, %s13, 3
        %s249 = smul.addr %s248, 32
        %s250 = smul.addr %s249, 4
        %s251 = scalar_lea.vmem %s3, %s250
      $region32: #{prenet_forward.3} parent=23 // pred_fallthru
        _
      // Predicated region
      $region33: #{prenet_forward.3} parent=23 // pred_check
        %p252 = pneg %p127
      $region34: #{prenet_forward.3} parent=23 // pred_check_branch
        %254 = sbr.rel (%p252) target = $region36
      $region35: #{prenet_forward.3} parent=23 // pred_region
        %p255 = scmp.lt.s32.totalorder %s13, 3
        %s256 = scalar_select %p255, %s13, 3
        %s257 = scalar_lea.vmem %s4, %s256
      $region36: #{prenet_forward.3} parent=23 // pred_fallthru
        _
      // Predicated region
      $region37: #{prenet_forward.3} parent=23 // pred_check
        %p258 = pneg %p153
      $region38: #{prenet_forward.3} parent=23 // pred_check_branch
        %260 = sbr.rel (%p258) target = $region40
      $region39: #{prenet_forward.3} parent=23 // pred_region
        %p261 = scmp.lt.s32.totalorder %s13, 3
        %s262 = scalar_select %p261, %s13, 3
        %s263 = smul.addr %s262, 16
        %s264 = smul.addr %s263, 4
        %s265 = scalar_lea.vmem %s5, %s264
      $region40: #{prenet_forward.3} parent=23 // pred_fallthru
        _
      // Predicated region
      $region41: #{prenet_forward.3} parent=23 // pred_check
        %p266 = pneg %p179
      $region42: #{prenet_forward.3} parent=23 // pred_check_branch
        %268 = sbr.rel (%p266) target = $region44
      $region43: #{prenet_forward.3} parent=23 // pred_region
        %p269 = scmp.lt.s32.totalorder %s13, 3
        %s270 = scalar_select %p269, %s13, 3
        %s271 = scalar_lea.vmem %s6, %s270
      $region44: #{prenet_forward.3} parent=23 // pred_fallthru
        _
    $region24: #{prenet_forward.3} parent=5 // pred_fallthru
      _
    %p272 = scmp.le.s32.totalorder 1, %s13
    %p273 = scmp.lt.s32.totalorder %s13, 5
    %p274 = pnand %p272, %p273
    %p275 = pneg %p274
    // Predicated region
    $region45: #{prenet_forward.3} parent=5 // pred_check
      _
    $region46: #{prenet_forward.3} parent=5 // pred_check_branch
      %277 = sbr.rel (%p274) target = $region48
    $region47: #{prenet_forward.3} parent=5 // pred_region
      %s278 = ssub.s32 %s13, 1
      %p279 = pneg %p34
      %p280 = pneg %p31
      %p281 = pneg %p55
      %p282 = pneg %p52
      %p283 = scmp.lt.s32.totalorder %s18, 3
      %s284 = scalar_select %p283, %s18, 3
      %s285 = smul.addr %s284, 48
      %s286 = smul.addr %s285, 4
      %s287 = scalar_lea.vmem %s2, %s286
      %p288 = pneg %p81
      %p289 = pneg %p78
      %p290 = scmp.lt.s32.totalorder %s18, 3
      %s291 = scalar_select %p290, %s18, 3
      %s292 = smul.addr %s291, 32
      %s293 = smul.addr %s292, 4
      %s294 = scalar_lea.vmem %s3, %s293
      %p295 = pneg %p107
      %p296 = pneg %p104
      %p297 = scmp.lt.s32.totalorder %s18, 3
      %s298 = scalar_select %p297, %s18, 3
      %s299 = scalar_lea.vmem %s4, %s298
      %p300 = pneg %p133
      %p301 = pneg %p130
      %p302 = scmp.lt.s32.totalorder %s18, 3
      %s303 = scalar_select %p302, %s18, 3
      %s304 = smul.addr %s303, 16
      %s305 = smul.addr %s304, 4
      %s306 = scalar_lea.vmem %s5, %s305
      %p307 = pneg %p159
      %p308 = pneg %p156
      %p309 = scmp.lt.s32.totalorder %s18, 3
      %s310 = scalar_select %p309, %s18, 3
      %s311 = scalar_lea.vmem %s6, %s310
      %p312 = pneg %p185
      %p313 = pneg %p182
      %p314 = pneg %p211
      %p315 = pneg %p208
      %p316 = scmp.lt.s32.totalorder %s18, 3
      %s317 = scalar_select %p316, %s18, 3
      %s318 = smul.addr %s317, 2
      %s319 = scalar_lea.vmem %s7, %s318
      %p320 = scmp.lt.s32.totalorder %s18, 3
      %s321 = scalar_select %p320, %s18, 3
      %s322 = smul.addr %s321, 48
      %s323 = smul.addr %s322, 4
      %s324 = scalar_lea.vmem %s2, %s323
      %p325 = scmp.lt.s32.totalorder %s18, 3
      %s326 = scalar_select %p325, %s18, 3
      %s327 = smul.addr %s326, 32
      %s328 = smul.addr %s327, 4
      %s329 = scalar_lea.vmem %s3, %s328
      %p330 = scmp.lt.s32.totalorder %s18, 3
      %s331 = scalar_select %p330, %s18, 3
      %s332 = scalar_lea.vmem %s4, %s331
      %p333 = scmp.lt.s32.totalorder %s18, 3
      %s334 = scalar_select %p333, %s18, 3
      %s335 = smul.addr %s334, 16
      %s336 = smul.addr %s335, 4
      %s337 = scalar_lea.vmem %s5, %s336
      %p338 = scmp.lt.s32.totalorder %s18, 3
      %s339 = scalar_select %p338, %s18, 3
      %s340 = scalar_lea.vmem %s6, %s339
      %p341 = scmp.lt.s32.totalorder %s18, 3
      %s342 = scalar_select %p341, %s18, 3
      %s343 = smul.addr %s342, 2
      %s344 = scalar_lea.vmem %s7, %s343
      %v346 = vld [vmem:[%s0] sm:$0x3f]
      %v348 = vcombine.high %v346, %v346
      %v350 = vunpack.c.l.s4 1983009808
      %v351 = vunpack.c.0.s8 %v350
      %v352 = vlaneseq
      %v353 = vshrl.u32 %v352, 7
      %v354 = vsub.s32 %v351, %v353
      %v355 = vrot.slane %v346, %v354
      %v357 = vunpack.c.l.s4 1983009808
      %v358 = vunpack.c.0.s8 %v357
      %v359 = vlaneseq
      %v360 = vshrl.u32 %v359, 7
      %v361 = vsub.s32 %v358, %v360
      %v362 = vrot.slane %v348, %v361
      %v363 = vcombine.high %v355, %v355
      %v367 = vpack.c.bf16 %v355, %v355
      %v368 = vpack.c.bf16 %v363, %v363
      %v369 = vpack.c.bf16 %v362, %v362
      %v370 = vld [vmem:[%s1] sm:$0xf]
      %v373 = vunpack.c.l.s4 1983009808
      %v374 = vunpack.c.0.s8 %v373
      %v375 = vlaneseq
      %v376 = vshrl.u32 %v375, 7
      %v377 = vsub.s32 %v374, %v376
      %v378 = vrot.slane %v370, %v377
      %v379 = vcombine.high %v378, %v378
      %v382 = vpack.c.bf16 %v378, %v378
      %v383 = vpack.c.bf16 %v379, %v379
      %v384 = vld [vmem:[%s324] sm:$0xf]
      %v385 = vld [vmem:[%s324 + $0x4] sm:$0xf]
      %v386 = vld [vmem:[%s324 + $0x8] sm:$0xf]
      %v387 = vld [vmem:[%s324 + $0xc] sm:$0xf]
      %v388 = vld [vmem:[%s324 + $0x10] sm:$0xf]
      %v389 = vld [vmem:[%s324 + $0x14] sm:$0xf]
      %v390 = vld [vmem:[%s324 + $0x18] sm:$0xf]
      %v391 = vld [vmem:[%s324 + $0x1c] sm:$0xf]
      %v392 = vld [vmem:[%s324 + $0x20] sm:$0xf]
      %v393 = vld [vmem:[%s324 + $0x24] sm:$0xf]
      %v394 = vld [vmem:[%s324 + $0x28] sm:$0xf]
      %v395 = vld [vmem:[%s324 + $0x2c] sm:$0xf]
      %v396 = vld [vmem:[%s324 + $0x30] sm:$0xf]
      %v397 = vld [vmem:[%s324 + $0x34] sm:$0xf]
      %v398 = vld [vmem:[%s324 + $0x38] sm:$0xf]
      %v399 = vld [vmem:[%s324 + $0x3c] sm:$0xf]
      %v400 = vld [vmem:[%s324 + $0x40] sm:$0xf]
      %v401 = vld [vmem:[%s324 + $0x44] sm:$0xf]
      %v402 = vld [vmem:[%s324 + $0x48] sm:$0xf]
      %v403 = vld [vmem:[%s324 + $0x4c] sm:$0xf]
      %v404 = vld [vmem:[%s324 + $0x50] sm:$0xf]
      %v405 = vld [vmem:[%s324 + $0x54] sm:$0xf]
      %v406 = vld [vmem:[%s324 + $0x58] sm:$0xf]
      %v407 = vld [vmem:[%s324 + $0x5c] sm:$0xf]
      %v408 = vld [vmem:[%s324 + $0x60] sm:$0xf]
      %v409 = vld [vmem:[%s324 + $0x64] sm:$0xf]
      %v410 = vld [vmem:[%s324 + $0x68] sm:$0xf]
      %v411 = vld [vmem:[%s324 + $0x6c] sm:$0xf]
      %v412 = vld [vmem:[%s324 + $0x70] sm:$0xf]
      %v413 = vld [vmem:[%s324 + $0x74] sm:$0xf]
      %v414 = vld [vmem:[%s324 + $0x78] sm:$0xf]
      %v415 = vld [vmem:[%s324 + $0x7c] sm:$0xf]
      %v416 = vld [vmem:[%s324 + $0x80] sm:$0xf]
      %v417 = vld [vmem:[%s324 + $0x84] sm:$0xf]
      %v418 = vld [vmem:[%s324 + $0x88] sm:$0xf]
      %v419 = vld [vmem:[%s324 + $0x8c] sm:$0xf]
      %v420 = vld [vmem:[%s324 + $0x90] sm:$0xf]
      %v421 = vld [vmem:[%s324 + $0x94] sm:$0xf]
      %v422 = vld [vmem:[%s324 + $0x98] sm:$0xf]
      %v423 = vld [vmem:[%s324 + $0x9c] sm:$0xf]
      %v424 = vld [vmem:[%s324 + $0xa0] sm:$0xf]
      %v425 = vld [vmem:[%s324 + $0xa4] sm:$0xf]
      %v426 = vld [vmem:[%s324 + $0xa8] sm:$0xf]
      %v427 = vld [vmem:[%s324 + $0xac] sm:$0xf]
      %v428 = vld [vmem:[%s324 + $0xb0] sm:$0xf]
      %v429 = vld [vmem:[%s324 + $0xb4] sm:$0xf]
      %v430 = vld [vmem:[%s324 + $0xb8] sm:$0xf]
      %v431 = vld [vmem:[%s324 + $0xbc] sm:$0xf]
      %v432 = vld [vmem:[%s329] sm:$0xf]
      %v433 = vld [vmem:[%s329 + $0x4] sm:$0xf]
      %v434 = vld [vmem:[%s329 + $0x8] sm:$0xf]
      %v435 = vld [vmem:[%s329 + $0xc] sm:$0xf]
      %v436 = vld [vmem:[%s329 + $0x10] sm:$0xf]
      %v437 = vld [vmem:[%s329 + $0x14] sm:$0xf]
      %v438 = vld [vmem:[%s329 + $0x18] sm:$0xf]
      %v439 = vld [vmem:[%s329 + $0x1c] sm:$0xf]
      %v440 = vld [vmem:[%s329 + $0x20] sm:$0xf]
      %v441 = vld [vmem:[%s329 + $0x24] sm:$0xf]
      %v442 = vld [vmem:[%s329 + $0x28] sm:$0xf]
      %v443 = vld [vmem:[%s329 + $0x2c] sm:$0xf]
      %v444 = vld [vmem:[%s329 + $0x30] sm:$0xf]
      %v445 = vld [vmem:[%s329 + $0x34] sm:$0xf]
      %v446 = vld [vmem:[%s329 + $0x38] sm:$0xf]
      %v447 = vld [vmem:[%s329 + $0x3c] sm:$0xf]
      %v448 = vld [vmem:[%s329 + $0x40] sm:$0xf]
      %v449 = vld [vmem:[%s329 + $0x44] sm:$0xf]
      %v450 = vld [vmem:[%s329 + $0x48] sm:$0xf]
      %v451 = vld [vmem:[%s329 + $0x4c] sm:$0xf]
      %v452 = vld [vmem:[%s329 + $0x50] sm:$0xf]
      %v453 = vld [vmem:[%s329 + $0x54] sm:$0xf]
      %v454 = vld [vmem:[%s329 + $0x58] sm:$0xf]
      %v455 = vld [vmem:[%s329 + $0x5c] sm:$0xf]
      %v456 = vld [vmem:[%s329 + $0x60] sm:$0xf]
      %v457 = vld [vmem:[%s329 + $0x64] sm:$0xf]
      %v458 = vld [vmem:[%s329 + $0x68] sm:$0xf]
      %v459 = vld [vmem:[%s329 + $0x6c] sm:$0xf]
      %v460 = vld [vmem:[%s329 + $0x70] sm:$0xf]
      %v461 = vld [vmem:[%s329 + $0x74] sm:$0xf]
      %v462 = vld [vmem:[%s329 + $0x78] sm:$0xf]
      %v463 = vld [vmem:[%s329 + $0x7c] sm:$0xf]
      %v496 = vunpack.c.l.b16 %v432
      %v497 = vunpack.c.l.b16 %v433
      %v498 = vunpack.c.l.b16 %v434
      %v499 = vunpack.c.l.b16 %v435
      %v500 = vunpack.c.l.b16 %v436
      %v501 = vunpack.c.l.b16 %v437
      %v502 = vunpack.c.l.b16 %v438
      %v503 = vunpack.c.l.b16 %v439
      %v504 = vunpack.c.l.b16 %v440
      %v505 = vunpack.c.l.b16 %v441
      %v506 = vunpack.c.l.b16 %v442
      %v507 = vunpack.c.l.b16 %v443
      %v508 = vunpack.c.l.b16 %v444
      %v509 = vunpack.c.l.b16 %v445
      %v510 = vunpack.c.l.b16 %v446
      %v511 = vunpack.c.l.b16 %v447
      %v512 = vunpack.c.l.b16 %v448
      %v513 = vunpack.c.l.b16 %v449
      %v514 = vunpack.c.l.b16 %v450
      %v515 = vunpack.c.l.b16 %v451
      %v516 = vunpack.c.l.b16 %v452
      %v517 = vunpack.c.l.b16 %v453
      %v518 = vunpack.c.l.b16 %v454
      %v519 = vunpack.c.l.b16 %v455
      %v520 = vunpack.c.l.b16 %v456
      %v521 = vunpack.c.l.b16 %v457
      %v522 = vunpack.c.l.b16 %v458
      %v523 = vunpack.c.l.b16 %v459
      %v524 = vunpack.c.l.b16 %v460
      %v525 = vunpack.c.l.b16 %v461
      %v526 = vunpack.c.l.b16 %v462
      %v527 = vunpack.c.l.b16 %v463
      %v528 = vpack.c.b16 %v497, %v496
      %v529 = vpack.c.b16 %v499, %v498
      %v530 = vpack.c.b16 %v501, %v500
      %v531 = vpack.c.b16 %v503, %v502
      %v532 = vpack.c.b16 %v505, %v504
      %v533 = vpack.c.b16 %v507, %v506
      %v534 = vpack.c.b16 %v509, %v508
      %v535 = vpack.c.b16 %v511, %v510
      %v536 = vpack.c.b16 %v513, %v512
      %v537 = vpack.c.b16 %v515, %v514
      %v538 = vpack.c.b16 %v517, %v516
      %v539 = vpack.c.b16 %v519, %v518
      %v540 = vpack.c.b16 %v521, %v520
      %v541 = vpack.c.b16 %v523, %v522
      %v542 = vpack.c.b16 %v525, %v524
      %v543 = vpack.c.b16 %v527, %v526
      %560 = vmatprep.subr.bf16.mxu0 0
      %561 = vmatpush1.bf16.msra.mxu0 %v528
      %562 = vmatprep.subr.bf16.mxu0 0
      %563 = vmatpush1.bf16.msra.mxu0 %v529
      %564 = vmatprep.subr.bf16.mxu0 0
      %565 = vmatpush1.bf16.msra.mxu0 %v530
      %566 = vmatprep.subr.bf16.mxu0 0
      %567 = vmatpush1.bf16.msra.mxu0 %v531
      %568 = vmatprep.subr.bf16.mxu0 0
      %569 = vmatpush1.bf16.msra.mxu0 %v532
      %570 = vmatprep.subr.bf16.mxu0 0
      %571 = vmatpush1.bf16.msra.mxu0 %v533
      %572 = vmatprep.subr.bf16.mxu0 0
      %573 = vmatpush1.bf16.msra.mxu0 %v534
      %574 = vmatprep.subr.bf16.mxu0 0
      %575 = vmatpush1.bf16.msra.mxu0 %v535
      %576 = vmatprep.subr.bf16.mxu0 0
      %577 = vmatpush1.bf16.msra.mxu0 %v536
      %578 = vmatprep.subr.bf16.mxu0 0
      %579 = vmatpush1.bf16.msra.mxu0 %v537
      %580 = vmatprep.subr.bf16.mxu0 0
      %581 = vmatpush1.bf16.msra.mxu0 %v538
      %582 = vmatprep.subr.bf16.mxu0 0
      %583 = vmatpush1.bf16.msra.mxu0 %v539
      %584 = vmatprep.subr.bf16.mxu0 0
      %585 = vmatpush1.bf16.msra.mxu0 %v540
      %586 = vmatprep.subr.bf16.mxu0 0
      %587 = vmatpush1.bf16.msra.mxu0 %v541
      %588 = vmatprep.subr.bf16.mxu0 0
      %589 = vmatpush1.bf16.msra.mxu0 %v542
      %590 = vmatprep.subr.bf16.mxu0 0
      %591 = vmatpush1.bf16.msra.mxu0 %v543
      %592 = vmatprep.mubr.bf16.mxu0 %v383
      %593 = vmatmul.mubr.bf16.gmra.mrb[0].mxu0 %v382
      %v594 = vpop.f32.mrb[0].mxu0
      %v595 = vadd.f32 0.0, %v594
      %v596 = vpop.f32.mrb[0].mxu0
      %v597 = vpop.f32.mrb[0].mxu0
      %v598 = vpop.f32.mrb[0].mxu0
      %599 = vdwg.mxu0
      %v648 = vunpack.c.l.b16 %v384
      %v649 = vunpack.c.l.b16 %v385
      %v650 = vunpack.c.l.b16 %v386
      %v651 = vunpack.c.l.b16 %v387
      %v652 = vunpack.c.l.b16 %v388
      %v653 = vunpack.c.l.b16 %v389
      %v654 = vunpack.c.l.b16 %v390
      %v655 = vunpack.c.l.b16 %v391
      %v656 = vunpack.c.l.b16 %v392
      %v657 = vunpack.c.l.b16 %v393
      %v658 = vunpack.c.l.b16 %v394
      %v659 = vunpack.c.l.b16 %v395
      %v660 = vunpack.c.l.b16 %v396
      %v661 = vunpack.c.l.b16 %v397
      %v662 = vunpack.c.l.b16 %v398
      %v663 = vunpack.c.l.b16 %v399
      %v664 = vunpack.c.l.b16 %v400
      %v665 = vunpack.c.l.b16 %v401
      %v666 = vunpack.c.l.b16 %v402
      %v667 = vunpack.c.l.b16 %v403
      %v668 = vunpack.c.l.b16 %v404
      %v669 = vunpack.c.l.b16 %v405
      %v670 = vunpack.c.l.b16 %v406
      %v671 = vunpack.c.l.b16 %v407
      %v672 = vunpack.c.l.b16 %v408
      %v673 = vunpack.c.l.b16 %v409
      %v674 = vunpack.c.l.b16 %v410
      %v675 = vunpack.c.l.b16 %v411
      %v676 = vunpack.c.l.b16 %v412
      %v677 = vunpack.c.l.b16 %v413
      %v678 = vunpack.c.l.b16 %v414
      %v679 = vunpack.c.l.b16 %v415
      %v680 = vunpack.c.l.b16 %v416
      %v681 = vunpack.c.l.b16 %v417
      %v682 = vunpack.c.l.b16 %v418
      %v683 = vunpack.c.l.b16 %v419
      %v684 = vunpack.c.l.b16 %v420
      %v685 = vunpack.c.l.b16 %v421
      %v686 = vunpack.c.l.b16 %v422
      %v687 = vunpack.c.l.b16 %v423
      %v688 = vunpack.c.l.b16 %v424
      %v689 = vunpack.c.l.b16 %v425
      %v690 = vunpack.c.l.b16 %v426
      %v691 = vunpack.c.l.b16 %v427
      %v692 = vunpack.c.l.b16 %v428
      %v693 = vunpack.c.l.b16 %v429
      %v694 = vunpack.c.l.b16 %v430
      %v695 = vunpack.c.l.b16 %v431
      %v696 = vpack.c.b16 %v649, %v648
      %v697 = vpack.c.b16 %v651, %v650
      %v698 = vpack.c.b16 %v653, %v652
      %v699 = vpack.c.b16 %v655, %v654
      %v700 = vpack.c.b16 %v657, %v656
      %v701 = vpack.c.b16 %v659, %v658
      %v702 = vpack.c.b16 %v661, %v660
      %v703 = vpack.c.b16 %v663, %v662
      %v704 = vpack.c.b16 %v665, %v664
      %v705 = vpack.c.b16 %v667, %v666
      %v706 = vpack.c.b16 %v669, %v668
      %v707 = vpack.c.b16 %v671, %v670
      %v708 = vpack.c.b16 %v673, %v672
      %v709 = vpack.c.b16 %v675, %v674
      %v710 = vpack.c.b16 %v677, %v676
      %v711 = vpack.c.b16 %v679, %v678
      %v712 = vpack.c.b16 %v681, %v680
      %v713 = vpack.c.b16 %v683, %v682
      %v714 = vpack.c.b16 %v685, %v684
      %v715 = vpack.c.b16 %v687, %v686
      %v716 = vpack.c.b16 %v689, %v688
      %v717 = vpack.c.b16 %v691, %v690
      %v718 = vpack.c.b16 %v693, %v692
      %v719 = vpack.c.b16 %v695, %v694
      %744 = vmatprep.subr.bf16.mxu0 0
      %745 = vmatpush1.bf16.msra.mxu0 %v696
      %746 = vmatprep.subr.bf16.mxu0 0
      %747 = vmatpush1.bf16.msra.mxu0 %v697
      %748 = vmatprep.subr.bf16.mxu0 0
      %749 = vmatpush1.bf16.msra.mxu0 %v698
      %750 = vmatprep.subr.bf16.mxu0 0
      %751 = vmatpush1.bf16.msra.mxu0 %v699
      %752 = vmatprep.subr.bf16.mxu0 0
      %753 = vmatpush1.bf16.msra.mxu0 %v700
      %754 = vmatprep.subr.bf16.mxu0 0
      %755 = vmatpush1.bf16.msra.mxu0 %v701
      %756 = vmatprep.subr.bf16.mxu0 0
      %757 = vmatpush1.bf16.msra.mxu0 %v702
      %758 = vmatprep.subr.bf16.mxu0 0
      %759 = vmatpush1.bf16.msra.mxu0 %v703
      %760 = vmatprep.subr.bf16.mxu0 0
      %761 = vmatpush1.bf16.msra.mxu0 %v704
      %762 = vmatprep.subr.bf16.mxu0 0
      %763 = vmatpush1.bf16.msra.mxu0 %v705
      %764 = vmatprep.subr.bf16.mxu0 0
      %765 = vmatpush1.bf16.msra.mxu0 %v706
      %766 = vmatprep.subr.bf16.mxu0 0
      %767 = vmatpush1.bf16.msra.mxu0 %v707
      %768 = vmatprep.subr.bf16.mxu0 0
      %769 = vmatpush1.bf16.msra.mxu0 %v708
      %770 = vmatprep.subr.bf16.mxu0 0
      %771 = vmatpush1.bf16.msra.mxu0 %v709
      %772 = vmatprep.subr.bf16.mxu0 0
      %773 = vmatpush1.bf16.msra.mxu0 %v710
      %774 = vmatprep.subr.bf16.mxu0 0
      %775 = vmatpush1.bf16.msra.mxu0 %v711
      %776 = vmatprep.mubr.bf16.mxu0 %v368
      %777 = vmatmul.mubr.bf16.gmra.mrb[0].mxu0 %v367
      %v778 = vpop.f32.mrb[0].mxu0
      %v779 = vadd.f32 %v595, %v778
      %v780 = vpop.f32.mrb[0].mxu0
      %v781 = vpop.f32.mrb[0].mxu0
      %v782 = vpop.f32.mrb[0].mxu0
      %783 = vdwg.mxu0
      %784 = vmatprep.subr.bf16.mxu0 0
      %785 = vmatpush1.bf16.msra.mxu0 %v712
      %786 = vmatprep.subr.bf16.mxu0 0
      %787 = vmatpush1.bf16.msra.mxu0 %v713
      %788 = vmatprep.subr.bf16.mxu0 0
      %789 = vmatpush1.bf16.msra.mxu0 %v714
      %790 = vmatprep.subr.bf16.mxu0 0
      %791 = vmatpush1.bf16.msra.mxu0 %v715
      %792 = vmatprep.subr.bf16.mxu0 0
      %793 = vmatpush1.bf16.msra.mxu0 %v716
      %794 = vmatprep.subr.bf16.mxu0 0
      %795 = vmatpush1.bf16.msra.mxu0 %v717
      %796 = vmatprep.subr.bf16.mxu0 0
      %797 = vmatpush1.bf16.msra.mxu0 %v718
      %798 = vmatprep.subr.bf16.mxu0 0
      %799 = vmatpush1.bf16.msra.mxu0 %v719
      %800 = vmatprep.subr.bf16.mxu0 0
      %801 = vmatpush1.bf16.msra.mxu0 0
      %802 = vmatprep.subr.bf16.mxu0 0
      %803 = vmatpush1.bf16.msra.mxu0 0
      %804 = vmatprep.subr.bf16.mxu0 0
      %805 = vmatpush1.bf16.msra.mxu0 0
      %806 = vmatprep.subr.bf16.mxu0 0
      %807 = vmatpush1.bf16.msra.mxu0 0
      %808 = vmatprep.subr.bf16.mxu0 0
      %809 = vmatpush1.bf16.msra.mxu0 0
      %810 = vmatprep.subr.bf16.mxu0 0
      %811 = vmatpush1.bf16.msra.mxu0 0
      %812 = vmatprep.subr.bf16.mxu0 0
      %813 = vmatpush1.bf16.msra.mxu0 0
      %814 = vmatprep.subr.bf16.mxu0 0
      %815 = vmatpush1.bf16.msra.mxu0 0
      %816 = vmatprep.mubr.bf16.mxu0 0
      %817 = vmatmul.mubr.bf16.gmra.mrb[0].mxu0 %v369
      %v818 = vpop.f32.mrb[0].mxu0
      %v819 = vadd.f32 %v779, %v818
      %v820 = vpop.f32.mrb[0].mxu0
      %v821 = vpop.f32.mrb[0].mxu0
      %v822 = vpop.f32.mrb[0].mxu0
      %823 = vdwg.mxu0
      %v824 = vld [vmem:[%s332] sm:$0x1]
      %v826 = vlaneseq
      %v827 = vshrl.u32 %v826, 7
      %v828 = vsub.s32 0, %v827
      %v829 = vrot.slane %v824, %v828
      %v831 = vadd.f32 %v819, %v829
      %vm832 = vcmp.gt.f32.partialorder %v831, 0.0
      %v833 = vmin.f32 %v831, 0.0
      %v834 = vmul.f32 %v833, 1.442695
      %v835 = vpow.pop %v834
      %v836 = vsub.f32 %v835, 1.0
      %v837 = vsel %vm832, %v831, %v836
      %v838 = vpack.c.bf16 %v837, %v837
      %v839 = vld [vmem:[%s337] sm:$0xf]
      %v840 = vld [vmem:[%s337 + $0x4] sm:$0xf]
      %v841 = vld [vmem:[%s337 + $0x8] sm:$0xf]
      %v842 = vld [vmem:[%s337 + $0xc] sm:$0xf]
      %v843 = vld [vmem:[%s337 + $0x10] sm:$0xf]
      %v844 = vld [vmem:[%s337 + $0x14] sm:$0xf]
      %v845 = vld [vmem:[%s337 + $0x18] sm:$0xf]
      %v846 = vld [vmem:[%s337 + $0x1c] sm:$0xf]
      %v847 = vld [vmem:[%s337 + $0x20] sm:$0xf]
      %v848 = vld [vmem:[%s337 + $0x24] sm:$0xf]
      %v849 = vld [vmem:[%s337 + $0x28] sm:$0xf]
      %v850 = vld [vmem:[%s337 + $0x2c] sm:$0xf]
      %v851 = vld [vmem:[%s337 + $0x30] sm:$0xf]
      %v852 = vld [vmem:[%s337 + $0x34] sm:$0xf]
      %v853 = vld [vmem:[%s337 + $0x38] sm:$0xf]
      %v854 = vld [vmem:[%s337 + $0x3c] sm:$0xf]
      %v855 = vld [vmem:[%s340] sm:$0x1]
      %v857 = vlaneseq
      %v858 = vshrl.u32 %v857, 7
      %v859 = vsub.s32 0, %v858
      %v860 = vrot.slane %v855, %v859
      %v878 = vunpack.c.l.b16 %v839
      %v879 = vunpack.c.l.b16 %v840
      %v880 = vunpack.c.l.b16 %v841
      %v881 = vunpack.c.l.b16 %v842
      %v882 = vunpack.c.l.b16 %v843
      %v883 = vunpack.c.l.b16 %v844
      %v884 = vunpack.c.l.b16 %v845
      %v885 = vunpack.c.l.b16 %v846
      %v886 = vunpack.c.l.b16 %v847
      %v887 = vunpack.c.l.b16 %v848
      %v888 = vunpack.c.l.b16 %v849
      %v889 = vunpack.c.l.b16 %v850
      %v890 = vunpack.c.l.b16 %v851
      %v891 = vunpack.c.l.b16 %v852
      %v892 = vunpack.c.l.b16 %v853
      %v893 = vunpack.c.l.b16 %v854
      %v894 = vpack.c.b16 %v879, %v878
      %v895 = vpack.c.b16 %v881, %v880
      %v896 = vpack.c.b16 %v883, %v882
      %v897 = vpack.c.b16 %v885, %v884
      %v898 = vpack.c.b16 %v887, %v886
      %v899 = vpack.c.b16 %v889, %v888
      %v900 = vpack.c.b16 %v891, %v890
      %v901 = vpack.c.b16 %v893, %v892
      %910 = vmatprep.subr.bf16.mxu0 0
      %911 = vmatpush1.bf16.msra.mxu0 %v894
      %912 = vmatprep.subr.bf16.mxu0 0
      %913 = vmatpush1.bf16.msra.mxu0 %v895
      %914 = vmatprep.subr.bf16.mxu0 0
      %915 = vmatpush1.bf16.msra.mxu0 %v896
      %916 = vmatprep.subr.bf16.mxu0 0
      %917 = vmatpush1.bf16.msra.mxu0 %v897
      %918 = vmatprep.subr.bf16.mxu0 0
      %919 = vmatpush1.bf16.msra.mxu0 %v898
      %920 = vmatprep.subr.bf16.mxu0 0
      %921 = vmatpush1.bf16.msra.mxu0 %v899
      %922 = vmatprep.subr.bf16.mxu0 0
      %923 = vmatpush1.bf16.msra.mxu0 %v900
      %924 = vmatprep.subr.bf16.mxu0 0
      %925 = vmatpush1.bf16.msra.mxu0 %v901
      %926 = vmatprep.subr.bf16.mxu0 0
      %927 = vmatpush1.bf16.msra.mxu0 0
      %928 = vmatprep.subr.bf16.mxu0 0
      %929 = vmatpush1.bf16.msra.mxu0 0
      %930 = vmatprep.subr.bf16.mxu0 0
      %931 = vmatpush1.bf16.msra.mxu0 0
      %932 = vmatprep.subr.bf16.mxu0 0
      %933 = vmatpush1.bf16.msra.mxu0 0
      %934 = vmatprep.subr.bf16.mxu0 0
      %935 = vmatpush1.bf16.msra.mxu0 0
      %936 = vmatprep.subr.bf16.mxu0 0
      %937 = vmatpush1.bf16.msra.mxu0 0
      %938 = vmatprep.subr.bf16.mxu0 0
      %939 = vmatpush1.bf16.msra.mxu0 0
      %940 = vmatprep.subr.bf16.mxu0 0
      %941 = vmatpush1.bf16.msra.mxu0 0
      %942 = vmatprep.mubr.bf16.mxu0 0
      %943 = vmatmul.mubr.bf16.gmra.mrb[0].mxu0 %v838
      %v944 = vpop.f32.mrb[0].mxu0
      %v945 = vadd.f32 %v860, %v944
      %v946 = vpop.f32.mrb[0].mxu0
      %v947 = vpop.f32.mrb[0].mxu0
      %v948 = vpop.f32.mrb[0].mxu0
      %949 = vdwg.mxu0
      %950 = vst [vmem:[%s344] sm:$0x3] %v945
      %p951 = scmp.lt.s32.totalorder %s18, 3
      %s952 = scalar_select %p951, %s18, 3
      %s953 = smul.addr %s952, 2
      %s954 = scalar_lea.vmem %s7, %s953
      // Predicated region
      $region49: #{prenet_forward.3} parent=47 // pred_check
        %p955 = pneg %p208
      $region50: #{prenet_forward.3} parent=47 // pred_check_branch
        %957 = sbr.rel (%p955) target = $region52
      $region51: #{prenet_forward.3} parent=47 // pred_region
        _
      $region52: #{prenet_forward.3} parent=47 // pred_fallthru
        _
    $region48: #{prenet_forward.3} parent=5 // pred_fallthru
      _
    %p958 = scmp.le.s32.totalorder 2, %s13
    // Predicated region
    $region53: #{prenet_forward.3} parent=5 // pred_check
      %p959 = pneg %p958
    $region54: #{prenet_forward.3} parent=5 // pred_check_branch
      %961 = sbr.rel (%p959) target = $region56
    $region55: #{prenet_forward.3} parent=5 // pred_region
      %s962 = ssub.s32 %s13, 2
      // Predicated region
      $region57: #{prenet_forward.3} parent=55 // pred_check
        %p963 = pneg %p214
      $region58: #{prenet_forward.3} parent=55 // pred_check_branch
        %965 = sbr.rel (%p963) target = $region60
      $region59: #{prenet_forward.3} parent=55 // pred_region
        %p966 = scmp.lt.s32.totalorder %s19, 3
        %s967 = scalar_select %p966, %s19, 3
        %s968 = smul.addr %s967, 2
        %s969 = scalar_lea.vmem %s7, %s968
      $region60: #{prenet_forward.3} parent=55 // pred_fallthru
        _
    $region56: #{prenet_forward.3} parent=5 // pred_fallthru
      _
  $region6: #{prenet_forward.3} parent=0 // loop_footer
    %s17 = sadd.s32 1, %s13
  $region7: #{prenet_forward.3} parent=0 // loop_footer_branch
    %12 = sbr.rel target = $region3
  $region8: #{prenet_forward.3} parent=0 // loop_exit
    _

// kernel: prenet_forward.2
$region0: #{prenet_forward.2}
  #allocation0 [shape = 'u32[]', space=smem, size = 0x4, offset = 0x4, fixed_abs, tag = 'smem constant byte address 0x4 - core index']
  #allocation1 [shape = 'u32[144,128]{1,0:T(1,128)}', space=vmem, size = 0x12000, scoped, tag = 'internal scratch']
  #allocation2 [shape = 'f32[2,102,128]{2,1,0:T(8,128)}', space=vmem, size = 0x1a000, scoped, tag = 'scratch operand']
  #allocation3 [shape = 'bf16[160,1152]{1,0:T(16,128)(2,1)}', space=vmem, size = 0x5a000, scoped, tag = 'scratch operand']
  %s0 = inlined_call_operand.vmem [shape: bf16[3,128,256], index: 0, kind: input, shape index: {}]
  %s1 = inlined_call_operand.hbm [shape: bf16[3,256,128], index: 1, kind: input, shape index: {}]
  %s2 = inlined_call_operand.vmem [shape: f32[3,1,128], index: 2, kind: input, shape index: {}]
  %s3 = inlined_call_operand.vmem [shape: bf16[3,1152,128], index: 3, kind: input, shape index: {}]
  %s4 = inlined_call_operand.vmem [shape: f32[3,1,128], index: 4, kind: input, shape index: {}]
  %s5 = inlined_call_operand.vmem [shape: f32[2,384], index: 5, kind: output, shape index: {}]
  %s6 = sld [smem:[#allocation0]]
  $region57: #{prenet_forward.2} parent=0
    _
  %s8 = ssub.s32 1, %s6
  %s9 = scalar_select 0, %s8, %s6
  $region1: #{prenet_forward.2} parent=0
    #allocation4 [shape = 'u8[131072]{0}', space=vmem, size = 0x20000, scoped, tag = 'input window, operand 1']
    #allocation5 [shape = 's32[2]{0}', space=sflag, size = 0x8, scoped, tag = 'scoped memory for prenet_forward.2']
    %10 = vsyncpa [#allocation5], 0
    %s11 = scalar_lea.sflag [#allocation5], 1
    %12 = vsyncpa %s11, 0
    loop: start=0, step=1, limit=5
    $region2: #{prenet_forward.2} parent=1 // loop_pre_header
      _
    $region3: #{prenet_forward.2} parent=1 // loop_header
      %s14 = sphi 0, %s18
      %p15 = scmp.ge.s32.totalorder %s14, 5
      %s24 = sphi 0, %s26
      %s27 = sphi 0, %s24
      %s28 = sphi 0, %s27
      %s44 = sphi 0, %s28
      %s50 = sphi 0, %s52
      %s53 = sphi 0, %s50
      %s54 = sphi 0, %s53
      %s70 = sphi 0, %s54
      %s76 = sphi 0, %s78
      %s79 = sphi 0, %s76
      %s80 = sphi 0, %s79
      %s96 = sphi 0, %s80
      %s102 = sphi 0, %s104
      %s105 = sphi 0, %s102
      %s106 = sphi 0, %s105
      %s122 = sphi 0, %s106
      %s128 = sphi 0, %s130
      %s131 = sphi 0, %s128
      %s132 = sphi 0, %s131
      %s148 = sphi 0, %s132
      %s154 = sphi 0, %s156
      %s157 = sphi 0, %s154
      %s158 = sphi 0, %s157
      %s174 = sphi 0, %s158
    $region4: #{prenet_forward.2} parent=1 // loop_header_branch
      %17 = sbr.rel (%p15) target = $region8
    $region5: #{prenet_forward.2} parent=1 // loop_body
      %s19 = ssub.s32 %s14, 1
      %s20 = ssub.s32 %s14, 2
      %s21 = sadd.s32 %s14, 1
      %s22 = ssub.s32 %s14, %s21
      %p23 = scmp.eq.s32.totalorder %s22, 0
      %s25 = sadd.s32 %s24, 1
      %s26 = scalar_select %p23, %s24, %s25
      %p29 = pneg %p23
      %p30 = scmp.eq.s32.totalorder %s14, 2
      %p31 = por %p29, %p30
      %p32 = scmp.ne.s32.totalorder %s24, %s27
      %p33 = scmp.eq.s32.totalorder %s14, 0
      %p34 = por %p32, %p33
      %p35 = scmp.ne.s32.totalorder %s24, %s27
      %p36 = scmp.eq.s32.totalorder %s19, 2
      %p37 = por %p35, %p36
      %p38 = scmp.ne.s32.totalorder %s27, %s28
      %p39 = scmp.eq.s32.totalorder %s19, 0
      %p40 = por %p38, %p39
      %p41 = scmp.ne.s32.totalorder %s27, %s28
      %p42 = scmp.eq.s32.totalorder %s20, 2
      %p43 = por %p41, %p42
      %p45 = scmp.ne.s32.totalorder %s28, %s44
      %p46 = scmp.eq.s32.totalorder %s20, 0
      %p47 = por %p45, %p46
      %s48 = ssub.s32 %s14, %s21
      %p49 = scmp.eq.s32.totalorder %s48, 0
      %s51 = sadd.s32 %s50, 1
      %s52 = scalar_select %p49, %s50, %s51
      %p55 = pneg %p49
      %p56 = scmp.eq.s32.totalorder %s14, 2
      %p57 = por %p55, %p56
      %p58 = scmp.ne.s32.totalorder %s50, %s53
      %p59 = scmp.eq.s32.totalorder %s14, 0
      %p60 = por %p58, %p59
      %p61 = scmp.ne.s32.totalorder %s50, %s53
      %p62 = scmp.eq.s32.totalorder %s19, 2
      %p63 = por %p61, %p62
      %p64 = scmp.ne.s32.totalorder %s53, %s54
      %p65 = scmp.eq.s32.totalorder %s19, 0
      %p66 = por %p64, %p65
      %p67 = scmp.ne.s32.totalorder %s53, %s54
      %p68 = scmp.eq.s32.totalorder %s20, 2
      %p69 = por %p67, %p68
      %p71 = scmp.ne.s32.totalorder %s54, %s70
      %p72 = scmp.eq.s32.totalorder %s20, 0
      %p73 = por %p71, %p72
      %s74 = ssub.s32 %s14, %s21
      %p75 = scmp.eq.s32.totalorder %s74, 0
      %s77 = sadd.s32 %s76, 1
      %s78 = scalar_select %p75, %s76, %s77
      %p81 = pneg %p75
      %p82 = scmp.eq.s32.totalorder %s14, 2
      %p83 = por %p81, %p82
      %p84 = scmp.ne.s32.totalorder %s76, %s79
      %p85 = scmp.eq.s32.totalorder %s14, 0
      %p86 = por %p84, %p85
      %p87 = scmp.ne.s32.totalorder %s76, %s79
      %p88 = scmp.eq.s32.totalorder %s19, 2
      %p89 = por %p87, %p88
      %p90 = scmp.ne.s32.totalorder %s79, %s80
      %p91 = scmp.eq.s32.totalorder %s19, 0
      %p92 = por %p90, %p91
      %p93 = scmp.ne.s32.totalorder %s79, %s80
      %p94 = scmp.eq.s32.totalorder %s20, 2
      %p95 = por %p93, %p94
      %p97 = scmp.ne.s32.totalorder %s80, %s96
      %p98 = scmp.eq.s32.totalorder %s20, 0
      %p99 = por %p97, %p98
      %s100 = ssub.s32 %s14, %s21
      %p101 = scmp.eq.s32.totalorder %s100, 0
      %s103 = sadd.s32 %s102, 1
      %s104 = scalar_select %p101, %s102, %s103
      %p107 = pneg %p101
      %p108 = scmp.eq.s32.totalorder %s14, 2
      %p109 = por %p107, %p108
      %p110 = scmp.ne.s32.totalorder %s102, %s105
      %p111 = scmp.eq.s32.totalorder %s14, 0
      %p112 = por %p110, %p111
      %p113 = scmp.ne.s32.totalorder %s102, %s105
      %p114 = scmp.eq.s32.totalorder %s19, 2
      %p115 = por %p113, %p114
      %p116 = scmp.ne.s32.totalorder %s105, %s106
      %p117 = scmp.eq.s32.totalorder %s19, 0
      %p118 = por %p116, %p117
      %p119 = scmp.ne.s32.totalorder %s105, %s106
      %p120 = scmp.eq.s32.totalorder %s20, 2
      %p121 = por %p119, %p120
      %p123 = scmp.ne.s32.totalorder %s106, %s122
      %p124 = scmp.eq.s32.totalorder %s20, 0
      %p125 = por %p123, %p124
      %s126 = ssub.s32 %s14, %s21
      %p127 = scmp.eq.s32.totalorder %s126, 0
      %s129 = sadd.s32 %s128, 1
      %s130 = scalar_select %p127, %s128, %s129
      %p133 = pneg %p127
      %p134 = scmp.eq.s32.totalorder %s14, 2
      %p135 = por %p133, %p134
      %p136 = scmp.ne.s32.totalorder %s128, %s131
      %p137 = scmp.eq.s32.totalorder %s14, 0
      %p138 = por %p136, %p137
      %p139 = scmp.ne.s32.totalorder %s128, %s131
      %p140 = scmp.eq.s32.totalorder %s19, 2
      %p141 = por %p139, %p140
      %p142 = scmp.ne.s32.totalorder %s131, %s132
      %p143 = scmp.eq.s32.totalorder %s19, 0
      %p144 = por %p142, %p143
      %p145 = scmp.ne.s32.totalorder %s131, %s132
      %p146 = scmp.eq.s32.totalorder %s20, 2
      %p147 = por %p145, %p146
      %p149 = scmp.ne.s32.totalorder %s132, %s148
      %p150 = scmp.eq.s32.totalorder %s20, 0
      %p151 = por %p149, %p150
      %s152 = ssub.s32 %s14, %s21
      %p153 = scmp.eq.s32.totalorder %s152, 0
      %s155 = sadd.s32 %s154, 1
      %s156 = scalar_select %p153, %s154, %s155
      %p159 = pneg %p153
      %p160 = scmp.eq.s32.totalorder %s14, 2
      %p161 = por %p159, %p160
      %p162 = scmp.ne.s32.totalorder %s154, %s157
      %p163 = scmp.eq.s32.totalorder %s14, 0
      %p164 = por %p162, %p163
      %p165 = scmp.ne.s32.totalorder %s154, %s157
      %p166 = scmp.eq.s32.totalorder %s19, 2
      %p167 = por %p165, %p166
      %p168 = scmp.ne.s32.totalorder %s157, %s158
      %p169 = scmp.eq.s32.totalorder %s19, 0
      %p170 = por %p168, %p169
      %p171 = scmp.ne.s32.totalorder %s157, %s158
      %p172 = scmp.eq.s32.totalorder %s20, 2
      %p173 = por %p171, %p172
      %p175 = scmp.ne.s32.totalorder %s158, %s174
      %p176 = scmp.eq.s32.totalorder %s20, 0
      %p177 = por %p175, %p176
      %p178 = scmp.le.s32.totalorder 1, %s14
      %p179 = scmp.lt.s32.totalorder %s14, 4
      %p180 = pnand %p178, %p179
      %p181 = pneg %p180
      // Predicated region
      $region9: #{prenet_forward.2} parent=5 // pred_check
        _
      $region10: #{prenet_forward.2} parent=5 // pred_check_branch
        %183 = sbr.rel (%p180) target = $region12
      $region11: #{prenet_forward.2} parent=5 // pred_region
        %s184 = ssub.s32 %s14, 1
      $region12: #{prenet_forward.2} parent=5 // pred_fallthru
        _
      %p185 = scmp.lt.s32.totalorder %s14, 3
      // Predicated region
      $region13: #{prenet_forward.2} parent=5 // pred_check
        %p186 = pneg %p185
      $region14: #{prenet_forward.2} parent=5 // pred_check_branch
        %188 = sbr.rel (%p186) target = $region16
      $region15: #{prenet_forward.2} parent=5 // pred_region
        // Predicated region
        $region17: #{prenet_forward.2} parent=15 // pred_check
          %p189 = pneg %p34
        $region18: #{prenet_forward.2} parent=15 // pred_check_branch
          %191 = sbr.rel (%p189) target = $region20
        $region19: #{prenet_forward.2} parent=15 // pred_region
          %p192 = scmp.lt.s32.totalorder %s14, 2
          %s193 = scalar_select %p192, %s14, 2
          %s194 = smul.addr %s193, 32
          %s195 = smul.addr %s194, 4
          %s196 = scalar_lea.vmem %s0, %s195
        $region20: #{prenet_forward.2} parent=15 // pred_fallthru
          _
        // Predicated region
        $region21: #{prenet_forward.2} parent=15 // pred_check
          %p197 = pneg %p60
        $region22: #{prenet_forward.2} parent=15 // pred_check_branch
          %199 = sbr.rel (%p197) target = $region24
        $region23: #{prenet_forward.2} parent=15 // pred_region
          %s200 = sand.u32 %s50, 1
          %s201 = scalar_lea.sflag [#allocation5], %s200
          %s202 = sand.u32 %s50, 1
          %s203 = smul.addr %s202, 128
          %s204 = scalar_lea.vmem [#allocation4], %s203
          %s206 = ssub.s32 2048, 2048
          %207 = vsyncadd %s201, %s206
          %s208 = smul.addr %s14, 32
          %s209 = smul.addr %s208, 64
          %s210 = scalar_lea.hbm %s1, %s209
          %s211 = sshll.u32 %s204, 4
          %s212 = int_to_ptr.vmem [resolvable:$true] %s211
          %217 = dma.hbm_to_vmem [thread:$0]  %s210, 2048, %s212, %s201, 64, 64, 4
        $region24: #{prenet_forward.2} parent=15 // pred_fallthru
          _
        // Predicated region
        $region25: #{prenet_forward.2} parent=15 // pred_check
          %p218 = pneg %p86
        $region26: #{prenet_forward.2} parent=15 // pred_check_branch
          %220 = sbr.rel (%p218) target = $region28
        $region27: #{prenet_forward.2} parent=15 // pred_region
          %p221 = scmp.lt.s32.totalorder %s14, 2
          %s222 = scalar_select %p221, %s14, 2
          %s223 = scalar_lea.vmem %s2, %s222
        $region28: #{prenet_forward.2} parent=15 // pred_fallthru
          _
        // Predicated region
        $region29: #{prenet_forward.2} parent=15 // pred_check
          %p224 = pneg %p112
        $region30: #{prenet_forward.2} parent=15 // pred_check_branch
          %226 = sbr.rel (%p224) target = $region32
        $region31: #{prenet_forward.2} parent=15 // pred_region
          %p227 = scmp.lt.s32.totalorder %s14, 2
          %s228 = scalar_select %p227, %s14, 2
          %s229 = smul.addr %s228, 144
          %s230 = smul.addr %s229, 4
          %s231 = scalar_lea.vmem %s3, %s230
        $region32: #{prenet_forward.2} parent=15 // pred_fallthru
          _
        // Predicated region
        $region33: #{prenet_forward.2} parent=15 // pred_check
          %p232 = pneg %p138
        $region34: #{prenet_forward.2} parent=15 // pred_check_branch
          %234 = sbr.rel (%p232) target = $region36
        $region35: #{prenet_forward.2} parent=15 // pred_region
          %p235 = scmp.lt.s32.totalorder %s14, 2
          %s236 = scalar_select %p235, %s14, 2
          %s237 = scalar_lea.vmem %s4, %s236
        $region36: #{prenet_forward.2} parent=15 // pred_fallthru
          _
      $region16: #{prenet_forward.2} parent=5 // pred_fallthru
        _
      %p238 = scmp.le.s32.totalorder 1, %s14
      %p239 = scmp.lt.s32.totalorder %s14, 4
      %p240 = pnand %p238, %p239
      %p241 = pneg %p240
      // Predicated region
      $region37: #{prenet_forward.2} parent=5 // pred_check
        _
      $region38: #{prenet_forward.2} parent=5 // pred_check_branch
        %243 = sbr.rel (%p240) target = $region40
      $region39: #{prenet_forward.2} parent=5 // pred_region
        %s244 = ssub.s32 %s14, 1
        %s245 = sand.u32 %s53, 1
        %s246 = scalar_lea.sflag [#allocation5], %s245
        %s247 = sand.u32 %s53, 1
        %s248 = smul.addr %s247, 128
        %s249 = scalar_lea.vmem [#allocation4], %s248
        // Predicated region
        $region41: #{prenet_forward.2} parent=39 // pred_check
          %p250 = pneg %p66
        $region42: #{prenet_forward.2} parent=39 // pred_check_branch
          %252 = sbr.rel (%p250) target = $region44
        $region43: #{prenet_forward.2} parent=39 // pred_region
          %253 = dma.done %s246, 2048
        $region44: #{prenet_forward.2} parent=39 // pred_fallthru
          _
        %p254 = scmp.lt.s32.totalorder %s19, 2
        %s255 = scalar_select %p254, %s19, 2
        %s256 = smul.addr %s255, 32
        %s257 = smul.addr %s256, 4
        %s258 = scalar_lea.vmem %s0, %s257
        %p259 = pneg %p40
        %p260 = pneg %p37
        %s261 = sand.u32 %s53, 1
        %s262 = scalar_lea.sflag [#allocation5], %s261
        %s263 = sand.u32 %s53, 1
        %s264 = smul.addr %s263, 128
        %s265 = scalar_lea.vmem [#allocation4], %s264
        %p266 = pneg %p66
        %p267 = pneg %p63
        %p268 = scmp.lt.s32.totalorder %s19, 2
        %s269 = scalar_select %p268, %s19, 2
        %s270 = scalar_lea.vmem %s2, %s269
        %p271 = pneg %p92
        %p272 = pneg %p89
        %p273 = scmp.lt.s32.totalorder %s19, 2
        %s274 = scalar_select %p273, %s19, 2
        %s275 = smul.addr %s274, 144
        %s276 = smul.addr %s275, 4
        %s277 = scalar_lea.vmem %s3, %s276
        %p278 = pneg %p118
        %p279 = pneg %p115
        %p280 = scmp.lt.s32.totalorder %s19, 2
        %s281 = scalar_select %p280, %s19, 2
        %s282 = scalar_lea.vmem %s4, %s281
        %p283 = pneg %p144
        %p284 = pneg %p141
        %p285 = pneg %p170
        %p286 = pneg %p167
        %p287 = scmp.lt.s32.totalorder %s19, 2
        %s288 = scalar_select %p287, %s19, 2
        %s289 = smul.addr %s288, 2
        %s290 = scalar_lea.vmem %s5, %s289
        %p291 = scmp.lt.s32.totalorder %s19, 2
        %s292 = scalar_select %p291, %s19, 2
        %s293 = smul.addr %s292, 32
        %s294 = smul.addr %s293, 4
        %s295 = scalar_lea.vmem %s0, %s294
        %p296 = scmp.lt.s32.totalorder %s19, 2
        %s297 = scalar_select %p296, %s19, 2
        %s298 = scalar_lea.vmem %s2, %s297
        %p299 = scmp.lt.s32.totalorder %s19, 2
        %s300 = scalar_select %p299, %s19, 2
        %s301 = smul.addr %s300, 144
        %s302 = smul.addr %s301, 4
        %s303 = scalar_lea.vmem %s3, %s302
        %p304 = scmp.lt.s32.totalorder %s19, 2
        %s305 = scalar_select %p304, %s19, 2
        %s306 = scalar_lea.vmem %s4, %s305
        %p307 = scmp.lt.s32.totalorder %s19, 2
        %s308 = scalar_select %p307, %s19, 2
        %s309 = smul.addr %s308, 2
        %s310 = scalar_lea.vmem %s5, %s309
        %v312 = vld [vmem:[%s295] sm:$0xff]
        %v313 = vld [vmem:[%s295 + $0x8] sm:$0xff]
        %v314 = vld [vmem:[%s295 + $0x10] sm:$0xff]
        %v315 = vld [vmem:[%s295 + $0x18] sm:$0xff]
        %v316 = vld [vmem:[%s295 + $0x20] sm:$0xff]
        %v317 = vld [vmem:[%s295 + $0x28] sm:$0xff]
        %v318 = vld [vmem:[%s295 + $0x30] sm:$0xff]
        %v319 = vld [vmem:[%s295 + $0x38] sm:$0xff]
        %v320 = vld [vmem:[%s295 + $0x40] sm:$0xff]
        %v321 = vld [vmem:[%s295 + $0x48] sm:$0xff]
        %v322 = vld [vmem:[%s295 + $0x50] sm:$0xff]
        %v323 = vld [vmem:[%s295 + $0x58] sm:$0xff]
        %v324 = vld [vmem:[%s295 + $0x60] sm:$0xff]
        %v325 = vld [vmem:[%s295 + $0x68] sm:$0xff]
        %v326 = vld [vmem:[%s295 + $0x70] sm:$0xff]
        %v327 = vld [vmem:[%s295 + $0x78] sm:$0xff]
        %v328 = vld [vmem:[%s249] sm:$0xf]
        %v329 = vld [vmem:[%s249 + $0x4] sm:$0xf]
        %v330 = vld [vmem:[%s249 + $0x8] sm:$0xf]
        %v331 = vld [vmem:[%s249 + $0xc] sm:$0xf]
        %v332 = vld [vmem:[%s249 + $0x10] sm:$0xf]
        %v333 = vld [vmem:[%s249 + $0x14] sm:$0xf]
        %v334 = vld [vmem:[%s249 + $0x18] sm:$0xf]
        %v335 = vld [vmem:[%s249 + $0x1c] sm:$0xf]
        %v336 = vld [vmem:[%s249 + $0x20] sm:$0xf]
        %v337 = vld [vmem:[%s249 + $0x24] sm:$0xf]
        %v338 = vld [vmem:[%s249 + $0x28] sm:$0xf]
        %v339 = vld [vmem:[%s249 + $0x2c] sm:$0xf]
        %v340 = vld [vmem:[%s249 + $0x30] sm:$0xf]
        %v341 = vld [vmem:[%s249 + $0x34] sm:$0xf]
        %v342 = vld [vmem:[%s249 + $0x38] sm:$0xf]
        %v343 = vld [vmem:[%s249 + $0x3c] sm:$0xf]
        %v344 = vld [vmem:[%s249 + $0x40] sm:$0xf]
        %v345 = vld [vmem:[%s249 + $0x44] sm:$0xf]
        %v346 = vld [vmem:[%s249 + $0x48] sm:$0xf]
        %v347 = vld [vmem:[%s249 + $0x4c] sm:$0xf]
        %v348 = vld [vmem:[%s249 + $0x50] sm:$0xf]
        %v349 = vld [vmem:[%s249 + $0x54] sm:$0xf]
        %v350 = vld [vmem:[%s249 + $0x58] sm:$0xf]
        %v351 = vld [vmem:[%s249 + $0x5c] sm:$0xf]
        %v352 = vld [vmem:[%s249 + $0x60] sm:$0xf]
        %v353 = vld [vmem:[%s249 + $0x64] sm:$0xf]
        %v354 = vld [vmem:[%s249 + $0x68] sm:$0xf]
        %v355 = vld [vmem:[%s249 + $0x6c] sm:$0xf]
        %v356 = vld [vmem:[%s249 + $0x70] sm:$0xf]
        %v357 = vld [vmem:[%s249 + $0x74] sm:$0xf]
        %v358 = vld [vmem:[%s249 + $0x78] sm:$0xf]
        %v359 = vld [vmem:[%s249 + $0x7c] sm:$0xf]
        %v360 = vld [vmem:[%s298] sm:$0x1]
        %v362 = vlaneseq
        %v363 = vshrl.u32 %v362, 7
        %v364 = vsub.s32 0, %v363
        %v365 = vrot.slane %v360, %v364
        %v383 = vunpack.c.l.b16 %v312
        %v384 = vunpack.c.h.b16 %v312
        %v385 = vunpack.c.l.b16 %v313
        %v386 = vunpack.c.h.b16 %v313
        %v387 = vunpack.c.l.b16 %v314
        %v388 = vunpack.c.h.b16 %v314
        %v389 = vunpack.c.l.b16 %v315
        %v390 = vunpack.c.h.b16 %v315
        %v391 = vunpack.c.l.b16 %v316
        %v392 = vunpack.c.h.b16 %v316
        %v393 = vunpack.c.l.b16 %v317
        %v394 = vunpack.c.h.b16 %v317
        %v395 = vunpack.c.l.b16 %v318
        %v396 = vunpack.c.h.b16 %v318
        %v397 = vunpack.c.l.b16 %v319
        %v398 = vunpack.c.h.b16 %v319
        %v399 = vunpack.c.l.b16 %v320
        %v400 = vunpack.c.h.b16 %v320
        %v401 = vunpack.c.l.b16 %v321
        %v402 = vunpack.c.h.b16 %v321
        %v403 = vunpack.c.l.b16 %v322
        %v404 = vunpack.c.h.b16 %v322
        %v405 = vunpack.c.l.b16 %v323
        %v406 = vunpack.c.h.b16 %v323
        %v407 = vunpack.c.l.b16 %v324
        %v408 = vunpack.c.h.b16 %v324
        %v409 = vunpack.c.l.b16 %v325
        %v410 = vunpack.c.h.b16 %v325
        %v411 = vunpack.c.l.b16 %v326
        %v412 = vunpack.c.h.b16 %v326
        %v413 = vunpack.c.l.b16 %v327
        %v414 = vunpack.c.h.b16 %v327
        %v415 = vpack.c.b16 %v385, %v383
        %v416 = vpack.c.b16 %v386, %v384
        %v417 = vpack.c.b16 %v389, %v387
        %v418 = vpack.c.b16 %v390, %v388
        %v419 = vpack.c.b16 %v393, %v391
        %v420 = vpack.c.b16 %v394, %v392
        %v421 = vpack.c.b16 %v397, %v395
        %v422 = vpack.c.b16 %v398, %v396
        %v423 = vpack.c.b16 %v401, %v399
        %v424 = vpack.c.b16 %v402, %v400
        %v425 = vpack.c.b16 %v405, %v403
        %v426 = vpack.c.b16 %v406, %v404
        %v427 = vpack.c.b16 %v409, %v407
        %v428 = vpack.c.b16 %v410, %v408
        %v429 = vpack.c.b16 %v413, %v411
        %v430 = vpack.c.b16 %v414, %v412
        %v479 = vunpack.c.l.b16 %v328
        %v480 = vunpack.c.l.b16 %v329
        %v481 = vunpack.c.l.b16 %v330
        %v482 = vunpack.c.l.b16 %v331
        %v483 = vunpack.c.l.b16 %v332
        %v484 = vunpack.c.l.b16 %v333
        %v485 = vunpack.c.l.b16 %v334
        %v486 = vunpack.c.l.b16 %v335
        %v487 = vunpack.c.l.b16 %v336
        %v488 = vunpack.c.l.b16 %v337
        %v489 = vunpack.c.l.b16 %v338
        %v490 = vunpack.c.l.b16 %v339
        %v491 = vunpack.c.l.b16 %v340
        %v492 = vunpack.c.l.b16 %v341
        %v493 = vunpack.c.l.b16 %v342
        %v494 = vunpack.c.l.b16 %v343
        %v495 = vunpack.c.l.b16 %v344
        %v496 = vunpack.c.l.b16 %v345
        %v497 = vunpack.c.l.b16 %v346
        %v498 = vunpack.c.l.b16 %v347
        %v499 = vunpack.c.l.b16 %v348
        %v500 = vunpack.c.l.b16 %v349
        %v501 = vunpack.c.l.b16 %v350
        %v502 = vunpack.c.l.b16 %v351
        %v503 = vunpack.c.l.b16 %v352
        %v504 = vunpack.c.l.b16 %v353
        %v505 = vunpack.c.l.b16 %v354
        %v506 = vunpack.c.l.b16 %v355
        %v507 = vunpack.c.l.b16 %v356
        %v508 = vunpack.c.l.b16 %v357
        %v509 = vunpack.c.l.b16 %v358
        %v510 = vunpack.c.l.b16 %v359
        %v511 = vpack.c.b16 %v480, %v479
        %v512 = vpack.c.b16 %v482, %v481
        %v513 = vpack.c.b16 %v484, %v483
        %v514 = vpack.c.b16 %v486, %v485
        %v515 = vpack.c.b16 %v488, %v487
        %v516 = vpack.c.b16 %v490, %v489
        %v517 = vpack.c.b16 %v492, %v491
        %v518 = vpack.c.b16 %v494, %v493
        %v519 = vpack.c.b16 %v496, %v495
        %v520 = vpack.c.b16 %v498, %v497
        %v521 = vpack.c.b16 %v500, %v499
        %v522 = vpack.c.b16 %v502, %v501
        %v523 = vpack.c.b16 %v504, %v503
        %v524 = vpack.c.b16 %v506, %v505
        %v525 = vpack.c.b16 %v508, %v507
        %v526 = vpack.c.b16 %v510, %v509
        %543 = vmatprep.subr.bf16.mxu0 0
        %544 = vmatpush1.bf16.msra.mxu0 %v511
        %545 = vmatprep.subr.bf16.mxu0 0
        %546 = vmatpush1.bf16.msra.mxu0 %v512
        %547 = vmatprep.subr.bf16.mxu0 0
        %548 = vmatpush1.bf16.msra.mxu0 %v513
        %549 = vmatprep.subr.bf16.mxu0 0
        %550 = vmatpush1.bf16.msra.mxu0 %v514
        %551 = vmatprep.subr.bf16.mxu0 0
        %552 = vmatpush1.bf16.msra.mxu0 %v515
        %553 = vmatprep.subr.bf16.mxu0 0
        %554 = vmatpush1.bf16.msra.mxu0 %v516
        %555 = vmatprep.subr.bf16.mxu0 0
        %556 = vmatpush1.bf16.msra.mxu0 %v517
        %557 = vmatprep.subr.bf16.mxu0 0
        %558 = vmatpush1.bf16.msra.mxu0 %v518
        %559 = vmatprep.subr.bf16.mxu0 0
        %560 = vmatpush1.bf16.msra.mxu0 %v519
        %561 = vmatprep.subr.bf16.mxu0 0
        %562 = vmatpush1.bf16.msra.mxu0 %v520
        %563 = vmatprep.subr.bf16.mxu0 0
        %564 = vmatpush1.bf16.msra.mxu0 %v521
        %565 = vmatprep.subr.bf16.mxu0 0
        %566 = vmatpush1.bf16.msra.mxu0 %v522
        %567 = vmatprep.subr.bf16.mxu0 0
        %568 = vmatpush1.bf16.msra.mxu0 %v523
        %569 = vmatprep.subr.bf16.mxu0 0
        %570 = vmatpush1.bf16.msra.mxu0 %v524
        %571 = vmatprep.subr.bf16.mxu0 0
        %572 = vmatpush1.bf16.msra.mxu0 %v525
        %573 = vmatprep.subr.bf16.mxu0 0
        %574 = vmatpush1.bf16.msra.mxu0 %v526
        %575 = vmatprep.mubr.bf16.mxu0 %v416
        %576 = vmatmul.mubr.bf16.gmra.mrb[0].mxu0 %v415
        %v577 = vpop.f32.mrb[0].mxu0
        %v578 = vadd.f32 %v365, %v577
        %v579 = vpop.f32.mrb[0].mxu0
        %v580 = vpop.f32.mrb[0].mxu0
        %v581 = vadd.f32 %v365, %v580
        %v582 = vpop.f32.mrb[0].mxu0
        %583 = vmatprep.mubr.bf16.mxu0 %v418
        %584 = vmatmul.mubr.bf16.gmra.mrb[0].mxu0 %v417
        %v585 = vpop.f32.mrb[0].mxu0
        %v586 = vadd.f32 %v365, %v585
        %v587 = vpop.f32.mrb[0].mxu0
        %v588 = vpop.f32.mrb[0].mxu0
        %v589 = vadd.f32 %v365, %v588
        %v590 = vpop.f32.mrb[0].mxu0
        %591 = vmatprep.mubr.bf16.mxu0 %v420
        %592 = vmatmul.mubr.bf16.gmra.mrb[0].mxu0 %v419
        %v593 = vpop.f32.mrb[0].mxu0
        %v594 = vadd.f32 %v365, %v593
        %v595 = vpop.f32.mrb[0].mxu0
        %v596 = vpop.f32.mrb[0].mxu0
        %v597 = vadd.f32 %v365, %v596
        %v598 = vpop.f32.mrb[0].mxu0
        %599 = vmatprep.mubr.bf16.mxu0 %v422
        %600 = vmatmul.mubr.bf16.gmra.mrb[0].mxu0 %v421
        %v601 = vpop.f32.mrb[0].mxu0
        %v602 = vadd.f32 %v365, %v601
        %v603 = vpop.f32.mrb[0].mxu0
        %v604 = vpop.f32.mrb[0].mxu0
        %v605 = vadd.f32 %v365, %v604
        %v606 = vpop.f32.mrb[0].mxu0
        %607 = vmatprep.mubr.bf16.mxu0 %v424
        %608 = vmatmul.mubr.bf16.gmra.mrb[0].mxu0 %v423
        %v609 = vpop.f32.mrb[0].mxu0
        %v610 = vadd.f32 %v365, %v609
        %v611 = vpop.f32.mrb[0].mxu0
        %v612 = vpop.f32.mrb[0].mxu0
        %v613 = vadd.f32 %v365, %v612
        %v614 = vpop.f32.mrb[0].mxu0
        %615 = vmatprep.mubr.bf16.mxu0 %v426
        %616 = vmatmul.mubr.bf16.gmra.mrb[0].mxu0 %v425
        %v617 = vpop.f32.mrb[0].mxu0
        %v618 = vadd.f32 %v365, %v617
        %v619 = vpop.f32.mrb[0].mxu0
        %v620 = vpop.f32.mrb[0].mxu0
        %v621 = vadd.f32 %v365, %v620
        %v622 = vpop.f32.mrb[0].mxu0
        %623 = vmatprep.mubr.bf16.mxu0 %v428
        %624 = vmatmul.mubr.bf16.gmra.mrb[0].mxu0 %v427
        %v625 = vpop.f32.mrb[0].mxu0
        %v626 = vadd.f32 %v365, %v625
        %v627 = vpop.f32.mrb[0].mxu0
        %v628 = vpop.f32.mrb[0].mxu0
        %v629 = vadd.f32 %v365, %v628
        %v630 = vpop.f32.mrb[0].mxu0
        %631 = vmatprep.mubr.bf16.mxu0 %v430
        %632 = vmatmul.mubr.bf16.gmra.mrb[0].mxu0 %v429
        %v633 = vpop.f32.mrb[0].mxu0
        %v634 = vadd.f32 %v365, %v633
        %v635 = vpop.f32.mrb[0].mxu0
        %v636 = vpop.f32.mrb[0].mxu0
        %v637 = vadd.f32 %v365, %v636
        %v638 = vpop.f32.mrb[0].mxu0
        %639 = vdwg.mxu0
        %v640 = vmax.f32 %v578, 0.0
        %v641 = vmax.f32 %v581, 0.0
        %v642 = vmax.f32 %v586, 0.0
        %v643 = vmax.f32 %v589, 0.0
        %v644 = vmax.f32 %v594, 0.0
        %v645 = vmax.f32 %v597, 0.0
        %v646 = vmax.f32 %v602, 0.0
        %v647 = vmax.f32 %v605, 0.0
        %v648 = vmax.f32 %v610, 0.0
        %v649 = vmax.f32 %v613, 0.0
        %v650 = vmax.f32 %v618, 0.0
        %v651 = vmax.f32 %v621, 0.0
        %v652 = vmax.f32 %v626, 0.0
        %v653 = vmax.f32 %v629, 0.0
        %v654 = vmax.f32 %v634, 0.0
        %v655 = vmax.f32 %v637, 0.0
        %656 = vst [vmem:[#allocation2] sm:$0xff] 0.0
        %657 = vst [vmem:[#allocation2 + $0x8] sm:$0xff] 0.0
        %658 = vst [vmem:[#allocation2 + $0x10] sm:$0xff] 0.0
        %659 = vst [vmem:[#allocation2 + $0x18] sm:$0xff] 0.0
        %660 = vst [vmem:[#allocation2 + $0x20] sm:$0xff] 0.0
        %661 = vst [vmem:[#allocation2 + $0x28] sm:$0xff] 0.0
        %662 = vst [vmem:[#allocation2 + $0x30] sm:$0xff] 0.0
        %663 = vst [vmem:[#allocation2 + $0x38] sm:$0xff] 0.0
        %664 = vst [vmem:[#allocation2 + $0x40] sm:$0xff] 0.0
        %665 = vst [vmem:[#allocation2 + $0x48] sm:$0xff] 0.0
        %666 = vst [vmem:[#allocation2 + $0x50] sm:$0xff] 0.0
        %667 = vst [vmem:[#allocation2 + $0x58] sm:$0xff] 0.0
        %668 = vst [vmem:[#allocation2 + $0x60] sm:$0x3f] 0.0
        %669 = vst [vmem:[#allocation2 + $0x68] sm:$0xff] 0.0
        %670 = vst [vmem:[#allocation2 + $0x70] sm:$0xff] 0.0
        %671 = vst [vmem:[#allocation2 + $0x78] sm:$0xff] 0.0
        %672 = vst [vmem:[#allocation2 + $0x80] sm:$0xff] 0.0
        %673 = vst [vmem:[#allocation2 + $0x88] sm:$0xff] 0.0
        %674 = vst [vmem:[#allocation2 + $0x90] sm:$0xff] 0.0
        %675 = vst [vmem:[#allocation2 + $0x98] sm:$0xff] 0.0
        %676 = vst [vmem:[#allocation2 + $0xa0] sm:$0xff] 0.0
        %677 = vst [vmem:[#allocation2 + $0xa8] sm:$0xff] 0.0
        %678 = vst [vmem:[#allocation2 + $0xb0] sm:$0xff] 0.0
        %679 = vst [vmem:[#allocation2 + $0xb8] sm:$0xff] 0.0
        %680 = vst [vmem:[#allocation2 + $0xc0] sm:$0xff] 0.0
        %681 = vst [vmem:[#allocation2 + $0xc8] sm:$0x3f] 0.0
        %682 = vst [vmem:[#allocation2 + $0xb] sm:$0xff] %v640
        %683 = vst [vmem:[#allocation2 + $0x15] sm:$0xff] %v641
        %684 = vst [vmem:[#allocation2 + $0x1f] sm:$0xff] %v642
        %685 = vst [vmem:[#allocation2 + $0x29] sm:$0xff] %v643
        %686 = vst [vmem:[#allocation2 + $0x33] sm:$0xff] %v644
        %687 = vst [vmem:[#allocation2 + $0x3d] sm:$0xff] %v645
        %688 = vst [vmem:[#allocation2 + $0x47] sm:$0xff] %v646
        %689 = vst [vmem:[#allocation2 + $0x51] sm:$0xff] %v647
        %s690 = scalar_lea.vmem [#allocation2], 104
        %691 = vst [vmem:[%s690 + $0xb] sm:$0xff] %v648
        %692 = vst [vmem:[%s690 + $0x15] sm:$0xff] %v649
        %693 = vst [vmem:[%s690 + $0x1f] sm:$0xff] %v650
        %694 = vst [vmem:[%s690 + $0x29] sm:$0xff] %v651
        %695 = vst [vmem:[%s690 + $0x33] sm:$0xff] %v652
        %696 = vst [vmem:[%s690 + $0x3d] sm:$0xff] %v653
        %697 = vst [vmem:[%s690 + $0x47] sm:$0xff] %v654
        %698 = vst [vmem:[%s690 + $0x51] sm:$0xff] %v655
        %v699 = vld [vmem:[#allocation2] sm:$0xff]
        %v700 = vld [vmem:[#allocation2 + $0x8] sm:$0xff]
        %v701 = vld [vmem:[#allocation2 + $0x10] sm:$0xff]
        %v702 = vld [vmem:[#allocation2 + $0x18] sm:$0xff]
        %v703 = vld [vmem:[#allocation2 + $0x20] sm:$0xff]
        %v704 = vld [vmem:[#allocation2 + $0x28] sm:$0xff]
        %v705 = vld [vmem:[#allocation2 + $0x30] sm:$0xff]
        %v706 = vld [vmem:[#allocation2 + $0x38] sm:$0xff]
        %v707 = vld [vmem:[#allocation2 + $0x40] sm:$0xff]
        %v708 = vld [vmem:[#allocation2 + $0x48] sm:$0xff]
        %v709 = vpack.c.bf16 %v700, %v699
        %v710 = vpack.c.bf16 %v702, %v701
        %v711 = vpack.c.bf16 %v704, %v703
        %v712 = vpack.c.bf16 %v706, %v705
        %v713 = vpack.c.bf16 %v708, %v707
        %714 = vst [vmem:[#allocation3] sm:$0xff] %v709
        %715 = vst [vmem:[#allocation3 + $0x48] sm:$0xff] %v710
        %716 = vst [vmem:[#allocation3 + $0x90] sm:$0xff] %v711
        %717 = vst [vmem:[#allocation3 + $0xd8] sm:$0xff] %v712
        %718 = vst [vmem:[#allocation3 + $0x120] sm:$0xff] %v713
        %v719 = vld [vmem:[#allocation2 + $0x1] sm:$0xff]
        %v720 = vld [vmem:[#allocation2 + $0x9] sm:$0xff]
        %v721 = vld [vmem:[#allocation2 + $0x11] sm:$0xff]
        %v722 = vld [vmem:[#allocation2 + $0x19] sm:$0xff]
        %v723 = vld [vmem:[#allocation2 + $0x21] sm:$0xff]
        %v724 = vld [vmem:[#allocation2 + $0x29] sm:$0xff]
        %v725 = vld [vmem:[#allocation2 + $0x31] sm:$0xff]
        %v726 = vld [vmem:[#allocation2 + $0x39] sm:$0xff]
        %v727 = vld [vmem:[#allocation2 + $0x41] sm:$0xff]
        %v728 = vld [vmem:[#allocation2 + $0x49] sm:$0xff]
        %v729 = vpack.c.bf16 %v720, %v719
        %v730 = vpack.c.bf16 %v722, %v721
        %v731 = vpack.c.bf16 %v724, %v723
        %v732 = vpack.c.bf16 %v726, %v725
        %v733 = vpack.c.bf16 %v728, %v727
        %734 = vst [vmem:[#allocation3 + $0x8] sm:$0xff] %v729
        %735 = vst [vmem:[#allocation3 + $0x50] sm:$0xff] %v730
        %736 = vst [vmem:[#allocation3 + $0x98] sm:$0xff] %v731
        %737 = vst [vmem:[#allocation3 + $0xe0] sm:$0xff] %v732
        %738 = vst [vmem:[#allocation3 + $0x128] sm:$0xff] %v733
        %v739 = vld [vmem:[#allocation2 + $0x2] sm:$0xff]
        %v740 = vld [vmem:[#allocation2 + $0xa] sm:$0xff]
        %v741 = vld [vmem:[#allocation2 + $0x12] sm:$0xff]
        %v742 = vld [vmem:[#allocation2 + $0x1a] sm:$0xff]
        %v743 = vld [vmem:[#allocation2 + $0x22] sm:$0xff]
        %v744 = vld [vmem:[#allocation2 + $0x2a] sm:$0xff]
        %v745 = vld [vmem:[#allocation2 + $0x32] sm:$0xff]
        %v746 = vld [vmem:[#allocation2 + $0x3a] sm:$0xff]
        %v747 = vld [vmem:[#allocation2 + $0x42] sm:$0xff]
        %v748 = vld [vmem:[#allocation2 + $0x4a] sm:$0xff]
        %v749 = vpack.c.bf16 %v740, %v739
        %v750 = vpack.c.bf16 %v742, %v741
        %v751 = vpack.c.bf16 %v744, %v743
        %v752 = vpack.c.bf16 %v746, %v745
        %v753 = vpack.c.bf16 %v748, %v747
        %754 = vst [vmem:[#allocation3 + $0x10] sm:$0xff] %v749
        %755 = vst [vmem:[#allocation3 + $0x58] sm:$0xff] %v750
        %756 = vst [vmem:[#allocation3 + $0xa0] sm:$0xff] %v751
        %757 = vst [vmem:[#allocation3 + $0xe8] sm:$0xff] %v752
        %758 = vst [vmem:[#allocation3 + $0x130] sm:$0xff] %v753
        %v759 = vld [vmem:[#allocation2 + $0xa] sm:$0xff]
        %v760 = vld [vmem:[#allocation2 + $0x12] sm:$0xff]
        %v761 = vld [vmem:[#allocation2 + $0x1a] sm:$0xff]
        %v762 = vld [vmem:[#allocation2 + $0x22] sm:$0xff]
        %v763 = vld [vmem:[#allocation2 + $0x2a] sm:$0xff]
        %v764 = vld [vmem:[#allocation2 + $0x32] sm:$0xff]
        %v765 = vld [vmem:[#allocation2 + $0x3a] sm:$0xff]
        %v766 = vld [vmem:[#allocation2 + $0x42] sm:$0xff]
        %v767 = vld [vmem:[#allocation2 + $0x4a] sm:$0xff]
        %v768 = vld [vmem:[#allocation2 + $0x52] sm:$0xff]
        %v769 = vpack.c.bf16 %v760, %v759
        %v770 = vpack.c.bf16 %v762, %v761
        %v771 = vpack.c.bf16 %v764, %v763
        %v772 = vpack.c.bf16 %v766, %v765
        %v773 = vpack.c.bf16 %v768, %v767
        %774 = vst [vmem:[#allocation3 + $0x18] sm:$0xff] %v769
        %775 = vst [vmem:[#allocation3 + $0x60] sm:$0xff] %v770
        %776 = vst [vmem:[#allocation3 + $0xa8] sm:$0xff] %v771
        %777 = vst [vmem:[#allocation3 + $0xf0] sm:$0xff] %v772
        %778 = vst [vmem:[#allocation3 + $0x138] sm:$0xff] %v773
        %v779 = vld [vmem:[#allocation2 + $0xb] sm:$0xff]
        %v780 = vld [vmem:[#allocation2 + $0x13] sm:$0xff]
        %v781 = vld [vmem:[#allocation2 + $0x1b] sm:$0xff]
        %v782 = vld [vmem:[#allocation2 + $0x23] sm:$0xff]
        %v783 = vld [vmem:[#allocation2 + $0x2b] sm:$0xff]
        %v784 = vld [vmem:[#allocation2 + $0x33] sm:$0xff]
        %v785 = vld [vmem:[#allocation2 + $0x3b] sm:$0xff]
        %v786 = vld [vmem:[#allocation2 + $0x43] sm:$0xff]
        %v787 = vld [vmem:[#allocation2 + $0x4b] sm:$0xff]
        %v788 = vld [vmem:[#allocation2 + $0x53] sm:$0xff]
        %v789 = vpack.c.bf16 %v780, %v779
        %v790 = vpack.c.bf16 %v782, %v781
        %v791 = vpack.c.bf16 %v784, %v783
        %v792 = vpack.c.bf16 %v786, %v785
        %v793 = vpack.c.bf16 %v788, %v787
        %794 = vst [vmem:[#allocation3 + $0x20] sm:$0xff] %v789
        %795 = vst [vmem:[#allocation3 + $0x68] sm:$0xff] %v790
        %796 = vst [vmem:[#allocation3 + $0xb0] sm:$0xff] %v791
        %797 = vst [vmem:[#allocation3 + $0xf8] sm:$0xff] %v792
        %798 = vst [vmem:[#allocation3 + $0x140] sm:$0xff] %v793
        %v799 = vld [vmem:[#allocation2 + $0xc] sm:$0xff]
        %v800 = vld [vmem:[#allocation2 + $0x14] sm:$0xff]
        %v801 = vld [vmem:[#allocation2 + $0x1c] sm:$0xff]
        %v802 = vld [vmem:[#allocation2 + $0x24] sm:$0xff]
        %v803 = vld [vmem:[#allocation2 + $0x2c] sm:$0xff]
        %v804 = vld [vmem:[#allocation2 + $0x34] sm:$0xff]
        %v805 = vld [vmem:[#allocation2 + $0x3c] sm:$0xff]
        %v806 = vld [vmem:[#allocation2 + $0x44] sm:$0xff]
        %v807 = vld [vmem:[#allocation2 + $0x4c] sm:$0xff]
        %v808 = vld [vmem:[#allocation2 + $0x54] sm:$0xff]
        %v809 = vpack.c.bf16 %v800, %v799
        %v810 = vpack.c.bf16 %v802, %v801
        %v811 = vpack.c.bf16 %v804, %v803
        %v812 = vpack.c.bf16 %v806, %v805
        %v813 = vpack.c.bf16 %v808, %v807
        %814 = vst [vmem:[#allocation3 + $0x28] sm:$0xff] %v809
        %815 = vst [vmem:[#allocation3 + $0x70] sm:$0xff] %v810
        %816 = vst [vmem:[#allocation3 + $0xb8] sm:$0xff] %v811
        %817 = vst [vmem:[#allocation3 + $0x100] sm:$0xff] %v812
        %818 = vst [vmem:[#allocation3 + $0x148] sm:$0xff] %v813
        %v819 = vld [vmem:[#allocation2 + $0x14] sm:$0xff]
        %v820 = vld [vmem:[#allocation2 + $0x1c] sm:$0xff]
        %v821 = vld [vmem:[#allocation2 + $0x24] sm:$0xff]
        %v822 = vld [vmem:[#allocation2 + $0x2c] sm:$0xff]
        %v823 = vld [vmem:[#allocation2 + $0x34] sm:$0xff]
        %v824 = vld [vmem:[#allocation2 + $0x3c] sm:$0xff]
        %v825 = vld [vmem:[#allocation2 + $0x44] sm:$0xff]
        %v826 = vld [vmem:[#allocation2 + $0x4c] sm:$0xff]
        %v827 = vld [vmem:[#allocation2 + $0x54] sm:$0xff]
        %v828 = vld [vmem:[#allocation2 + $0x5c] sm:$0xff]
        %v829 = vpack.c.bf16 %v820, %v819
        %v830 = vpack.c.bf16 %v822, %v821
        %v831 = vpack.c.bf16 %v824, %v823
        %v832 = vpack.c.bf16 %v826, %v825
        %v833 = vpack.c.bf16 %v828, %v827
        %834 = vst [vmem:[#allocation3 + $0x30] sm:$0xff] %v829
        %835 = vst [vmem:[#allocation3 + $0x78] sm:$0xff] %v830
        %836 = vst [vmem:[#allocation3 + $0xc0] sm:$0xff] %v831
        %837 = vst [vmem:[#allocation3 + $0x108] sm:$0xff] %v832
        %838 = vst [vmem:[#allocation3 + $0x150] sm:$0xff] %v833
        %v839 = vld [vmem:[#allocation2 + $0x15] sm:$0xff]
        %v840 = vld [vmem:[#allocation2 + $0x1d] sm:$0xff]
        %v841 = vld [vmem:[#allocation2 + $0x25] sm:$0xff]
        %v842 = vld [vmem:[#allocation2 + $0x2d] sm:$0xff]
        %v843 = vld [vmem:[#allocation2 + $0x35] sm:$0xff]
        %v844 = vld [vmem:[#allocation2 + $0x3d] sm:$0xff]
        %v845 = vld [vmem:[#allocation2 + $0x45] sm:$0xff]
        %v846 = vld [vmem:[#allocation2 + $0x4d] sm:$0xff]
        %v847 = vld [vmem:[#allocation2 + $0x55] sm:$0xff]
        %v848 = vld [vmem:[#allocation2 + $0x5d] sm:$0xff]
        %v849 = vpack.c.bf16 %v840, %v839
        %v850 = vpack.c.bf16 %v842, %v841
        %v851 = vpack.c.bf16 %v844, %v843
        %v852 = vpack.c.bf16 %v846, %v845
        %v853 = vpack.c.bf16 %v848, %v847
        %854 = vst [vmem:[#allocation3 + $0x38] sm:$0xff] %v849
        %855 = vst [vmem:[#allocation3 + $0x80] sm:$0xff] %v850
        %856 = vst [vmem:[#allocation3 + $0xc8] sm:$0xff] %v851
        %857 = vst [vmem:[#allocation3 + $0x110] sm:$0xff] %v852
        %858 = vst [vmem:[#allocation3 + $0x158] sm:$0xff] %v853
        %v859 = vld [vmem:[#allocation2 + $0x16] sm:$0xff]
        %v860 = vld [vmem:[#allocation2 + $0x1e] sm:$0xff]
        %v861 = vld [vmem:[#allocation2 + $0x26] sm:$0xff]
        %v862 = vld [vmem:[#allocation2 + $0x2e] sm:$0xff]
        %v863 = vld [vmem:[#allocation2 + $0x36] sm:$0xff]
        %v864 = vld [vmem:[#allocation2 + $0x3e] sm:$0xff]
        %v865 = vld [vmem:[#allocation2 + $0x46] sm:$0xff]
        %v866 = vld [vmem:[#allocation2 + $0x4e] sm:$0xff]
        %v867 = vld [vmem:[#allocation2 + $0x56] sm:$0xff]
        %v868 = vld [vmem:[#allocation2 + $0x5e] sm:$0xff]
        %v869 = vpack.c.bf16 %v860, %v859
        %v870 = vpack.c.bf16 %v862, %v861
        %v871 = vpack.c.bf16 %v864, %v863
        %v872 = vpack.c.bf16 %v866, %v865
        %v873 = vpack.c.bf16 %v868, %v867
        %874 = vst [vmem:[#allocation3 + $0x40] sm:$0xff] %v869
        %875 = vst [vmem:[#allocation3 + $0x88] sm:$0xff] %v870
        %876 = vst [vmem:[#allocation3 + $0xd0] sm:$0xff] %v871
        %877 = vst [vmem:[#allocation3 + $0x118] sm:$0xff] %v872
        %878 = vst [vmem:[#allocation3 + $0x160] sm:$0xff] %v873
        %v879 = vld [vmem:[%s690] sm:$0xff]
        %v880 = vld [vmem:[%s690 + $0x8] sm:$0xff]
        %v881 = vld [vmem:[%s690 + $0x10] sm:$0xff]
        %v882 = vld [vmem:[%s690 + $0x18] sm:$0xff]
        %v883 = vld [vmem:[%s690 + $0x20] sm:$0xff]
        %v884 = vld [vmem:[%s690 + $0x28] sm:$0xff]
        %v885 = vld [vmem:[%s690 + $0x30] sm:$0xff]
        %v886 = vld [vmem:[%s690 + $0x38] sm:$0xff]
        %v887 = vld [vmem:[%s690 + $0x40] sm:$0xff]
        %v888 = vld [vmem:[%s690 + $0x48] sm:$0xff]
        %v889 = vpack.c.bf16 %v880, %v879
        %v890 = vpack.c.bf16 %v882, %v881
        %v891 = vpack.c.bf16 %v884, %v883
        %v892 = vpack.c.bf16 %v886, %v885
        %v893 = vpack.c.bf16 %v888, %v887
        %894 = vst [vmem:[#allocation3 + $0x168] sm:$0xff] %v889
        %895 = vst [vmem:[#allocation3 + $0x1b0] sm:$0xff] %v890
        %896 = vst [vmem:[#allocation3 + $0x1f8] sm:$0xff] %v891
        %897 = vst [vmem:[#allocation3 + $0x240] sm:$0xff] %v892
        %898 = vst [vmem:[#allocation3 + $0x288] sm:$0xff] %v893
        %v899 = vld [vmem:[%s690 + $0x1] sm:$0xff]
        %v900 = vld [vmem:[%s690 + $0x9] sm:$0xff]
        %v901 = vld [vmem:[%s690 + $0x11] sm:$0xff]
        %v902 = vld [vmem:[%s690 + $0x19] sm:$0xff]
        %v903 = vld [vmem:[%s690 + $0x21] sm:$0xff]
        %v904 = vld [vmem:[%s690 + $0x29] sm:$0xff]
        %v905 = vld [vmem:[%s690 + $0x31] sm:$0xff]
        %v906 = vld [vmem:[%s690 + $0x39] sm:$0xff]
        %v907 = vld [vmem:[%s690 + $0x41] sm:$0xff]
        %v908 = vld [vmem:[%s690 + $0x49] sm:$0xff]
        %v909 = vpack.c.bf16 %v900, %v899
        %v910 = vpack.c.bf16 %v902, %v901
        %v911 = vpack.c.bf16 %v904, %v903
        %v912 = vpack.c.bf16 %v906, %v905
        %v913 = vpack.c.bf16 %v908, %v907
        %914 = vst [vmem:[#allocation3 + $0x170] sm:$0xff] %v909
        %915 = vst [vmem:[#allocation3 + $0x1b8] sm:$0xff] %v910
        %916 = vst [vmem:[#allocation3 + $0x200] sm:$0xff] %v911
        %917 = vst [vmem:[#allocation3 + $0x248] sm:$0xff] %v912
        %918 = vst [vmem:[#allocation3 + $0x290] sm:$0xff] %v913
        %v919 = vld [vmem:[%s690 + $0x2] sm:$0xff]
        %v920 = vld [vmem:[%s690 + $0xa] sm:$0xff]
        %v921 = vld [vmem:[%s690 + $0x12] sm:$0xff]
        %v922 = vld [vmem:[%s690 + $0x1a] sm:$0xff]
        %v923 = vld [vmem:[%s690 + $0x22] sm:$0xff]
        %v924 = vld [vmem:[%s690 + $0x2a] sm:$0xff]
        %v925 = vld [vmem:[%s690 + $0x32] sm:$0xff]
        %v926 = vld [vmem:[%s690 + $0x3a] sm:$0xff]
        %v927 = vld [vmem:[%s690 + $0x42] sm:$0xff]
        %v928 = vld [vmem:[%s690 + $0x4a] sm:$0xff]
        %v929 = vpack.c.bf16 %v920, %v919
        %v930 = vpack.c.bf16 %v922, %v921
        %v931 = vpack.c.bf16 %v924, %v923
        %v932 = vpack.c.bf16 %v926, %v925
        %v933 = vpack.c.bf16 %v928, %v927
        %934 = vst [vmem:[#allocation3 + $0x178] sm:$0xff] %v929
        %935 = vst [vmem:[#allocation3 + $0x1c0] sm:$0xff] %v930
        %936 = vst [vmem:[#allocation3 + $0x208] sm:$0xff] %v931
        %937 = vst [vmem:[#allocation3 + $0x250] sm:$0xff] %v932
        %938 = vst [vmem:[#allocation3 + $0x298] sm:$0xff] %v933
        %v939 = vld [vmem:[%s690 + $0xa] sm:$0xff]
        %v940 = vld [vmem:[%s690 + $0x12] sm:$0xff]
        %v941 = vld [vmem:[%s690 + $0x1a] sm:$0xff]
        %v942 = vld [vmem:[%s690 + $0x22] sm:$0xff]
        %v943 = vld [vmem:[%s690 + $0x2a] sm:$0xff]
        %v944 = vld [vmem:[%s690 + $0x32] sm:$0xff]
        %v945 = vld [vmem:[%s690 + $0x3a] sm:$0xff]
        %v946 = vld [vmem:[%s690 + $0x42] sm:$0xff]
        %v947 = vld [vmem:[%s690 + $0x4a] sm:$0xff]
        %v948 = vld [vmem:[%s690 + $0x52] sm:$0xff]
        %v949 = vpack.c.bf16 %v940, %v939
        %v950 = vpack.c.bf16 %v942, %v941
        %v951 = vpack.c.bf16 %v944, %v943
        %v952 = vpack.c.bf16 %v946, %v945
        %v953 = vpack.c.bf16 %v948, %v947
        %954 = vst [vmem:[#allocation3 + $0x180] sm:$0xff] %v949
        %955 = vst [vmem:[#allocation3 + $0x1c8] sm:$0xff] %v950
        %956 = vst [vmem:[#allocation3 + $0x210] sm:$0xff] %v951
        %957 = vst [vmem:[#allocation3 + $0x258] sm:$0xff] %v952
        %958 = vst [vmem:[#allocation3 + $0x2a0] sm:$0xff] %v953
        %v959 = vld [vmem:[%s690 + $0xb] sm:$0xff]
        %v960 = vld [vmem:[%s690 + $0x13] sm:$0xff]
        %v961 = vld [vmem:[%s690 + $0x1b] sm:$0xff]
        %v962 = vld [vmem:[%s690 + $0x23] sm:$0xff]
        %v963 = vld [vmem:[%s690 + $0x2b] sm:$0xff]
        %v964 = vld [vmem:[%s690 + $0x33] sm:$0xff]
        %v965 = vld [vmem:[%s690 + $0x3b] sm:$0xff]
        %v966 = vld [vmem:[%s690 + $0x43] sm:$0xff]
        %v967 = vld [vmem:[%s690 + $0x4b] sm:$0xff]
        %v968 = vld [vmem:[%s690 + $0x53] sm:$0xff]
        %v969 = vpack.c.bf16 %v960, %v959
        %v970 = vpack.c.bf16 %v962, %v961
        %v971 = vpack.c.bf16 %v964, %v963
        %v972 = vpack.c.bf16 %v966, %v965
        %v973 = vpack.c.bf16 %v968, %v967
        %974 = vst [vmem:[#allocation3 + $0x188] sm:$0xff] %v969
        %975 = vst [vmem:[#allocation3 + $0x1d0] sm:$0xff] %v970
        %976 = vst [vmem:[#allocation3 + $0x218] sm:$0xff] %v971
        %977 = vst [vmem:[#allocation3 + $0x260] sm:$0xff] %v972
        %978 = vst [vmem:[#allocation3 + $0x2a8] sm:$0xff] %v973
        %v979 = vld [vmem:[%s690 + $0xc] sm:$0xff]
        %v980 = vld [vmem:[%s690 + $0x14] sm:$0xff]
        %v981 = vld [vmem:[%s690 + $0x1c] sm:$0xff]
        %v982 = vld [vmem:[%s690 + $0x24] sm:$0xff]
        %v983 = vld [vmem:[%s690 + $0x2c] sm:$0xff]
        %v984 = vld [vmem:[%s690 + $0x34] sm:$0xff]
        %v985 = vld [vmem:[%s690 + $0x3c] sm:$0xff]
        %v986 = vld [vmem:[%s690 + $0x44] sm:$0xff]
        %v987 = vld [vmem:[%s690 + $0x4c] sm:$0xff]
        %v988 = vld [vmem:[%s690 + $0x54] sm:$0xff]
        %v989 = vpack.c.bf16 %v980, %v979
        %v990 = vpack.c.bf16 %v982, %v981
        %v991 = vpack.c.bf16 %v984, %v983
        %v992 = vpack.c.bf16 %v986, %v985
        %v993 = vpack.c.bf16 %v988, %v987
        %994 = vst [vmem:[#allocation3 + $0x190] sm:$0xff] %v989
        %995 = vst [vmem:[#allocation3 + $0x1d8] sm:$0xff] %v990
        %996 = vst [vmem:[#allocation3 + $0x220] sm:$0xff] %v991
        %997 = vst [vmem:[#allocation3 + $0x268] sm:$0xff] %v992
        %998 = vst [vmem:[#allocation3 + $0x2b0] sm:$0xff] %v993
        %v999 = vld [vmem:[%s690 + $0x14] sm:$0xff]
        %v1000 = vld [vmem:[%s690 + $0x1c] sm:$0xff]
        %v1001 = vld [vmem:[%s690 + $0x24] sm:$0xff]
        %v1002 = vld [vmem:[%s690 + $0x2c] sm:$0xff]
        %v1003 = vld [vmem:[%s690 + $0x34] sm:$0xff]
        %v1004 = vld [vmem:[%s690 + $0x3c] sm:$0xff]
        %v1005 = vld [vmem:[%s690 + $0x44] sm:$0xff]
        %v1006 = vld [vmem:[%s690 + $0x4c] sm:$0xff]
        %v1007 = vld [vmem:[%s690 + $0x54] sm:$0xff]
        %v1008 = vld [vmem:[%s690 + $0x5c] sm:$0xff]
        %v1009 = vpack.c.bf16 %v1000, %v999
        %v1010 = vpack.c.bf16 %v1002, %v1001
        %v1011 = vpack.c.bf16 %v1004, %v1003
        %v1012 = vpack.c.bf16 %v1006, %v1005
        %v1013 = vpack.c.bf16 %v1008, %v1007
        %1014 = vst [vmem:[#allocation3 + $0x198] sm:$0xff] %v1009
        %1015 = vst [vmem:[#allocation3 + $0x1e0] sm:$0xff] %v1010
        %1016 = vst [vmem:[#allocation3 + $0x228] sm:$0xff] %v1011
        %1017 = vst [vmem:[#allocation3 + $0x270] sm:$0xff] %v1012
        %1018 = vst [vmem:[#allocation3 + $0x2b8] sm:$0xff] %v1013
        %v1019 = vld [vmem:[%s690 + $0x15] sm:$0xff]
        %v1020 = vld [vmem:[%s690 + $0x1d] sm:$0xff]
        %v1021 = vld [vmem:[%s690 + $0x25] sm:$0xff]
        %v1022 = vld [vmem:[%s690 + $0x2d] sm:$0xff]
        %v1023 = vld [vmem:[%s690 + $0x35] sm:$0xff]
        %v1024 = vld [vmem:[%s690 + $0x3d] sm:$0xff]
        %v1025 = vld [vmem:[%s690 + $0x45] sm:$0xff]
        %v1026 = vld [vmem:[%s690 + $0x4d] sm:$0xff]
        %v1027 = vld [vmem:[%s690 + $0x55] sm:$0xff]
        %v1028 = vld [vmem:[%s690 + $0x5d] sm:$0xff]
        %v1029 = vpack.c.bf16 %v1020, %v1019
        %v1030 = vpack.c.bf16 %v1022, %v1021
        %v1031 = vpack.c.bf16 %v1024, %v1023
        %v1032 = vpack.c.bf16 %v1026, %v1025
        %v1033 = vpack.c.bf16 %v1028, %v1027
        %1034 = vst [vmem:[#allocation3 + $0x1a0] sm:$0xff] %v1029
        %1035 = vst [vmem:[#allocation3 + $0x1e8] sm:$0xff] %v1030
        %1036 = vst [vmem:[#allocation3 + $0x230] sm:$0xff] %v1031
        %1037 = vst [vmem:[#allocation3 + $0x278] sm:$0xff] %v1032
        %1038 = vst [vmem:[#allocation3 + $0x2c0] sm:$0xff] %v1033
        %v1039 = vld [vmem:[%s690 + $0x16] sm:$0xff]
        %v1040 = vld [vmem:[%s690 + $0x1e] sm:$0xff]
        %v1041 = vld [vmem:[%s690 + $0x26] sm:$0xff]
        %v1042 = vld [vmem:[%s690 + $0x2e] sm:$0xff]
        %v1043 = vld [vmem:[%s690 + $0x36] sm:$0xff]
        %v1044 = vld [vmem:[%s690 + $0x3e] sm:$0xff]
        %v1045 = vld [vmem:[%s690 + $0x46] sm:$0xff]
        %v1046 = vld [vmem:[%s690 + $0x4e] sm:$0xff]
        %v1047 = vld [vmem:[%s690 + $0x56] sm:$0xff]
        %v1048 = vld [vmem:[%s690 + $0x5e] sm:$0xff]
        %v1049 = vpack.c.bf16 %v1040, %v1039
        %v1050 = vpack.c.bf16 %v1042, %v1041
        %v1051 = vpack.c.bf16 %v1044, %v1043
        %v1052 = vpack.c.bf16 %v1046, %v1045
        %v1053 = vpack.c.bf16 %v1048, %v1047
        %1054 = vst [vmem:[#allocation3 + $0x1a8] sm:$0xff] %v1049
        %1055 = vst [vmem:[#allocation3 + $0x1f0] sm:$0xff] %v1050
        %1056 = vst [vmem:[#allocation3 + $0x238] sm:$0xff] %v1051
        %1057 = vst [vmem:[#allocation3 + $0x280] sm:$0xff] %v1052
        %1058 = vst [vmem:[#allocation3 + $0x2c8] sm:$0xff] %v1053
        %v1059 = vld [vmem:[#allocation3] sm:$0xff]
        %v1060 = vld [vmem:[#allocation3 + $0x8] sm:$0xff]
        %v1061 = vld [vmem:[#allocation3 + $0x10] sm:$0xff]
        %v1062 = vld [vmem:[#allocation3 + $0x18] sm:$0xff]
        %v1063 = vld [vmem:[#allocation3 + $0x20] sm:$0xff]
        %v1064 = vld [vmem:[#allocation3 + $0x28] sm:$0xff]
        %v1065 = vld [vmem:[#allocation3 + $0x30] sm:$0xff]
        %v1066 = vld [vmem:[#allocation3 + $0x38] sm:$0xff]
        %v1067 = vld [vmem:[#allocation3 + $0x40] sm:$0xff]
        %v1068 = vld [vmem:[#allocation3 + $0x48] sm:$0xff]
        %v1069 = vld [vmem:[#allocation3 + $0x50] sm:$0xff]
        %v1070 = vld [vmem:[#allocation3 + $0x58] sm:$0xff]
        %v1071 = vld [vmem:[#allocation3 + $0x60] sm:$0xff]
        %v1072 = vld [vmem:[#allocation3 + $0x68] sm:$0xff]
        %v1073 = vld [vmem:[#allocation3 + $0x70] sm:$0xff]
        %v1074 = vld [vmem:[#allocation3 + $0x78] sm:$0xff]
        %v1075 = vld [vmem:[#allocation3 + $0x80] sm:$0xff]
        %v1076 = vld [vmem:[#allocation3 + $0x88] sm:$0xff]
        %v1077 = vld [vmem:[#allocation3 + $0x90] sm:$0xff]
        %v1078 = vld [vmem:[#allocation3 + $0x98] sm:$0xff]
        %v1079 = vld [vmem:[#allocation3 + $0xa0] sm:$0xff]
        %v1080 = vld [vmem:[#allocation3 + $0xa8] sm:$0xff]
        %v1081 = vld [vmem:[#allocation3 + $0xb0] sm:$0xff]
        %v1082 = vld [vmem:[#allocation3 + $0xb8] sm:$0xff]
        %v1083 = vld [vmem:[#allocation3 + $0xc0] sm:$0xff]
        %v1084 = vld [vmem:[#allocation3 + $0xc8] sm:$0xff]
        %v1085 = vld [vmem:[#allocation3 + $0xd0] sm:$0xff]
        %v1086 = vld [vmem:[#allocation3 + $0xd8] sm:$0xff]
        %v1087 = vld [vmem:[#allocation3 + $0xe0] sm:$0xff]
        %v1088 = vld [vmem:[#allocation3 + $0xe8] sm:$0xff]
        %v1089 = vld [vmem:[#allocation3 + $0xf0] sm:$0xff]
        %v1090 = vld [vmem:[#allocation3 + $0xf8] sm:$0xff]
        %v1091 = vld [vmem:[#allocation3 + $0x100] sm:$0xff]
        %v1092 = vld [vmem:[#allocation3 + $0x108] sm:$0xff]
        %v1093 = vld [vmem:[#allocation3 + $0x110] sm:$0xff]
        %v1094 = vld [vmem:[#allocation3 + $0x118] sm:$0xff]
        %v1095 = vld [vmem:[#allocation3 + $0x120] sm:$0xff]
        %v1096 = vld [vmem:[#allocation3 + $0x128] sm:$0xff]
        %v1097 = vld [vmem:[#allocation3 + $0x130] sm:$0xff]
        %v1098 = vld [vmem:[#allocation3 + $0x138] sm:$0xff]
        %v1099 = vld [vmem:[#allocation3 + $0x140] sm:$0xff]
        %v1100 = vld [vmem:[#allocation3 + $0x148] sm:$0xff]
        %v1101 = vld [vmem:[#allocation3 + $0x150] sm:$0xff]
        %v1102 = vld [vmem:[#allocation3 + $0x158] sm:$0xff]
        %v1103 = vld [vmem:[#allocation3 + $0x160] sm:$0xff]
        %v1104 = vld [vmem:[#allocation3 + $0x168] sm:$0xff]
        %v1105 = vld [vmem:[#allocation3 + $0x170] sm:$0xff]
        %v1106 = vld [vmem:[#allocation3 + $0x178] sm:$0xff]
        %v1107 = vld [vmem:[#allocation3 + $0x180] sm:$0xff]
        %v1108 = vld [vmem:[#allocation3 + $0x188] sm:$0xff]
        %v1109 = vld [vmem:[#allocation3 + $0x190] sm:$0xff]
        %v1110 = vld [vmem:[#allocation3 + $0x198] sm:$0xff]
        %v1111 = vld [vmem:[#allocation3 + $0x1a0] sm:$0xff]
        %v1112 = vld [vmem:[#allocation3 + $0x1a8] sm:$0xff]
        %v1113 = vld [vmem:[#allocation3 + $0x1b0] sm:$0xff]
        %v1114 = vld [vmem:[#allocation3 + $0x1b8] sm:$0xff]
        %v1115 = vld [vmem:[#allocation3 + $0x1c0] sm:$0xff]
        %v1116 = vld [vmem:[#allocation3 + $0x1c8] sm:$0xff]
        %v1117 = vld [vmem:[#allocation3 + $0x1d0] sm:$0xff]
        %v1118 = vld [vmem:[#allocation3 + $0x1d8] sm:$0xff]
        %v1119 = vld [vmem:[#allocation3 + $0x1e0] sm:$0xff]
        %v1120 = vld [vmem:[#allocation3 + $0x1e8] sm:$0xff]
        %v1121 = vld [vmem:[#allocation3 + $0x1f0] sm:$0xff]
        %v1122 = vld [vmem:[#allocation3 + $0x1f8] sm:$0xff]
        %v1123 = vld [vmem:[#allocation3 + $0x200] sm:$0xff]
        %v1124 = vld [vmem:[#allocation3 + $0x208] sm:$0xff]
        %v1125 = vld [vmem:[#allocation3 + $0x210] sm:$0xff]
        %v1126 = vld [vmem:[#allocation3 + $0x218] sm:$0xff]
        %v1127 = vld [vmem:[#allocation3 + $0x220] sm:$0xff]
        %v1128 = vld [vmem:[#allocation3 + $0x228] sm:$0xff]
        %v1129 = vld [vmem:[#allocation3 + $0x230] sm:$0xff]
        %v1130 = vld [vmem:[#allocation3 + $0x238] sm:$0xff]
        %v1131 = vld [vmem:[#allocation3 + $0x240] sm:$0xff]
        %v1132 = vld [vmem:[#allocation3 + $0x248] sm:$0xff]
        %v1133 = vld [vmem:[#allocation3 + $0x250] sm:$0xff]
        %v1134 = vld [vmem:[#allocation3 + $0x258] sm:$0xff]
        %v1135 = vld [vmem:[#allocation3 + $0x260] sm:$0xff]
        %v1136 = vld [vmem:[#allocation3 + $0x268] sm:$0xff]
        %v1137 = vld [vmem:[#allocation3 + $0x270] sm:$0xff]
        %v1138 = vld [vmem:[#allocation3 + $0x278] sm:$0xff]
        %v1139 = vld [vmem:[#allocation3 + $0x280] sm:$0xff]
        %v1140 = vld [vmem:[#allocation3 + $0x288] sm:$0xff]
        %v1141 = vld [vmem:[#allocation3 + $0x290] sm:$0xff]
        %v1142 = vld [vmem:[#allocation3 + $0x298] sm:$0xff]
        %v1143 = vld [vmem:[#allocation3 + $0x2a0] sm:$0xff]
        %v1144 = vld [vmem:[#allocation3 + $0x2a8] sm:$0xff]
        %v1145 = vld [vmem:[#allocation3 + $0x2b0] sm:$0xff]
        %v1146 = vld [vmem:[#allocation3 + $0x2b8] sm:$0xff]
        %v1147 = vld [vmem:[#allocation3 + $0x2c0] sm:$0xff]
        %v1148 = vld [vmem:[#allocation3 + $0x2c8] sm:$0xff]
        %v1149 = vld [vmem:[%s303] sm:$0xf]
        %v1150 = vld [vmem:[%s303 + $0x4] sm:$0xf]
        %v1151 = vld [vmem:[%s303 + $0x8] sm:$0xf]
        %v1152 = vld [vmem:[%s303 + $0xc] sm:$0xf]
        %v1153 = vld [vmem:[%s303 + $0x10] sm:$0xf]
        %v1154 = vld [vmem:[%s303 + $0x14] sm:$0xf]
        %v1155 = vld [vmem:[%s303 + $0x18] sm:$0xf]
        %v1156 = vld [vmem:[%s303 + $0x1c] sm:$0xf]
        %v1157 = vld [vmem:[%s303 + $0x20] sm:$0xf]
        %v1158 = vld [vmem:[%s303 + $0x24] sm:$0xf]
        %v1159 = vld [vmem:[%s303 + $0x28] sm:$0xf]
        %v1160 = vld [vmem:[%s303 + $0x2c] sm:$0xf]
        %v1161 = vld [vmem:[%s303 + $0x30] sm:$0xf]
        %v1162 = vld [vmem:[%s303 + $0x34] sm:$0xf]
        %v1163 = vld [vmem:[%s303 + $0x38] sm:$0xf]
        %v1164 = vld [vmem:[%s303 + $0x3c] sm:$0xf]
        %v1165 = vld [vmem:[%s303 + $0x40] sm:$0xf]
        %v1166 = vld [vmem:[%s303 + $0x44] sm:$0xf]
        %v1167 = vld [vmem:[%s303 + $0x48] sm:$0xf]
        %v1168 = vld [vmem:[%s303 + $0x4c] sm:$0xf]
        %v1169 = vld [vmem:[%s303 + $0x50] sm:$0xf]
        %v1170 = vld [vmem:[%s303 + $0x54] sm:$0xf]
        %v1171 = vld [vmem:[%s303 + $0x58] sm:$0xf]
        %v1172 = vld [vmem:[%s303 + $0x5c] sm:$0xf]
        %v1173 = vld [vmem:[%s303 + $0x60] sm:$0xf]
        %v1174 = vld [vmem:[%s303 + $0x64] sm:$0xf]
        %v1175 = vld [vmem:[%s303 + $0x68] sm:$0xf]
        %v1176 = vld [vmem:[%s303 + $0x6c] sm:$0xf]
        %v1177 = vld [vmem:[%s303 + $0x70] sm:$0xf]
        %v1178 = vld [vmem:[%s303 + $0x74] sm:$0xf]
        %v1179 = vld [vmem:[%s303 + $0x78] sm:$0xf]
        %v1180 = vld [vmem:[%s303 + $0x7c] sm:$0xf]
        %v1181 = vld [vmem:[%s303 + $0x80] sm:$0xf]
        %v1182 = vld [vmem:[%s303 + $0x84] sm:$0xf]
        %v1183 = vld [vmem:[%s303 + $0x88] sm:$0xf]
        %v1184 = vld [vmem:[%s303 + $0x8c] sm:$0xf]
        %v1185 = vld [vmem:[%s303 + $0x90] sm:$0xf]
        %v1186 = vld [vmem:[%s303 + $0x94] sm:$0xf]
        %v1187 = vld [vmem:[%s303 + $0x98] sm:$0xf]
        %v1188 = vld [vmem:[%s303 + $0x9c] sm:$0xf]
        %v1189 = vld [vmem:[%s303 + $0xa0] sm:$0xf]
        %v1190 = vld [vmem:[%s303 + $0xa4] sm:$0xf]
        %v1191 = vld [vmem:[%s303 + $0xa8] sm:$0xf]
        %v1192 = vld [vmem:[%s303 + $0xac] sm:$0xf]
        %v1193 = vld [vmem:[%s303 + $0xb0] sm:$0xf]
        %v1194 = vld [vmem:[%s303 + $0xb4] sm:$0xf]
        %v1195 = vld [vmem:[%s303 + $0xb8] sm:$0xf]
        %v1196 = vld [vmem:[%s303 + $0xbc] sm:$0xf]
        %v1197 = vld [vmem:[%s303 + $0xc0] sm:$0xf]
        %v1198 = vld [vmem:[%s303 + $0xc4] sm:$0xf]
        %v1199 = vld [vmem:[%s303 + $0xc8] sm:$0xf]
        %v1200 = vld [vmem:[%s303 + $0xcc] sm:$0xf]
        %v1201 = vld [vmem:[%s303 + $0xd0] sm:$0xf]
        %v1202 = vld [vmem:[%s303 + $0xd4] sm:$0xf]
        %v1203 = vld [vmem:[%s303 + $0xd8] sm:$0xf]
        %v1204 = vld [vmem:[%s303 + $0xdc] sm:$0xf]
        %v1205 = vld [vmem:[%s303 + $0xe0] sm:$0xf]
        %v1206 = vld [vmem:[%s303 + $0xe4] sm:$0xf]
        %v1207 = vld [vmem:[%s303 + $0xe8] sm:$0xf]
        %v1208 = vld [vmem:[%s303 + $0xec] sm:$0xf]
        %v1209 = vld [vmem:[%s303 + $0xf0] sm:$0xf]
        %v1210 = vld [vmem:[%s303 + $0xf4] sm:$0xf]
        %v1211 = vld [vmem:[%s303 + $0xf8] sm:$0xf]
        %v1212 = vld [vmem:[%s303 + $0xfc] sm:$0xf]
        %v1213 = vld [vmem:[%s303 + $0x100] sm:$0xf]
        %v1214 = vld [vmem:[%s303 + $0x104] sm:$0xf]
        %v1215 = vld [vmem:[%s303 + $0x108] sm:$0xf]
        %v1216 = vld [vmem:[%s303 + $0x10c] sm:$0xf]
        %v1217 = vld [vmem:[%s303 + $0x110] sm:$0xf]
        %v1218 = vld [vmem:[%s303 + $0x114] sm:$0xf]
        %v1219 = vld [vmem:[%s303 + $0x118] sm:$0xf]
        %v1220 = vld [vmem:[%s303 + $0x11c] sm:$0xf]
        %v1221 = vld [vmem:[%s303 + $0x120] sm:$0xf]
        %v1222 = vld [vmem:[%s303 + $0x124] sm:$0xf]
        %v1223 = vld [vmem:[%s303 + $0x128] sm:$0xf]
        %v1224 = vld [vmem:[%s303 + $0x12c] sm:$0xf]
        %v1225 = vld [vmem:[%s303 + $0x130] sm:$0xf]
        %v1226 = vld [vmem:[%s303 + $0x134] sm:$0xf]
        %v1227 = vld [vmem:[%s303 + $0x138] sm:$0xf]
        %v1228 = vld [vmem:[%s303 + $0x13c] sm:$0xf]
        %v1229 = vld [vmem:[%s303 + $0x140] sm:$0xf]
        %v1230 = vld [vmem:[%s303 + $0x144] sm:$0xf]
        %v1231 = vld [vmem:[%s303 + $0x148] sm:$0xf]
        %v1232 = vld [vmem:[%s303 + $0x14c] sm:$0xf]
        %v1233 = vld [vmem:[%s303 + $0x150] sm:$0xf]
        %v1234 = vld [vmem:[%s303 + $0x154] sm:$0xf]
        %v1235 = vld [vmem:[%s303 + $0x158] sm:$0xf]
        %v1236 = vld [vmem:[%s303 + $0x15c] sm:$0xf]
        %v1237 = vld [vmem:[%s303 + $0x160] sm:$0xf]
        %v1238 = vld [vmem:[%s303 + $0x164] sm:$0xf]
        %v1239 = vld [vmem:[%s303 + $0x168] sm:$0xf]
        %v1240 = vld [vmem:[%s303 + $0x16c] sm:$0xf]
        %v1241 = vld [vmem:[%s303 + $0x170] sm:$0xf]
        %v1242 = vld [vmem:[%s303 + $0x174] sm:$0xf]
        %v1243 = vld [vmem:[%s303 + $0x178] sm:$0xf]
        %v1244 = vld [vmem:[%s303 + $0x17c] sm:$0xf]
        %v1245 = vld [vmem:[%s303 + $0x180] sm:$0xf]
        %v1246 = vld [vmem:[%s303 + $0x184] sm:$0xf]
        %v1247 = vld [vmem:[%s303 + $0x188] sm:$0xf]
        %v1248 = vld [vmem:[%s303 + $0x18c] sm:$0xf]
        %v1249 = vld [vmem:[%s303 + $0x190] sm:$0xf]
        %v1250 = vld [vmem:[%s303 + $0x194] sm:$0xf]
        %v1251 = vld [vmem:[%s303 + $0x198] sm:$0xf]
        %v1252 = vld [vmem:[%s303 + $0x19c] sm:$0xf]
        %v1253 = vld [vmem:[%s303 + $0x1a0] sm:$0xf]
        %v1254 = vld [vmem:[%s303 + $0x1a4] sm:$0xf]
        %v1255 = vld [vmem:[%s303 + $0x1a8] sm:$0xf]
        %v1256 = vld [vmem:[%s303 + $0x1ac] sm:$0xf]
        %v1257 = vld [vmem:[%s303 + $0x1b0] sm:$0xf]
        %v1258 = vld [vmem:[%s303 + $0x1b4] sm:$0xf]
        %v1259 = vld [vmem:[%s303 + $0x1b8] sm:$0xf]
        %v1260 = vld [vmem:[%s303 + $0x1bc] sm:$0xf]
        %v1261 = vld [vmem:[%s303 + $0x1c0] sm:$0xf]
        %v1262 = vld [vmem:[%s303 + $0x1c4] sm:$0xf]
        %v1263 = vld [vmem:[%s303 + $0x1c8] sm:$0xf]
        %v1264 = vld [vmem:[%s303 + $0x1cc] sm:$0xf]
        %v1265 = vld [vmem:[%s303 + $0x1d0] sm:$0xf]
        %v1266 = vld [vmem:[%s303 + $0x1d4] sm:$0xf]
        %v1267 = vld [vmem:[%s303 + $0x1d8] sm:$0xf]
        %v1268 = vld [vmem:[%s303 + $0x1dc] sm:$0xf]
        %v1269 = vld [vmem:[%s303 + $0x1e0] sm:$0xf]
        %v1270 = vld [vmem:[%s303 + $0x1e4] sm:$0xf]
        %v1271 = vld [vmem:[%s303 + $0x1e8] sm:$0xf]
        %v1272 = vld [vmem:[%s303 + $0x1ec] sm:$0xf]
        %v1273 = vld [vmem:[%s303 + $0x1f0] sm:$0xf]
        %v1274 = vld [vmem:[%s303 + $0x1f4] sm:$0xf]
        %v1275 = vld [vmem:[%s303 + $0x1f8] sm:$0xf]
        %v1276 = vld [vmem:[%s303 + $0x1fc] sm:$0xf]
        %v1277 = vld [vmem:[%s303 + $0x200] sm:$0xf]
        %v1278 = vld [vmem:[%s303 + $0x204] sm:$0xf]
        %v1279 = vld [vmem:[%s303 + $0x208] sm:$0xf]
        %v1280 = vld [vmem:[%s303 + $0x20c] sm:$0xf]
        %v1281 = vld [vmem:[%s303 + $0x210] sm:$0xf]
        %v1282 = vld [vmem:[%s303 + $0x214] sm:$0xf]
        %v1283 = vld [vmem:[%s303 + $0x218] sm:$0xf]
        %v1284 = vld [vmem:[%s303 + $0x21c] sm:$0xf]
        %v1285 = vld [vmem:[%s303 + $0x220] sm:$0xf]
        %v1286 = vld [vmem:[%s303 + $0x224] sm:$0xf]
        %v1287 = vld [vmem:[%s303 + $0x228] sm:$0xf]
        %v1288 = vld [vmem:[%s303 + $0x22c] sm:$0xf]
        %v1289 = vld [vmem:[%s303 + $0x230] sm:$0xf]
        %v1290 = vld [vmem:[%s303 + $0x234] sm:$0xf]
        %v1291 = vld [vmem:[%s303 + $0x238] sm:$0xf]
        %v1292 = vld [vmem:[%s303 + $0x23c] sm:$0xf]
        %v1293 = vld [vmem:[%s306] sm:$0x1]
        %v1295 = vlaneseq
        %v1296 = vshrl.u32 %v1295, 7
        %v1297 = vsub.s32 0, %v1296
        %v1298 = vrot.slane %v1293, %v1297
        %v1444 = vunpack.c.l.b16 %v1149
        %v1445 = vunpack.c.l.b16 %v1150
        %v1446 = vunpack.c.l.b16 %v1151
        %v1447 = vunpack.c.l.b16 %v1152
        %v1448 = vunpack.c.l.b16 %v1153
        %v1449 = vunpack.c.l.b16 %v1154
        %v1450 = vunpack.c.l.b16 %v1155
        %v1451 = vunpack.c.l.b16 %v1156
        %v1452 = vunpack.c.l.b16 %v1157
        %v1453 = vunpack.c.l.b16 %v1158
        %v1454 = vunpack.c.l.b16 %v1159
        %v1455 = vunpack.c.l.b16 %v1160
        %v1456 = vunpack.c.l.b16 %v1161
        %v1457 = vunpack.c.l.b16 %v1162
        %v1458 = vunpack.c.l.b16 %v1163
        %v1459 = vunpack.c.l.b16 %v1164
        %v1460 = vunpack.c.l.b16 %v1165
        %v1461 = vunpack.c.l.b16 %v1166
        %v1462 = vunpack.c.l.b16 %v1167
        %v1463 = vunpack.c.l.b16 %v1168
        %v1464 = vunpack.c.l.b16 %v1169
        %v1465 = vunpack.c.l.b16 %v1170
        %v1466 = vunpack.c.l.b16 %v1171
        %v1467 = vunpack.c.l.b16 %v1172
        %v1468 = vunpack.c.l.b16 %v1173
        %v1469 = vunpack.c.l.b16 %v1174
        %v1470 = vunpack.c.l.b16 %v1175
        %v1471 = vunpack.c.l.b16 %v1176
        %v1472 = vunpack.c.l.b16 %v1177
        %v1473 = vunpack.c.l.b16 %v1178
        %v1474 = vunpack.c.l.b16 %v1179
        %v1475 = vunpack.c.l.b16 %v1180
        %v1476 = vunpack.c.l.b16 %v1181
        %v1477 = vunpack.c.l.b16 %v1182
        %v1478 = vunpack.c.l.b16 %v1183
        %v1479 = vunpack.c.l.b16 %v1184
        %v1480 = vunpack.c.l.b16 %v1185
        %v1481 = vunpack.c.l.b16 %v1186
        %v1482 = vunpack.c.l.b16 %v1187
        %v1483 = vunpack.c.l.b16 %v1188
        %v1484 = vunpack.c.l.b16 %v1189
        %v1485 = vunpack.c.l.b16 %v1190
        %v1486 = vunpack.c.l.b16 %v1191
        %v1487 = vunpack.c.l.b16 %v1192
        %v1488 = vunpack.c.l.b16 %v1193
        %v1489 = vunpack.c.l.b16 %v1194
        %v1490 = vunpack.c.l.b16 %v1195
        %v1491 = vunpack.c.l.b16 %v1196
        %v1492 = vunpack.c.l.b16 %v1197
        %v1493 = vunpack.c.l.b16 %v1198
        %v1494 = vunpack.c.l.b16 %v1199
        %v1495 = vunpack.c.l.b16 %v1200
        %v1496 = vunpack.c.l.b16 %v1201
        %v1497 = vunpack.c.l.b16 %v1202
        %v1498 = vunpack.c.l.b16 %v1203
        %v1499 = vunpack.c.l.b16 %v1204
        %v1500 = vunpack.c.l.b16 %v1205
        %v1501 = vunpack.c.l.b16 %v1206
        %v1502 = vunpack.c.l.b16 %v1207
        %v1503 = vunpack.c.l.b16 %v1208
        %v1504 = vunpack.c.l.b16 %v1209
        %v1505 = vunpack.c.l.b16 %v1210
        %v1506 = vunpack.c.l.b16 %v1211
        %v1507 = vunpack.c.l.b16 %v1212
        %v1508 = vunpack.c.l.b16 %v1213
        %v1509 = vunpack.c.l.b16 %v1214
        %v1510 = vunpack.c.l.b16 %v1215
        %v1511 = vunpack.c.l.b16 %v1216
        %v1512 = vunpack.c.l.b16 %v1217
        %v1513 = vunpack.c.l.b16 %v1218
        %v1514 = vunpack.c.l.b16 %v1219
        %v1515 = vunpack.c.l.b16 %v1220
        %v1516 = vunpack.c.l.b16 %v1221
        %v1517 = vunpack.c.l.b16 %v1222
        %v1518 = vunpack.c.l.b16 %v1223
        %v1519 = vunpack.c.l.b16 %v1224
        %v1520 = vunpack.c.l.b16 %v1225
        %v1521 = vunpack.c.l.b16 %v1226
        %v1522 = vunpack.c.l.b16 %v1227
        %v1523 = vunpack.c.l.b16 %v1228
        %v1524 = vunpack.c.l.b16 %v1229
        %v1525 = vunpack.c.l.b16 %v1230
        %v1526 = vunpack.c.l.b16 %v1231
        %v1527 = vunpack.c.l.b16 %v1232
        %v1528 = vunpack.c.l.b16 %v1233
        %v1529 = vunpack.c.l.b16 %v1234
        %v1530 = vunpack.c.l.b16 %v1235
        %v1531 = vunpack.c.l.b16 %v1236
        %v1532 = vunpack.c.l.b16 %v1237
        %v1533 = vunpack.c.l.b16 %v1238
        %v1534 = vunpack.c.l.b16 %v1239
        %v1535 = vunpack.c.l.b16 %v1240
        %v1536 = vunpack.c.l.b16 %v1241
        %v1537 = vunpack.c.l.b16 %v1242
        %v1538 = vunpack.c.l.b16 %v1243
        %v1539 = vunpack.c.l.b16 %v1244
        %v1540 = vunpack.c.l.b16 %v1245
        %v1541 = vunpack.c.l.b16 %v1246
        %v1542 = vunpack.c.l.b16 %v1247
        %v1543 = vunpack.c.l.b16 %v1248
        %v1544 = vunpack.c.l.b16 %v1249
        %v1545 = vunpack.c.l.b16 %v1250
        %v1546 = vunpack.c.l.b16 %v1251
        %v1547 = vunpack.c.l.b16 %v1252
        %v1548 = vunpack.c.l.b16 %v1253
        %v1549 = vunpack.c.l.b16 %v1254
        %v1550 = vunpack.c.l.b16 %v1255
        %v1551 = vunpack.c.l.b16 %v1256
        %v1552 = vunpack.c.l.b16 %v1257
        %v1553 = vunpack.c.l.b16 %v1258
        %v1554 = vunpack.c.l.b16 %v1259
        %v1555 = vunpack.c.l.b16 %v1260
        %v1556 = vunpack.c.l.b16 %v1261
        %v1557 = vunpack.c.l.b16 %v1262
        %v1558 = vunpack.c.l.b16 %v1263
        %v1559 = vunpack.c.l.b16 %v1264
        %v1560 = vunpack.c.l.b16 %v1265
        %v1561 = vunpack.c.l.b16 %v1266
        %v1562 = vunpack.c.l.b16 %v1267
        %v1563 = vunpack.c.l.b16 %v1268
        %v1564 = vunpack.c.l.b16 %v1269
        %v1565 = vunpack.c.l.b16 %v1270
        %v1566 = vunpack.c.l.b16 %v1271
        %v1567 = vunpack.c.l.b16 %v1272
        %v1568 = vunpack.c.l.b16 %v1273
        %v1569 = vunpack.c.l.b16 %v1274
        %v1570 = vunpack.c.l.b16 %v1275
        %v1571 = vunpack.c.l.b16 %v1276
        %v1572 = vunpack.c.l.b16 %v1277
        %v1573 = vunpack.c.l.b16 %v1278
        %v1574 = vunpack.c.l.b16 %v1279
        %v1575 = vunpack.c.l.b16 %v1280
        %v1576 = vunpack.c.l.b16 %v1281
        %v1577 = vunpack.c.l.b16 %v1282
        %v1578 = vunpack.c.l.b16 %v1283
        %v1579 = vunpack.c.l.b16 %v1284
        %v1580 = vunpack.c.l.b16 %v1285
        %v1581 = vunpack.c.l.b16 %v1286
        %v1582 = vunpack.c.l.b16 %v1287
        %v1583 = vunpack.c.l.b16 %v1288
        %v1584 = vunpack.c.l.b16 %v1289
        %v1585 = vunpack.c.l.b16 %v1290
        %v1586 = vunpack.c.l.b16 %v1291
        %v1587 = vunpack.c.l.b16 %v1292
        %v1588 = vpack.c.b16 %v1445, %v1444
        %v1589 = vpack.c.b16 %v1447, %v1446
        %v1590 = vpack.c.b16 %v1449, %v1448
        %v1591 = vpack.c.b16 %v1451, %v1450
        %v1592 = vpack.c.b16 %v1453, %v1452
        %v1593 = vpack.c.b16 %v1455, %v1454
        %v1594 = vpack.c.b16 %v1457, %v1456
        %v1595 = vpack.c.b16 %v1459, %v1458
        %v1596 = vpack.c.b16 %v1461, %v1460
        %v1597 = vpack.c.b16 %v1463, %v1462
        %v1598 = vpack.c.b16 %v1465, %v1464
        %v1599 = vpack.c.b16 %v1467, %v1466
        %v1600 = vpack.c.b16 %v1469, %v1468
        %v1601 = vpack.c.b16 %v1471, %v1470
        %v1602 = vpack.c.b16 %v1473, %v1472
        %v1603 = vpack.c.b16 %v1475, %v1474
        %v1604 = vpack.c.b16 %v1477, %v1476
        %v1605 = vpack.c.b16 %v1479, %v1478
        %v1606 = vpack.c.b16 %v1481, %v1480
        %v1607 = vpack.c.b16 %v1483, %v1482
        %v1608 = vpack.c.b16 %v1485, %v1484
        %v1609 = vpack.c.b16 %v1487, %v1486
        %v1610 = vpack.c.b16 %v1489, %v1488
        %v1611 = vpack.c.b16 %v1491, %v1490
        %v1612 = vpack.c.b16 %v1493, %v1492
        %v1613 = vpack.c.b16 %v1495, %v1494
        %v1614 = vpack.c.b16 %v1497, %v1496
        %v1615 = vpack.c.b16 %v1499, %v1498
        %v1616 = vpack.c.b16 %v1501, %v1500
        %v1617 = vpack.c.b16 %v1503, %v1502
        %v1618 = vpack.c.b16 %v1505, %v1504
        %v1619 = vpack.c.b16 %v1507, %v1506
        %v1620 = vpack.c.b16 %v1509, %v1508
        %v1621 = vpack.c.b16 %v1511, %v1510
        %v1622 = vpack.c.b16 %v1513, %v1512
        %v1623 = vpack.c.b16 %v1515, %v1514
        %v1624 = vpack.c.b16 %v1517, %v1516
        %v1625 = vpack.c.b16 %v1519, %v1518
        %v1626 = vpack.c.b16 %v1521, %v1520
        %v1627 = vpack.c.b16 %v1523, %v1522
        %v1628 = vpack.c.b16 %v1525, %v1524
        %v1629 = vpack.c.b16 %v1527, %v1526
        %v1630 = vpack.c.b16 %v1529, %v1528
        %v1631 = vpack.c.b16 %v1531, %v1530
        %v1632 = vpack.c.b16 %v1533, %v1532
        %v1633 = vpack.c.b16 %v1535, %v1534
        %v1634 = vpack.c.b16 %v1537, %v1536
        %v1635 = vpack.c.b16 %v1539, %v1538
        %v1636 = vpack.c.b16 %v1541, %v1540
        %v1637 = vpack.c.b16 %v1543, %v1542
        %v1638 = vpack.c.b16 %v1545, %v1544
        %v1639 = vpack.c.b16 %v1547, %v1546
        %v1640 = vpack.c.b16 %v1549, %v1548
        %v1641 = vpack.c.b16 %v1551, %v1550
        %v1642 = vpack.c.b16 %v1553, %v1552
        %v1643 = vpack.c.b16 %v1555, %v1554
        %v1644 = vpack.c.b16 %v1557, %v1556
        %v1645 = vpack.c.b16 %v1559, %v1558
        %v1646 = vpack.c.b16 %v1561, %v1560
        %v1647 = vpack.c.b16 %v1563, %v1562
        %v1648 = vpack.c.b16 %v1565, %v1564
        %v1649 = vpack.c.b16 %v1567, %v1566
        %v1650 = vpack.c.b16 %v1569, %v1568
        %v1651 = vpack.c.b16 %v1571, %v1570
        %v1652 = vpack.c.b16 %v1573, %v1572
        %v1653 = vpack.c.b16 %v1575, %v1574
        %v1654 = vpack.c.b16 %v1577, %v1576
        %v1655 = vpack.c.b16 %v1579, %v1578
        %v1656 = vpack.c.b16 %v1581, %v1580
        %v1657 = vpack.c.b16 %v1583, %v1582
        %v1658 = vpack.c.b16 %v1585, %v1584
        %v1659 = vpack.c.b16 %v1587, %v1586
        %1732 = vmatprep.subr.bf16.mxu0 0
        %1733 = vmatpush1.bf16.msra.mxu0 %v1588
        %1734 = vmatprep.subr.bf16.mxu0 0
        %1735 = vmatpush1.bf16.msra.mxu0 %v1589
        %1736 = vmatprep.subr.bf16.mxu0 0
        %1737 = vmatpush1.bf16.msra.mxu0 %v1590
        %1738 = vmatprep.subr.bf16.mxu0 0
        %1739 = vmatpush1.bf16.msra.mxu0 %v1591
        %1740 = vmatprep.subr.bf16.mxu0 0
        %1741 = vmatpush1.bf16.msra.mxu0 %v1592
        %1742 = vmatprep.subr.bf16.mxu0 0
        %1743 = vmatpush1.bf16.msra.mxu0 %v1593
        %1744 = vmatprep.subr.bf16.mxu0 0
        %1745 = vmatpush1.bf16.msra.mxu0 %v1594
        %1746 = vmatprep.subr.bf16.mxu0 0
        %1747 = vmatpush1.bf16.msra.mxu0 %v1595
        %1748 = vmatprep.subr.bf16.mxu0 0
        %1749 = vmatpush1.bf16.msra.mxu0 %v1596
        %1750 = vmatprep.subr.bf16.mxu0 0
        %1751 = vmatpush1.bf16.msra.mxu0 %v1597
        %1752 = vmatprep.subr.bf16.mxu0 0
        %1753 = vmatpush1.bf16.msra.mxu0 %v1598
        %1754 = vmatprep.subr.bf16.mxu0 0
        %1755 = vmatpush1.bf16.msra.mxu0 %v1599
        %1756 = vmatprep.subr.bf16.mxu0 0
        %1757 = vmatpush1.bf16.msra.mxu0 %v1600
        %1758 = vmatprep.subr.bf16.mxu0 0
        %1759 = vmatpush1.bf16.msra.mxu0 %v1601
        %1760 = vmatprep.subr.bf16.mxu0 0
        %1761 = vmatpush1.bf16.msra.mxu0 %v1602
        %1762 = vmatprep.subr.bf16.mxu0 0
        %1763 = vmatpush1.bf16.msra.mxu0 %v1603
        %1764 = vmatprep.mubr.bf16.mxu0 %v1060
        %1765 = vmatmul.mubr.bf16.gmra.mrb[0].mxu0 %v1059
        %v1766 = vpop.f32.mrb[0].mxu0
        %v1767 = vadd.f32 %v1298, %v1766
        %v1768 = vpop.f32.mrb[0].mxu0
        %v1769 = vpop.f32.mrb[0].mxu0
        %v1770 = vadd.f32 %v1298, %v1769
        %v1771 = vpop.f32.mrb[0].mxu0
        %1772 = vmatprep.mubr.bf16.mxu0 %v1069
        %1773 = vmatmul.mubr.bf16.gmra.mrb[0].mxu0 %v1068
        %v1774 = vpop.f32.mrb[0].mxu0
        %v1775 = vadd.f32 %v1298, %v1774
        %v1776 = vpop.f32.mrb[0].mxu0
        %v1777 = vpop.f32.mrb[0].mxu0
        %v1778 = vadd.f32 %v1298, %v1777
        %v1779 = vpop.f32.mrb[0].mxu0
        %1780 = vmatprep.mubr.bf16.mxu0 %v1078
        %1781 = vmatmul.mubr.bf16.gmra.mrb[0].mxu0 %v1077
        %v1782 = vpop.f32.mrb[0].mxu0
        %v1783 = vadd.f32 %v1298, %v1782
        %v1784 = vpop.f32.mrb[0].mxu0
        %v1785 = vpop.f32.mrb[0].mxu0
        %v1786 = vadd.f32 %v1298, %v1785
        %v1787 = vpop.f32.mrb[0].mxu0
        %1788 = vmatprep.mubr.bf16.mxu0 %v1087
        %1789 = vmatmul.mubr.bf16.gmra.mrb[0].mxu0 %v1086
        %v1790 = vpop.f32.mrb[0].mxu0
        %v1791 = vadd.f32 %v1298, %v1790
        %v1792 = vpop.f32.mrb[0].mxu0
        %v1793 = vpop.f32.mrb[0].mxu0
        %v1794 = vadd.f32 %v1298, %v1793
        %v1795 = vpop.f32.mrb[0].mxu0
        %1796 = vmatprep.mubr.bf16.mxu0 %v1096
        %1797 = vmatmul.mubr.bf16.gmra.mrb[0].mxu0 %v1095
        %v1798 = vpop.f32.mrb[0].mxu0
        %v1799 = vadd.f32 %v1298, %v1798
        %v1800 = vpop.f32.mrb[0].mxu0
        %v1801 = vpop.f32.mrb[0].mxu0
        %v1802 = vadd.f32 %v1298, %v1801
        %v1803 = vpop.f32.mrb[0].mxu0
        %1804 = vmatprep.mubr.bf16.mxu0 %v1105
        %1805 = vmatmul.mubr.bf16.gmra.mrb[0].mxu0 %v1104
        %v1806 = vpop.f32.mrb[0].mxu0
        %v1807 = vadd.f32 %v1298, %v1806
        %v1808 = vpop.f32.mrb[0].mxu0
        %v1809 = vpop.f32.mrb[0].mxu0
        %v1810 = vadd.f32 %v1298, %v1809
        %v1811 = vpop.f32.mrb[0].mxu0
        %1812 = vmatprep.mubr.bf16.mxu0 %v1114
        %1813 = vmatmul.mubr.bf16.gmra.mrb[0].mxu0 %v1113
        %v1814 = vpop.f32.mrb[0].mxu0
        %v1815 = vadd.f32 %v1298, %v1814
        %v1816 = vpop.f32.mrb[0].mxu0
        %v1817 = vpop.f32.mrb[0].mxu0
        %v1818 = vadd.f32 %v1298, %v1817
        %v1819 = vpop.f32.mrb[0].mxu0
        %1820 = vmatprep.mubr.bf16.mxu0 %v1123
        %1821 = vmatmul.mubr.bf16.gmra.mrb[0].mxu0 %v1122
        %v1822 = vpop.f32.mrb[0].mxu0
        %v1823 = vadd.f32 %v1298, %v1822
        %v1824 = vpop.f32.mrb[0].mxu0
        %v1825 = vpop.f32.mrb[0].mxu0
        %v1826 = vadd.f32 %v1298, %v1825
        %v1827 = vpop.f32.mrb[0].mxu0
        %1828 = vmatprep.mubr.bf16.mxu0 %v1132
        %1829 = vmatmul.mubr.bf16.gmra.mrb[0].mxu0 %v1131
        %v1830 = vpop.f32.mrb[0].mxu0
        %v1831 = vadd.f32 %v1298, %v1830
        %v1832 = vpop.f32.mrb[0].mxu0
        %v1833 = vpop.f32.mrb[0].mxu0
        %v1834 = vadd.f32 %v1298, %v1833
        %v1835 = vpop.f32.mrb[0].mxu0
        %1836 = vmatprep.mubr.bf16.mxu0 %v1141
        %1837 = vmatmul.mubr.bf16.gmra.mrb[0].mxu0 %v1140
        %v1838 = vpop.f32.mrb[0].mxu0
        %v1839 = vadd.f32 %v1298, %v1838
        %v1840 = vpop.f32.mrb[0].mxu0
        %v1841 = vpop.f32.mrb[0].mxu0
        %v1842 = vadd.f32 %v1298, %v1841
        %v1843 = vpop.f32.mrb[0].mxu0
        %1844 = vdwg.mxu0
        %1845 = vmatprep.subr.bf16.mxu0 0
        %1846 = vmatpush1.bf16.msra.mxu0 %v1604
        %1847 = vmatprep.subr.bf16.mxu0 0
        %1848 = vmatpush1.bf16.msra.mxu0 %v1605
        %1849 = vmatprep.subr.bf16.mxu0 0
        %1850 = vmatpush1.bf16.msra.mxu0 %v1606
        %1851 = vmatprep.subr.bf16.mxu0 0
        %1852 = vmatpush1.bf16.msra.mxu0 %v1607
        %1853 = vmatprep.subr.bf16.mxu0 0
        %1854 = vmatpush1.bf16.msra.mxu0 %v1608
        %1855 = vmatprep.subr.bf16.mxu0 0
        %1856 = vmatpush1.bf16.msra.mxu0 %v1609
        %1857 = vmatprep.subr.bf16.mxu0 0
        %1858 = vmatpush1.bf16.msra.mxu0 %v1610
        %1859 = vmatprep.subr.bf16.mxu0 0
        %1860 = vmatpush1.bf16.msra.mxu0 %v1611
        %1861 = vmatprep.subr.bf16.mxu0 0
        %1862 = vmatpush1.bf16.msra.mxu0 %v1612
        %1863 = vmatprep.subr.bf16.mxu0 0
        %1864 = vmatpush1.bf16.msra.mxu0 %v1613
        %1865 = vmatprep.subr.bf16.mxu0 0
        %1866 = vmatpush1.bf16.msra.mxu0 %v1614
        %1867 = vmatprep.subr.bf16.mxu0 0
        %1868 = vmatpush1.bf16.msra.mxu0 %v1615
        %1869 = vmatprep.subr.bf16.mxu0 0
        %1870 = vmatpush1.bf16.msra.mxu0 %v1616
        %1871 = vmatprep.subr.bf16.mxu0 0
        %1872 = vmatpush1.bf16.msra.mxu0 %v1617
        %1873 = vmatprep.subr.bf16.mxu0 0
        %1874 = vmatpush1.bf16.msra.mxu0 %v1618
        %1875 = vmatprep.subr.bf16.mxu0 0
        %1876 = vmatpush1.bf16.msra.mxu0 %v1619
        %1877 = vmatprep.mubr.bf16.mxu0 %v1062
        %1878 = vmatmul.mubr.bf16.gmra.mrb[0].mxu0 %v1061
        %v1879 = vpop.f32.mrb[0].mxu0
        %v1880 = vadd.f32 %v1767, %v1879
        %v1881 = vpop.f32.mrb[0].mxu0
        %v1882 = vpop.f32.mrb[0].mxu0
        %v1883 = vadd.f32 %v1770, %v1882
        %v1884 = vpop.f32.mrb[0].mxu0
        %1885 = vmatprep.mubr.bf16.mxu0 %v1071
        %1886 = vmatmul.mubr.bf16.gmra.mrb[0].mxu0 %v1070
        %v1887 = vpop.f32.mrb[0].mxu0
        %v1888 = vadd.f32 %v1775, %v1887
        %v1889 = vpop.f32.mrb[0].mxu0
        %v1890 = vpop.f32.mrb[0].mxu0
        %v1891 = vadd.f32 %v1778, %v1890
        %v1892 = vpop.f32.mrb[0].mxu0
        %1893 = vmatprep.mubr.bf16.mxu0 %v1080
        %1894 = vmatmul.mubr.bf16.gmra.mrb[0].mxu0 %v1079
        %v1895 = vpop.f32.mrb[0].mxu0
        %v1896 = vadd.f32 %v1783, %v1895
        %v1897 = vpop.f32.mrb[0].mxu0
        %v1898 = vpop.f32.mrb[0].mxu0
        %v1899 = vadd.f32 %v1786, %v1898
        %v1900 = vpop.f32.mrb[0].mxu0
        %1901 = vmatprep.mubr.bf16.mxu0 %v1089
        %1902 = vmatmul.mubr.bf16.gmra.mrb[0].mxu0 %v1088
        %v1903 = vpop.f32.mrb[0].mxu0
        %v1904 = vadd.f32 %v1791, %v1903
        %v1905 = vpop.f32.mrb[0].mxu0
        %v1906 = vpop.f32.mrb[0].mxu0
        %v1907 = vadd.f32 %v1794, %v1906
        %v1908 = vpop.f32.mrb[0].mxu0
        %1909 = vmatprep.mubr.bf16.mxu0 %v1098
        %1910 = vmatmul.mubr.bf16.gmra.mrb[0].mxu0 %v1097
        %v1911 = vpop.f32.mrb[0].mxu0
        %v1912 = vadd.f32 %v1799, %v1911
        %v1913 = vpop.f32.mrb[0].mxu0
        %v1914 = vpop.f32.mrb[0].mxu0
        %v1915 = vadd.f32 %v1802, %v1914
        %v1916 = vpop.f32.mrb[0].mxu0
        %1917 = vmatprep.mubr.bf16.mxu0 %v1107
        %1918 = vmatmul.mubr.bf16.gmra.mrb[0].mxu0 %v1106
        %v1919 = vpop.f32.mrb[0].mxu0
        %v1920 = vadd.f32 %v1807, %v1919
        %v1921 = vpop.f32.mrb[0].mxu0
        %v1922 = vpop.f32.mrb[0].mxu0
        %v1923 = vadd.f32 %v1810, %v1922
        %v1924 = vpop.f32.mrb[0].mxu0
        %1925 = vmatprep.mubr.bf16.mxu0 %v1116
        %1926 = vmatmul.mubr.bf16.gmra.mrb[0].mxu0 %v1115
        %v1927 = vpop.f32.mrb[0].mxu0
        %v1928 = vadd.f32 %v1815, %v1927
        %v1929 = vpop.f32.mrb[0].mxu0
        %v1930 = vpop.f32.mrb[0].mxu0
        %v1931 = vadd.f32 %v1818, %v1930
        %v1932 = vpop.f32.mrb[0].mxu0
        %1933 = vmatprep.mubr.bf16.mxu0 %v1125
        %1934 = vmatmul.mubr.bf16.gmra.mrb[0].mxu0 %v1124
        %v1935 = vpop.f32.mrb[0].mxu0
        %v1936 = vadd.f32 %v1823, %v1935
        %v1937 = vpop.f32.mrb[0].mxu0
        %v1938 = vpop.f32.mrb[0].mxu0
        %v1939 = vadd.f32 %v1826, %v1938
        %v1940 = vpop.f32.mrb[0].mxu0
        %1941 = vmatprep.mubr.bf16.mxu0 %v1134
        %1942 = vmatmul.mubr.bf16.gmra.mrb[0].mxu0 %v1133
        %v1943 = vpop.f32.mrb[0].mxu0
        %v1944 = vadd.f32 %v1831, %v1943
        %v1945 = vpop.f32.mrb[0].mxu0
        %v1946 = vpop.f32.mrb[0].mxu0
        %v1947 = vadd.f32 %v1834, %v1946
        %v1948 = vpop.f32.mrb[0].mxu0
        %1949 = vmatprep.mubr.bf16.mxu0 %v1143
        %1950 = vmatmul.mubr.bf16.gmra.mrb[0].mxu0 %v1142
        %v1951 = vpop.f32.mrb[0].mxu0
        %v1952 = vadd.f32 %v1839, %v1951
        %v1953 = vpop.f32.mrb[0].mxu0
        %v1954 = vpop.f32.mrb[0].mxu0
        %v1955 = vadd.f32 %v1842, %v1954
        %v1956 = vpop.f32.mrb[0].mxu0
        %1957 = vdwg.mxu0
        %1958 = vmatprep.subr.bf16.mxu0 0
        %1959 = vmatpush1.bf16.msra.mxu0 %v1620
        %1960 = vmatprep.subr.bf16.mxu0 0
        %1961 = vmatpush1.bf16.msra.mxu0 %v1621
        %1962 = vmatprep.subr.bf16.mxu0 0
        %1963 = vmatpush1.bf16.msra.mxu0 %v1622
        %1964 = vmatprep.subr.bf16.mxu0 0
        %1965 = vmatpush1.bf16.msra.mxu0 %v1623
        %1966 = vmatprep.subr.bf16.mxu0 0
        %1967 = vmatpush1.bf16.msra.mxu0 %v1624
        %1968 = vmatprep.subr.bf16.mxu0 0
        %1969 = vmatpush1.bf16.msra.mxu0 %v1625
        %1970 = vmatprep.subr.bf16.mxu0 0
        %1971 = vmatpush1.bf16.msra.mxu0 %v1626
        %1972 = vmatprep.subr.bf16.mxu0 0
        %1973 = vmatpush1.bf16.msra.mxu0 %v1627
        %1974 = vmatprep.subr.bf16.mxu0 0
        %1975 = vmatpush1.bf16.msra.mxu0 %v1628
        %1976 = vmatprep.subr.bf16.mxu0 0
        %1977 = vmatpush1.bf16.msra.mxu0 %v1629
        %1978 = vmatprep.subr.bf16.mxu0 0
        %1979 = vmatpush1.bf16.msra.mxu0 %v1630
        %1980 = vmatprep.subr.bf16.mxu0 0
        %1981 = vmatpush1.bf16.msra.mxu0 %v1631
        %1982 = vmatprep.subr.bf16.mxu0 0
        %1983 = vmatpush1.bf16.msra.mxu0 %v1632
        %1984 = vmatprep.subr.bf16.mxu0 0
        %1985 = vmatpush1.bf16.msra.mxu0 %v1633
        %1986 = vmatprep.subr.bf16.mxu0 0
        %1987 = vmatpush1.bf16.msra.mxu0 %v1634
        %1988 = vmatprep.subr.bf16.mxu0 0
        %1989 = vmatpush1.bf16.msra.mxu0 %v1635
        %1990 = vmatprep.mubr.bf16.mxu0 %v1064
        %1991 = vmatmul.mubr.bf16.gmra.mrb[0].mxu0 %v1063
        %v1992 = vpop.f32.mrb[0].mxu0
        %v1993 = vadd.f32 %v1880, %v1992
        %v1994 = vpop.f32.mrb[0].mxu0
        %v1995 = vpop.f32.mrb[0].mxu0
        %v1996 = vadd.f32 %v1883, %v1995
        %v1997 = vpop.f32.mrb[0].mxu0
        %1998 = vmatprep.mubr.bf16.mxu0 %v1073
        %1999 = vmatmul.mubr.bf16.gmra.mrb[0].mxu0 %v1072
        %v2000 = vpop.f32.mrb[0].mxu0
        %v2001 = vadd.f32 %v1888, %v2000
        %v2002 = vpop.f32.mrb[0].mxu0
        %v2003 = vpop.f32.mrb[0].mxu0
        %v2004 = vadd.f32 %v1891, %v2003
        %v2005 = vpop.f32.mrb[0].mxu0
        %2006 = vmatprep.mubr.bf16.mxu0 %v1082
        %2007 = vmatmul.mubr.bf16.gmra.mrb[0].mxu0 %v1081
        %v2008 = vpop.f32.mrb[0].mxu0
        %v2009 = vadd.f32 %v1896, %v2008
        %v2010 = vpop.f32.mrb[0].mxu0
        %v2011 = vpop.f32.mrb[0].mxu0
        %v2012 = vadd.f32 %v1899, %v2011
        %v2013 = vpop.f32.mrb[0].mxu0
        %2014 = vmatprep.mubr.bf16.mxu0 %v1091
        %2015 = vmatmul.mubr.bf16.gmra.mrb[0].mxu0 %v1090
        %v2016 = vpop.f32.mrb[0].mxu0
        %v2017 = vadd.f32 %v1904, %v2016
        %v2018 = vpop.f32.mrb[0].mxu0
        %v2019 = vpop.f32.mrb[0].mxu0
        %v2020 = vadd.f32 %v1907, %v2019
        %v2021 = vpop.f32.mrb[0].mxu0
        %2022 = vmatprep.mubr.bf16.mxu0 %v1100
        %2023 = vmatmul.mubr.bf16.gmra.mrb[0].mxu0 %v1099
        %v2024 = vpop.f32.mrb[0].mxu0
        %v2025 = vadd.f32 %v1912, %v2024
        %v2026 = vpop.f32.mrb[0].mxu0
        %v2027 = vpop.f32.mrb[0].mxu0
        %v2028 = vadd.f32 %v1915, %v2027
        %v2029 = vpop.f32.mrb[0].mxu0
        %2030 = vmatprep.mubr.bf16.mxu0 %v1109
        %2031 = vmatmul.mubr.bf16.gmra.mrb[0].mxu0 %v1108
        %v2032 = vpop.f32.mrb[0].mxu0
        %v2033 = vadd.f32 %v1920, %v2032
        %v2034 = vpop.f32.mrb[0].mxu0
        %v2035 = vpop.f32.mrb[0].mxu0
        %v2036 = vadd.f32 %v1923, %v2035
        %v2037 = vpop.f32.mrb[0].mxu0
        %2038 = vmatprep.mubr.bf16.mxu0 %v1118
        %2039 = vmatmul.mubr.bf16.gmra.mrb[0].mxu0 %v1117
        %v2040 = vpop.f32.mrb[0].mxu0
        %v2041 = vadd.f32 %v1928, %v2040
        %v2042 = vpop.f32.mrb[0].mxu0
        %v2043 = vpop.f32.mrb[0].mxu0
        %v2044 = vadd.f32 %v1931, %v2043
        %v2045 = vpop.f32.mrb[0].mxu0
        %2046 = vmatprep.mubr.bf16.mxu0 %v1127
        %2047 = vmatmul.mubr.bf16.gmra.mrb[0].mxu0 %v1126
        %v2048 = vpop.f32.mrb[0].mxu0
        %v2049 = vadd.f32 %v1936, %v2048
        %v2050 = vpop.f32.mrb[0].mxu0
        %v2051 = vpop.f32.mrb[0].mxu0
        %v2052 = vadd.f32 %v1939, %v2051
        %v2053 = vpop.f32.mrb[0].mxu0
        %2054 = vmatprep.mubr.bf16.mxu0 %v1136
        %2055 = vmatmul.mubr.bf16.gmra.mrb[0].mxu0 %v1135
        %v2056 = vpop.f32.mrb[0].mxu0
        %v2057 = vadd.f32 %v1944, %v2056
        %v2058 = vpop.f32.mrb[0].mxu0
        %v2059 = vpop.f32.mrb[0].mxu0
        %v2060 = vadd.f32 %v1947, %v2059
        %v2061 = vpop.f32.mrb[0].mxu0
        %2062 = vmatprep.mubr.bf16.mxu0 %v1145
        %2063 = vmatmul.mubr.bf16.gmra.mrb[0].mxu0 %v1144
        %v2064 = vpop.f32.mrb[0].mxu0
        %v2065 = vadd.f32 %v1952, %v2064
        %v2066 = vpop.f32.mrb[0].mxu0
        %v2067 = vpop.f32.mrb[0].mxu0
        %v2068 = vadd.f32 %v1955, %v2067
        %v2069 = vpop.f32.mrb[0].mxu0
        %2070 = vdwg.mxu0
        %2071 = vmatprep.subr.bf16.mxu0 0
        %2072 = vmatpush1.bf16.msra.mxu0 %v1636
        %2073 = vmatprep.subr.bf16.mxu0 0
        %2074 = vmatpush1.bf16.msra.mxu0 %v1637
        %2075 = vmatprep.subr.bf16.mxu0 0
        %2076 = vmatpush1.bf16.msra.mxu0 %v1638
        %2077 = vmatprep.subr.bf16.mxu0 0
        %2078 = vmatpush1.bf16.msra.mxu0 %v1639
        %2079 = vmatprep.subr.bf16.mxu0 0
        %2080 = vmatpush1.bf16.msra.mxu0 %v1640
        %2081 = vmatprep.subr.bf16.mxu0 0
        %2082 = vmatpush1.bf16.msra.mxu0 %v1641
        %2083 = vmatprep.subr.bf16.mxu0 0
        %2084 = vmatpush1.bf16.msra.mxu0 %v1642
        %2085 = vmatprep.subr.bf16.mxu0 0
        %2086 = vmatpush1.bf16.msra.mxu0 %v1643
        %2087 = vmatprep.subr.bf16.mxu0 0
        %2088 = vmatpush1.bf16.msra.mxu0 %v1644
        %2089 = vmatprep.subr.bf16.mxu0 0
        %2090 = vmatpush1.bf16.msra.mxu0 %v1645
        %2091 = vmatprep.subr.bf16.mxu0 0
        %2092 = vmatpush1.bf16.msra.mxu0 %v1646
        %2093 = vmatprep.subr.bf16.mxu0 0
        %2094 = vmatpush1.bf16.msra.mxu0 %v1647
        %2095 = vmatprep.subr.bf16.mxu0 0
        %2096 = vmatpush1.bf16.msra.mxu0 %v1648
        %2097 = vmatprep.subr.bf16.mxu0 0
        %2098 = vmatpush1.bf16.msra.mxu0 %v1649
        %2099 = vmatprep.subr.bf16.mxu0 0
        %2100 = vmatpush1.bf16.msra.mxu0 %v1650
        %2101 = vmatprep.subr.bf16.mxu0 0
        %2102 = vmatpush1.bf16.msra.mxu0 %v1651
        %2103 = vmatprep.mubr.bf16.mxu0 %v1066
        %2104 = vmatmul.mubr.bf16.gmra.mrb[0].mxu0 %v1065
        %v2105 = vpop.f32.mrb[0].mxu0
        %v2106 = vadd.f32 %v1993, %v2105
        %v2107 = vpop.f32.mrb[0].mxu0
        %v2108 = vpop.f32.mrb[0].mxu0
        %v2109 = vadd.f32 %v1996, %v2108
        %v2110 = vpop.f32.mrb[0].mxu0
        %2111 = vmatprep.mubr.bf16.mxu0 %v1075
        %2112 = vmatmul.mubr.bf16.gmra.mrb[0].mxu0 %v1074
        %v2113 = vpop.f32.mrb[0].mxu0
        %v2114 = vadd.f32 %v2001, %v2113
        %v2115 = vpop.f32.mrb[0].mxu0
        %v2116 = vpop.f32.mrb[0].mxu0
        %v2117 = vadd.f32 %v2004, %v2116
        %v2118 = vpop.f32.mrb[0].mxu0
        %2119 = vmatprep.mubr.bf16.mxu0 %v1084
        %2120 = vmatmul.mubr.bf16.gmra.mrb[0].mxu0 %v1083
        %v2121 = vpop.f32.mrb[0].mxu0
        %v2122 = vadd.f32 %v2009, %v2121
        %v2123 = vpop.f32.mrb[0].mxu0
        %v2124 = vpop.f32.mrb[0].mxu0
        %v2125 = vadd.f32 %v2012, %v2124
        %v2126 = vpop.f32.mrb[0].mxu0
        %2127 = vmatprep.mubr.bf16.mxu0 %v1093
        %2128 = vmatmul.mubr.bf16.gmra.mrb[0].mxu0 %v1092
        %v2129 = vpop.f32.mrb[0].mxu0
        %v2130 = vadd.f32 %v2017, %v2129
        %v2131 = vpop.f32.mrb[0].mxu0
        %v2132 = vpop.f32.mrb[0].mxu0
        %v2133 = vadd.f32 %v2020, %v2132
        %v2134 = vpop.f32.mrb[0].mxu0
        %2135 = vmatprep.mubr.bf16.mxu0 %v1102
        %2136 = vmatmul.mubr.bf16.gmra.mrb[0].mxu0 %v1101
        %v2137 = vpop.f32.mrb[0].mxu0
        %v2138 = vadd.f32 %v2025, %v2137
        %v2139 = vpop.f32.mrb[0].mxu0
        %v2140 = vpop.f32.mrb[0].mxu0
        %v2141 = vadd.f32 %v2028, %v2140
        %v2142 = vpop.f32.mrb[0].mxu0
        %2143 = vmatprep.mubr.bf16.mxu0 %v1111
        %2144 = vmatmul.mubr.bf16.gmra.mrb[0].mxu0 %v1110
        %v2145 = vpop.f32.mrb[0].mxu0
        %v2146 = vadd.f32 %v2033, %v2145
        %v2147 = vpop.f32.mrb[0].mxu0
        %v2148 = vpop.f32.mrb[0].mxu0
        %v2149 = vadd.f32 %v2036, %v2148
        %v2150 = vpop.f32.mrb[0].mxu0
        %2151 = vmatprep.mubr.bf16.mxu0 %v1120
        %2152 = vmatmul.mubr.bf16.gmra.mrb[0].mxu0 %v1119
        %v2153 = vpop.f32.mrb[0].mxu0
        %v2154 = vadd.f32 %v2041, %v2153
        %v2155 = vpop.f32.mrb[0].mxu0
        %v2156 = vpop.f32.mrb[0].mxu0
        %v2157 = vadd.f32 %v2044, %v2156
        %v2158 = vpop.f32.mrb[0].mxu0
        %2159 = vmatprep.mubr.bf16.mxu0 %v1129
        %2160 = vmatmul.mubr.bf16.gmra.mrb[0].mxu0 %v1128
        %v2161 = vpop.f32.mrb[0].mxu0
        %v2162 = vadd.f32 %v2049, %v2161
        %v2163 = vpop.f32.mrb[0].mxu0
        %v2164 = vpop.f32.mrb[0].mxu0
        %v2165 = vadd.f32 %v2052, %v2164
        %v2166 = vpop.f32.mrb[0].mxu0
        %2167 = vmatprep.mubr.bf16.mxu0 %v1138
        %2168 = vmatmul.mubr.bf16.gmra.mrb[0].mxu0 %v1137
        %v2169 = vpop.f32.mrb[0].mxu0
        %v2170 = vadd.f32 %v2057, %v2169
        %v2171 = vpop.f32.mrb[0].mxu0
        %v2172 = vpop.f32.mrb[0].mxu0
        %v2173 = vadd.f32 %v2060, %v2172
        %v2174 = vpop.f32.mrb[0].mxu0
        %2175 = vmatprep.mubr.bf16.mxu0 %v1147
        %2176 = vmatmul.mubr.bf16.gmra.mrb[0].mxu0 %v1146
        %v2177 = vpop.f32.mrb[0].mxu0
        %v2178 = vadd.f32 %v2065, %v2177
        %v2179 = vpop.f32.mrb[0].mxu0
        %v2180 = vpop.f32.mrb[0].mxu0
        %v2181 = vadd.f32 %v2068, %v2180
        %v2182 = vpop.f32.mrb[0].mxu0
        %2183 = vdwg.mxu0
        %2184 = vmatprep.subr.bf16.mxu0 0
        %2185 = vmatpush1.bf16.msra.mxu0 %v1652
        %2186 = vmatprep.subr.bf16.mxu0 0
        %2187 = vmatpush1.bf16.msra.mxu0 %v1653
        %2188 = vmatprep.subr.bf16.mxu0 0
        %2189 = vmatpush1.bf16.msra.mxu0 %v1654
        %2190 = vmatprep.subr.bf16.mxu0 0
        %2191 = vmatpush1.bf16.msra.mxu0 %v1655
        %2192 = vmatprep.subr.bf16.mxu0 0
        %2193 = vmatpush1.bf16.msra.mxu0 %v1656
        %2194 = vmatprep.subr.bf16.mxu0 0
        %2195 = vmatpush1.bf16.msra.mxu0 %v1657
        %2196 = vmatprep.subr.bf16.mxu0 0
        %2197 = vmatpush1.bf16.msra.mxu0 %v1658
        %2198 = vmatprep.subr.bf16.mxu0 0
        %2199 = vmatpush1.bf16.msra.mxu0 %v1659
        %2200 = vmatprep.subr.bf16.mxu0 0
        %2201 = vmatpush1.bf16.msra.mxu0 0
        %2202 = vmatprep.subr.bf16.mxu0 0
        %2203 = vmatpush1.bf16.msra.mxu0 0
        %2204 = vmatprep.subr.bf16.mxu0 0
        %2205 = vmatpush1.bf16.msra.mxu0 0
        %2206 = vmatprep.subr.bf16.mxu0 0
        %2207 = vmatpush1.bf16.msra.mxu0 0
        %2208 = vmatprep.subr.bf16.mxu0 0
        %2209 = vmatpush1.bf16.msra.mxu0 0
        %2210 = vmatprep.subr.bf16.mxu0 0
        %2211 = vmatpush1.bf16.msra.mxu0 0
        %2212 = vmatprep.subr.bf16.mxu0 0
        %2213 = vmatpush1.bf16.msra.mxu0 0
        %2214 = vmatprep.subr.bf16.mxu0 0
        %2215 = vmatpush1.bf16.msra.mxu0 0
        %2216 = vmatprep.mubr.bf16.mxu0 0
        %2217 = vmatmul.mubr.bf16.gmra.mrb[0].mxu0 %v1067
        %v2218 = vpop.f32.mrb[0].mxu0
        %v2219 = vadd.f32 %v2106, %v2218
        %v2220 = vpop.f32.mrb[0].mxu0
        %v2221 = vpop.f32.mrb[0].mxu0
        %v2222 = vadd.f32 %v2109, %v2221
        %v2223 = vpop.f32.mrb[0].mxu0
        %2224 = vmatprep.mubr.bf16.mxu0 0
        %2225 = vmatmul.mubr.bf16.gmra.mrb[0].mxu0 %v1076
        %v2226 = vpop.f32.mrb[0].mxu0
        %v2227 = vadd.f32 %v2114, %v2226
        %v2228 = vpop.f32.mrb[0].mxu0
        %v2229 = vpop.f32.mrb[0].mxu0
        %v2230 = vadd.f32 %v2117, %v2229
        %v2231 = vpop.f32.mrb[0].mxu0
        %2232 = vmatprep.mubr.bf16.mxu0 0
        %2233 = vmatmul.mubr.bf16.gmra.mrb[0].mxu0 %v1085
        %v2234 = vpop.f32.mrb[0].mxu0
        %v2235 = vadd.f32 %v2122, %v2234
        %v2236 = vpop.f32.mrb[0].mxu0
        %v2237 = vpop.f32.mrb[0].mxu0
        %v2238 = vadd.f32 %v2125, %v2237
        %v2239 = vpop.f32.mrb[0].mxu0
        %2240 = vmatprep.mubr.bf16.mxu0 0
        %2241 = vmatmul.mubr.bf16.gmra.mrb[0].mxu0 %v1094
        %v2242 = vpop.f32.mrb[0].mxu0
        %v2243 = vadd.f32 %v2130, %v2242
        %v2244 = vpop.f32.mrb[0].mxu0
        %v2245 = vpop.f32.mrb[0].mxu0
        %v2246 = vadd.f32 %v2133, %v2245
        %v2247 = vpop.f32.mrb[0].mxu0
        %2248 = vmatprep.mubr.bf16.mxu0 0
        %2249 = vmatmul.mubr.bf16.gmra.mrb[0].mxu0 %v1103
        %v2250 = vpop.f32.mrb[0].mxu0
        %v2251 = vadd.f32 %v2138, %v2250
        %v2252 = vpop.f32.mrb[0].mxu0
        %v2253 = vpop.f32.mrb[0].mxu0
        %v2254 = vadd.f32 %v2141, %v2253
        %v2255 = vpop.f32.mrb[0].mxu0
        %2256 = vmatprep.mubr.bf16.mxu0 0
        %2257 = vmatmul.mubr.bf16.gmra.mrb[0].mxu0 %v1112
        %v2258 = vpop.f32.mrb[0].mxu0
        %v2259 = vadd.f32 %v2146, %v2258
        %v2260 = vpop.f32.mrb[0].mxu0
        %v2261 = vpop.f32.mrb[0].mxu0
        %v2262 = vadd.f32 %v2149, %v2261
        %v2263 = vpop.f32.mrb[0].mxu0
        %2264 = vmatprep.mubr.bf16.mxu0 0
        %2265 = vmatmul.mubr.bf16.gmra.mrb[0].mxu0 %v1121
        %v2266 = vpop.f32.mrb[0].mxu0
        %v2267 = vadd.f32 %v2154, %v2266
        %v2268 = vpop.f32.mrb[0].mxu0
        %v2269 = vpop.f32.mrb[0].mxu0
        %v2270 = vadd.f32 %v2157, %v2269
        %v2271 = vpop.f32.mrb[0].mxu0
        %2272 = vmatprep.mubr.bf16.mxu0 0
        %2273 = vmatmul.mubr.bf16.gmra.mrb[0].mxu0 %v1130
        %v2274 = vpop.f32.mrb[0].mxu0
        %v2275 = vadd.f32 %v2162, %v2274
        %v2276 = vpop.f32.mrb[0].mxu0
        %v2277 = vpop.f32.mrb[0].mxu0
        %v2278 = vadd.f32 %v2165, %v2277
        %v2279 = vpop.f32.mrb[0].mxu0
        %2280 = vmatprep.mubr.bf16.mxu0 0
        %2281 = vmatmul.mubr.bf16.gmra.mrb[0].mxu0 %v1139
        %v2282 = vpop.f32.mrb[0].mxu0
        %v2283 = vadd.f32 %v2170, %v2282
        %v2284 = vpop.f32.mrb[0].mxu0
        %v2285 = vpop.f32.mrb[0].mxu0
        %v2286 = vadd.f32 %v2173, %v2285
        %v2287 = vpop.f32.mrb[0].mxu0
        %2288 = vmatprep.mubr.bf16.mxu0 0
        %2289 = vmatmul.mubr.bf16.gmra.mrb[0].mxu0 %v1148
        %v2290 = vpop.f32.mrb[0].mxu0
        %v2291 = vadd.f32 %v2178, %v2290
        %v2292 = vpop.f32.mrb[0].mxu0
        %v2293 = vpop.f32.mrb[0].mxu0
        %v2294 = vadd.f32 %v2181, %v2293
        %v2295 = vpop.f32.mrb[0].mxu0
        %2296 = vdwg.mxu0
        %v2297 = vmax.f32 %v2219, 0.0
        %v2298 = vmax.f32 %v2222, 0.0
        %v2299 = vmax.f32 %v2227, 0.0
        %v2300 = vmax.f32 %v2230, 0.0
        %v2301 = vmax.f32 %v2235, 0.0
        %v2302 = vmax.f32 %v2238, 0.0
        %v2303 = vmax.f32 %v2243, 0.0
        %v2304 = vmax.f32 %v2246, 0.0
        %v2305 = vmax.f32 %v2251, 0.0
        %v2306 = vmax.f32 %v2254, 0.0
        %v2307 = vmax.f32 %v2259, 0.0
        %v2308 = vmax.f32 %v2262, 0.0
        %v2309 = vmax.f32 %v2267, 0.0
        %v2310 = vmax.f32 %v2270, 0.0
        %v2311 = vmax.f32 %v2275, 0.0
        %v2312 = vmax.f32 %v2278, 0.0
        %v2313 = vmax.f32 %v2283, 0.0
        %v2314 = vmax.f32 %v2286, 0.0
        %v2315 = vmax.f32 %v2291, 0.0
        %v2316 = vmax.f32 %v2294, 0.0
        %v2317 = vlaneseq
        %v2318 = vshrl.u32 %v2317, 7
        %v2319 = vadd.s32 %v2318, 8
        %v2320 = vadd.s32 %v2318, 16
        %v2321 = vadd.s32 %v2318, 24
        %v2322 = vadd.s32 %v2318, 32
        %v2323 = vadd.s32 %v2318, 40
        %v2324 = vadd.s32 %v2318, 48
        %v2325 = vadd.s32 %v2318, 56
        %v2326 = vadd.s32 %v2318, 64
        %v2327 = vadd.s32 %v2318, 72
        %v2328 = vadd.s32 %v2318, 80
        %v2329 = vadd.s32 %v2318, 88
        %v2330 = vadd.s32 %v2318, 96
        %v2331 = vadd.s32 %v2318, 104
        %v2332 = vadd.s32 %v2318, 112
        %v2333 = vadd.s32 %v2318, 120
        %v2334 = vadd.s32 %v2318, 128
        %v2335 = vadd.s32 %v2318, 136
        %v2336 = vadd.s32 %v2318, 144
        %v2337 = vadd.s32 %v2318, 152
        %vm2338 = vcmp.lt.s32.totalorder %v2318, 0
        %v2339 = vsub.s32 0, %v2318
        %v2340 = vsel %vm2338, %v2339, %v2318
        %v2341 = vmul.u32.u64.compose %v2340, 3435973837
        %v2342 = vextract.low.u32 %v2341
        %v2343 = vextract.high.u32 %v2341
        %v2344 = vshrl.u32 %v2343, 3
        %v2345 = vmul.u32 %v2344, 10
        %v2346 = vsub.s32 %v2340, %v2345
        %v2347 = vsub.s32 0, %v2346
        %v2348 = vsel %vm2338, %v2347, %v2346
        %vm2349 = vcmp.lt.s32.totalorder %v2319, 0
        %v2350 = vsub.s32 0, %v2319
        %v2351 = vsel %vm2349, %v2350, %v2319
        %v2352 = vmul.u32.u64.compose %v2351, 3435973837
        %v2353 = vextract.low.u32 %v2352
        %v2354 = vextract.high.u32 %v2352
        %v2355 = vshrl.u32 %v2354, 3
        %v2356 = vmul.u32 %v2355, 10
        %v2357 = vsub.s32 %v2351, %v2356
        %v2358 = vsub.s32 0, %v2357
        %v2359 = vsel %vm2349, %v2358, %v2357
        %vm2360 = vcmp.lt.s32.totalorder %v2320, 0
        %v2361 = vsub.s32 0, %v2320
        %v2362 = vsel %vm2360, %v2361, %v2320
        %v2363 = vmul.u32.u64.compose %v2362, 3435973837
        %v2364 = vextract.low.u32 %v2363
        %v2365 = vextract.high.u32 %v2363
        %v2366 = vshrl.u32 %v2365, 3
        %v2367 = vmul.u32 %v2366, 10
        %v2368 = vsub.s32 %v2362, %v2367
        %v2369 = vsub.s32 0, %v2368
        %v2370 = vsel %vm2360, %v2369, %v2368
        %vm2371 = vcmp.lt.s32.totalorder %v2321, 0
        %v2372 = vsub.s32 0, %v2321
        %v2373 = vsel %vm2371, %v2372, %v2321
        %v2374 = vmul.u32.u64.compose %v2373, 3435973837
        %v2375 = vextract.low.u32 %v2374
        %v2376 = vextract.high.u32 %v2374
        %v2377 = vshrl.u32 %v2376, 3
        %v2378 = vmul.u32 %v2377, 10
        %v2379 = vsub.s32 %v2373, %v2378
        %v2380 = vsub.s32 0, %v2379
        %v2381 = vsel %vm2371, %v2380, %v2379
        %vm2382 = vcmp.lt.s32.totalorder %v2322, 0
        %v2383 = vsub.s32 0, %v2322
        %v2384 = vsel %vm2382, %v2383, %v2322
        %v2385 = vmul.u32.u64.compose %v2384, 3435973837
        %v2386 = vextract.low.u32 %v2385
        %v2387 = vextract.high.u32 %v2385
        %v2388 = vshrl.u32 %v2387, 3
        %v2389 = vmul.u32 %v2388, 10
        %v2390 = vsub.s32 %v2384, %v2389
        %v2391 = vsub.s32 0, %v2390
        %v2392 = vsel %vm2382, %v2391, %v2390
        %vm2393 = vcmp.lt.s32.totalorder %v2323, 0
        %v2394 = vsub.s32 0, %v2323
        %v2395 = vsel %vm2393, %v2394, %v2323
        %v2396 = vmul.u32.u64.compose %v2395, 3435973837
        %v2397 = vextract.low.u32 %v2396
        %v2398 = vextract.high.u32 %v2396
        %v2399 = vshrl.u32 %v2398, 3
        %v2400 = vmul.u32 %v2399, 10
        %v2401 = vsub.s32 %v2395, %v2400
        %v2402 = vsub.s32 0, %v2401
        %v2403 = vsel %vm2393, %v2402, %v2401
        %vm2404 = vcmp.lt.s32.totalorder %v2324, 0
        %v2405 = vsub.s32 0, %v2324
        %v2406 = vsel %vm2404, %v2405, %v2324
        %v2407 = vmul.u32.u64.compose %v2406, 3435973837
        %v2408 = vextract.low.u32 %v2407
        %v2409 = vextract.high.u32 %v2407
        %v2410 = vshrl.u32 %v2409, 3
        %v2411 = vmul.u32 %v2410, 10
        %v2412 = vsub.s32 %v2406, %v2411
        %v2413 = vsub.s32 0, %v2412
        %v2414 = vsel %vm2404, %v2413, %v2412
        %vm2415 = vcmp.lt.s32.totalorder %v2325, 0
        %v2416 = vsub.s32 0, %v2325
        %v2417 = vsel %vm2415, %v2416, %v2325
        %v2418 = vmul.u32.u64.compose %v2417, 3435973837
        %v2419 = vextract.low.u32 %v2418
        %v2420 = vextract.high.u32 %v2418
        %v2421 = vshrl.u32 %v2420, 3
        %v2422 = vmul.u32 %v2421, 10
        %v2423 = vsub.s32 %v2417, %v2422
        %v2424 = vsub.s32 0, %v2423
        %v2425 = vsel %vm2415, %v2424, %v2423
        %vm2426 = vcmp.lt.s32.totalorder %v2326, 0
        %v2427 = vsub.s32 0, %v2326
        %v2428 = vsel %vm2426, %v2427, %v2326
        %v2429 = vmul.u32.u64.compose %v2428, 3435973837
        %v2430 = vextract.low.u32 %v2429
        %v2431 = vextract.high.u32 %v2429
        %v2432 = vshrl.u32 %v2431, 3
        %v2433 = vmul.u32 %v2432, 10
        %v2434 = vsub.s32 %v2428, %v2433
        %v2435 = vsub.s32 0, %v2434
        %v2436 = vsel %vm2426, %v2435, %v2434
        %vm2437 = vcmp.lt.s32.totalorder %v2327, 0
        %v2438 = vsub.s32 0, %v2327
        %v2439 = vsel %vm2437, %v2438, %v2327
        %v2440 = vmul.u32.u64.compose %v2439, 3435973837
        %v2441 = vextract.low.u32 %v2440
        %v2442 = vextract.high.u32 %v2440
        %v2443 = vshrl.u32 %v2442, 3
        %v2444 = vmul.u32 %v2443, 10
        %v2445 = vsub.s32 %v2439, %v2444
        %v2446 = vsub.s32 0, %v2445
        %v2447 = vsel %vm2437, %v2446, %v2445
        %vm2448 = vcmp.lt.s32.totalorder %v2328, 0
        %v2449 = vsub.s32 0, %v2328
        %v2450 = vsel %vm2448, %v2449, %v2328
        %v2451 = vmul.u32.u64.compose %v2450, 3435973837
        %v2452 = vextract.low.u32 %v2451
        %v2453 = vextract.high.u32 %v2451
        %v2454 = vshrl.u32 %v2453, 3
        %v2455 = vmul.u32 %v2454, 10
        %v2456 = vsub.s32 %v2450, %v2455
        %v2457 = vsub.s32 0, %v2456
        %v2458 = vsel %vm2448, %v2457, %v2456
        %vm2459 = vcmp.lt.s32.totalorder %v2329, 0
        %v2460 = vsub.s32 0, %v2329
        %v2461 = vsel %vm2459, %v2460, %v2329
        %v2462 = vmul.u32.u64.compose %v2461, 3435973837
        %v2463 = vextract.low.u32 %v2462
        %v2464 = vextract.high.u32 %v2462
        %v2465 = vshrl.u32 %v2464, 3
        %v2466 = vmul.u32 %v2465, 10
        %v2467 = vsub.s32 %v2461, %v2466
        %v2468 = vsub.s32 0, %v2467
        %v2469 = vsel %vm2459, %v2468, %v2467
        %vm2470 = vcmp.lt.s32.totalorder %v2330, 0
        %v2471 = vsub.s32 0, %v2330
        %v2472 = vsel %vm2470, %v2471, %v2330
        %v2473 = vmul.u32.u64.compose %v2472, 3435973837
        %v2474 = vextract.low.u32 %v2473
        %v2475 = vextract.high.u32 %v2473
        %v2476 = vshrl.u32 %v2475, 3
        %v2477 = vmul.u32 %v2476, 10
        %v2478 = vsub.s32 %v2472, %v2477
        %v2479 = vsub.s32 0, %v2478
        %v2480 = vsel %vm2470, %v2479, %v2478
        %vm2481 = vcmp.lt.s32.totalorder %v2331, 0
        %v2482 = vsub.s32 0, %v2331
        %v2483 = vsel %vm2481, %v2482, %v2331
        %v2484 = vmul.u32.u64.compose %v2483, 3435973837
        %v2485 = vextract.low.u32 %v2484
        %v2486 = vextract.high.u32 %v2484
        %v2487 = vshrl.u32 %v2486, 3
        %v2488 = vmul.u32 %v2487, 10
        %v2489 = vsub.s32 %v2483, %v2488
        %v2490 = vsub.s32 0, %v2489
        %v2491 = vsel %vm2481, %v2490, %v2489
        %vm2492 = vcmp.lt.s32.totalorder %v2332, 0
        %v2493 = vsub.s32 0, %v2332
        %v2494 = vsel %vm2492, %v2493, %v2332
        %v2495 = vmul.u32.u64.compose %v2494, 3435973837
        %v2496 = vextract.low.u32 %v2495
        %v2497 = vextract.high.u32 %v2495
        %v2498 = vshrl.u32 %v2497, 3
        %v2499 = vmul.u32 %v2498, 10
        %v2500 = vsub.s32 %v2494, %v2499
        %v2501 = vsub.s32 0, %v2500
        %v2502 = vsel %vm2492, %v2501, %v2500
        %vm2503 = vcmp.lt.s32.totalorder %v2333, 0
        %v2504 = vsub.s32 0, %v2333
        %v2505 = vsel %vm2503, %v2504, %v2333
        %v2506 = vmul.u32.u64.compose %v2505, 3435973837
        %v2507 = vextract.low.u32 %v2506
        %v2508 = vextract.high.u32 %v2506
        %v2509 = vshrl.u32 %v2508, 3
        %v2510 = vmul.u32 %v2509, 10
        %v2511 = vsub.s32 %v2505, %v2510
        %v2512 = vsub.s32 0, %v2511
        %v2513 = vsel %vm2503, %v2512, %v2511
        %vm2514 = vcmp.lt.s32.totalorder %v2334, 0
        %v2515 = vsub.s32 0, %v2334
        %v2516 = vsel %vm2514, %v2515, %v2334
        %v2517 = vmul.u32.u64.compose %v2516, 3435973837
        %v2518 = vextract.low.u32 %v2517
        %v2519 = vextract.high.u32 %v2517
        %v2520 = vshrl.u32 %v2519, 3
        %v2521 = vmul.u32 %v2520, 10
        %v2522 = vsub.s32 %v2516, %v2521
        %v2523 = vsub.s32 0, %v2522
        %v2524 = vsel %vm2514, %v2523, %v2522
        %vm2525 = vcmp.lt.s32.totalorder %v2335, 0
        %v2526 = vsub.s32 0, %v2335
        %v2527 = vsel %vm2525, %v2526, %v2335
        %v2528 = vmul.u32.u64.compose %v2527, 3435973837
        %v2529 = vextract.low.u32 %v2528
        %v2530 = vextract.high.u32 %v2528
        %v2531 = vshrl.u32 %v2530, 3
        %v2532 = vmul.u32 %v2531, 10
        %v2533 = vsub.s32 %v2527, %v2532
        %v2534 = vsub.s32 0, %v2533
        %v2535 = vsel %vm2525, %v2534, %v2533
        %vm2536 = vcmp.lt.s32.totalorder %v2336, 0
        %v2537 = vsub.s32 0, %v2336
        %v2538 = vsel %vm2536, %v2537, %v2336
        %v2539 = vmul.u32.u64.compose %v2538, 3435973837
        %v2540 = vextract.low.u32 %v2539
        %v2541 = vextract.high.u32 %v2539
        %v2542 = vshrl.u32 %v2541, 3
        %v2543 = vmul.u32 %v2542, 10
        %v2544 = vsub.s32 %v2538, %v2543
        %v2545 = vsub.s32 0, %v2544
        %v2546 = vsel %vm2536, %v2545, %v2544
        %vm2547 = vcmp.lt.s32.totalorder %v2337, 0
        %v2548 = vsub.s32 0, %v2337
        %v2549 = vsel %vm2547, %v2548, %v2337
        %v2550 = vmul.u32.u64.compose %v2549, 3435973837
        %v2551 = vextract.low.u32 %v2550
        %v2552 = vextract.high.u32 %v2550
        %v2553 = vshrl.u32 %v2552, 3
        %v2554 = vmul.u32 %v2553, 10
        %v2555 = vsub.s32 %v2549, %v2554
        %v2556 = vsub.s32 0, %v2555
        %v2557 = vsel %vm2547, %v2556, %v2555
        %vm2558 = vcmp.ne.s32.totalorder %v2348, 0
        %vm2559 = vcmp.ne.s32.totalorder %v2359, 0
        %vm2560 = vcmp.ne.s32.totalorder %v2370, 0
        %vm2561 = vcmp.ne.s32.totalorder %v2381, 0
        %vm2562 = vcmp.ne.s32.totalorder %v2392, 0
        %vm2563 = vcmp.ne.s32.totalorder %v2403, 0
        %vm2564 = vcmp.ne.s32.totalorder %v2414, 0
        %vm2565 = vcmp.ne.s32.totalorder %v2425, 0
        %vm2566 = vcmp.ne.s32.totalorder %v2436, 0
        %vm2567 = vcmp.ne.s32.totalorder %v2447, 0
        %vm2568 = vcmp.ne.s32.totalorder %v2458, 0
        %vm2569 = vcmp.ne.s32.totalorder %v2469, 0
        %vm2570 = vcmp.ne.s32.totalorder %v2480, 0
        %vm2571 = vcmp.ne.s32.totalorder %v2491, 0
        %vm2572 = vcmp.ne.s32.totalorder %v2502, 0
        %vm2573 = vcmp.ne.s32.totalorder %v2513, 0
        %vm2574 = vcmp.ne.s32.totalorder %v2524, 0
        %vm2575 = vcmp.ne.s32.totalorder %v2535, 0
        %vm2576 = vcmp.ne.s32.totalorder %v2546, 0
        %vm2577 = vcmp.ne.s32.totalorder %v2557, 0
        %vm2578 = vcmp.lt.s32.totalorder %v2348, 0
        %vm2579 = vcmp.lt.s32.totalorder %v2359, 0
        %vm2580 = vcmp.lt.s32.totalorder %v2370, 0
        %vm2581 = vcmp.lt.s32.totalorder %v2381, 0
        %vm2582 = vcmp.lt.s32.totalorder %v2392, 0
        %vm2583 = vcmp.lt.s32.totalorder %v2403, 0
        %vm2584 = vcmp.lt.s32.totalorder %v2414, 0
        %vm2585 = vcmp.lt.s32.totalorder %v2425, 0
        %vm2586 = vcmp.lt.s32.totalorder %v2436, 0
        %vm2587 = vcmp.lt.s32.totalorder %v2447, 0
        %vm2588 = vcmp.lt.s32.totalorder %v2458, 0
        %vm2589 = vcmp.lt.s32.totalorder %v2469, 0
        %vm2590 = vcmp.lt.s32.totalorder %v2480, 0
        %vm2591 = vcmp.lt.s32.totalorder %v2491, 0
        %vm2592 = vcmp.lt.s32.totalorder %v2502, 0
        %vm2593 = vcmp.lt.s32.totalorder %v2513, 0
        %vm2594 = vcmp.lt.s32.totalorder %v2524, 0
        %vm2595 = vcmp.lt.s32.totalorder %v2535, 0
        %vm2596 = vcmp.lt.s32.totalorder %v2546, 0
        %vm2597 = vcmp.lt.s32.totalorder %v2557, 0
        %vm2598 = vmand %vm2578, %vm2558
        %vm2599 = vmand %vm2579, %vm2559
        %vm2600 = vmand %vm2580, %vm2560
        %vm2601 = vmand %vm2581, %vm2561
        %vm2602 = vmand %vm2582, %vm2562
        %vm2603 = vmand %vm2583, %vm2563
        %vm2604 = vmand %vm2584, %vm2564
        %vm2605 = vmand %vm2585, %vm2565
        %vm2606 = vmand %vm2586, %vm2566
        %vm2607 = vmand %vm2587, %vm2567
        %vm2608 = vmand %vm2588, %vm2568
        %vm2609 = vmand %vm2589, %vm2569
        %vm2610 = vmand %vm2590, %vm2570
        %vm2611 = vmand %vm2591, %vm2571
        %vm2612 = vmand %vm2592, %vm2572
        %vm2613 = vmand %vm2593, %vm2573
        %vm2614 = vmand %vm2594, %vm2574
        %vm2615 = vmand %vm2595, %vm2575
        %vm2616 = vmand %vm2596, %vm2576
        %vm2617 = vmand %vm2597, %vm2577
        %v2618 = vadd.s32 %v2348, 10
        %v2619 = vadd.s32 %v2359, 10
        %v2620 = vadd.s32 %v2370, 10
        %v2621 = vadd.s32 %v2381, 10
        %v2622 = vadd.s32 %v2392, 10
        %v2623 = vadd.s32 %v2403, 10
        %v2624 = vadd.s32 %v2414, 10
        %v2625 = vadd.s32 %v2425, 10
        %v2626 = vadd.s32 %v2436, 10
        %v2627 = vadd.s32 %v2447, 10
        %v2628 = vadd.s32 %v2458, 10
        %v2629 = vadd.s32 %v2469, 10
        %v2630 = vadd.s32 %v2480, 10
        %v2631 = vadd.s32 %v2491, 10
        %v2632 = vadd.s32 %v2502, 10
        %v2633 = vadd.s32 %v2513, 10
        %v2634 = vadd.s32 %v2524, 10
        %v2635 = vadd.s32 %v2535, 10
        %v2636 = vadd.s32 %v2546, 10
        %v2637 = vadd.s32 %v2557, 10
        %v2638 = vsel %vm2598, %v2618, %v2348
        %v2639 = vsel %vm2599, %v2619, %v2359
        %v2640 = vsel %vm2600, %v2620, %v2370
        %v2641 = vsel %vm2601, %v2621, %v2381
        %v2642 = vsel %vm2602, %v2622, %v2392
        %v2643 = vsel %vm2603, %v2623, %v2403
        %v2644 = vsel %vm2604, %v2624, %v2414
        %v2645 = vsel %vm2605, %v2625, %v2425
        %v2646 = vsel %vm2606, %v2626, %v2436
        %v2647 = vsel %vm2607, %v2627, %v2447
        %v2648 = vsel %vm2608, %v2628, %v2458
        %v2649 = vsel %vm2609, %v2629, %v2469
        %v2650 = vsel %vm2610, %v2630, %v2480
        %v2651 = vsel %vm2611, %v2631, %v2491
        %v2652 = vsel %vm2612, %v2632, %v2502
        %v2653 = vsel %vm2613, %v2633, %v2513
        %v2654 = vsel %vm2614, %v2634, %v2524
        %v2655 = vsel %vm2615, %v2635, %v2535
        %v2656 = vsel %vm2616, %v2636, %v2546
        %v2657 = vsel %vm2617, %v2637, %v2557
        %vm2658 = vcmp.lt.s32.totalorder %v2638, 8
        %vm2659 = vcmp.lt.s32.totalorder %v2639, 8
        %vm2660 = vcmp.lt.s32.totalorder %v2640, 8
        %vm2661 = vcmp.lt.s32.totalorder %v2641, 8
        %vm2662 = vcmp.lt.s32.totalorder %v2642, 8
        %vm2663 = vcmp.lt.s32.totalorder %v2643, 8
        %vm2664 = vcmp.lt.s32.totalorder %v2644, 8
        %vm2665 = vcmp.lt.s32.totalorder %v2645, 8
        %vm2666 = vcmp.lt.s32.totalorder %v2646, 8
        %vm2667 = vcmp.lt.s32.totalorder %v2647, 8
        %vm2668 = vcmp.lt.s32.totalorder %v2648, 8
        %vm2669 = vcmp.lt.s32.totalorder %v2649, 8
        %vm2670 = vcmp.lt.s32.totalorder %v2650, 8
        %vm2671 = vcmp.lt.s32.totalorder %v2651, 8
        %vm2672 = vcmp.lt.s32.totalorder %v2652, 8
        %vm2673 = vcmp.lt.s32.totalorder %v2653, 8
        %vm2674 = vcmp.lt.s32.totalorder %v2654, 8
        %vm2675 = vcmp.lt.s32.totalorder %v2655, 8
        %vm2676 = vcmp.lt.s32.totalorder %v2656, 8
        %vm2677 = vcmp.lt.s32.totalorder %v2657, 8
        %v2678 = vsel %vm2658, %v2297, 0.0
        %v2679 = vsel %vm2659, %v2298, 0.0
        %v2680 = vsel %vm2660, %v2299, 0.0
        %v2681 = vsel %vm2661, %v2300, 0.0
        %v2682 = vsel %vm2662, %v2301, 0.0
        %v2683 = vsel %vm2663, %v2302, 0.0
        %v2684 = vsel %vm2664, %v2303, 0.0
        %v2685 = vsel %vm2665, %v2304, 0.0
        %v2686 = vsel %vm2666, %v2305, 0.0
        %v2687 = vsel %vm2667, %v2306, 0.0
        %v2688 = vsel %vm2668, %v2307, 0.0
        %v2689 = vsel %vm2669, %v2308, 0.0
        %v2690 = vsel %vm2670, %v2309, 0.0
        %v2691 = vsel %vm2671, %v2310, 0.0
        %v2692 = vsel %vm2672, %v2311, 0.0
        %v2693 = vsel %vm2673, %v2312, 0.0
        %v2694 = vsel %vm2674, %v2313, 0.0
        %v2695 = vsel %vm2675, %v2314, 0.0
        %v2696 = vsel %vm2676, %v2315, 0.0
        %v2697 = vsel %vm2677, %v2316, 0.0
        %v2698 = vmax.f32 %v2678, %v2682
        %v2699 = vmax.f32 %v2679, %v2683
        %v2700 = vmax.f32 %v2680, %v2684
        %v2701 = vmax.f32 %v2681, %v2685
        %v2702 = vmax.f32 %v2698, %v2686
        %v2703 = vmax.f32 %v2699, %v2687
        %v2704 = vmax.f32 %v2702, %v2703
        %v2705 = vmax.f32 %v2700, %v2701
        %v2706 = vmax.f32 %v2704, %v2705
        %v2707 = vrot.slane %v2706, 4
        %v2708 = vmax.f32 %v2706, %v2707
        %v2709 = vrot.slane %v2708, 2
        %v2710 = vmax.f32 %v2708, %v2709
        %v2711 = vrot.slane %v2710, 1
        %v2712 = vmax.f32 %v2710, %v2711
        %2713 = vst [vmem:[%s310] sm:$0x1] %v2712
        %v2714 = vmax.f32 %v2688, %v2692
        %v2715 = vmax.f32 %v2689, %v2693
        %v2716 = vmax.f32 %v2690, %v2694
        %v2717 = vmax.f32 %v2691, %v2695
        %v2718 = vmax.f32 %v2714, %v2696
        %v2719 = vmax.f32 %v2715, %v2697
        %v2720 = vmax.f32 %v2718, %v2719
        %v2721 = vmax.f32 %v2716, %v2717
        %v2722 = vmax.f32 %v2720, %v2721
        %v2723 = vrot.slane %v2722, 4
        %v2724 = vmax.f32 %v2722, %v2723
        %v2725 = vrot.slane %v2724, 2
        %v2726 = vmax.f32 %v2724, %v2725
        %v2727 = vrot.slane %v2726, 1
        %v2728 = vmax.f32 %v2726, %v2727
        %2729 = vst [vmem:[%s310 + $0x1] sm:$0x1] %v2728
        %p2730 = scmp.lt.s32.totalorder %s19, 2
        %s2731 = scalar_select %p2730, %s19, 2
        %s2732 = smul.addr %s2731, 2
        %s2733 = scalar_lea.vmem %s5, %s2732
        // Predicated region
        $region45: #{prenet_forward.2} parent=39 // pred_check
          %p2734 = pneg %p167
        $region46: #{prenet_forward.2} parent=39 // pred_check_branch
          %2736 = sbr.rel (%p2734) target = $region48
        $region47: #{prenet_forward.2} parent=39 // pred_region
          _
        $region48: #{prenet_forward.2} parent=39 // pred_fallthru
          _
      $region40: #{prenet_forward.2} parent=5 // pred_fallthru
        _
      %p2737 = scmp.le.s32.totalorder 2, %s14
      // Predicated region
      $region49: #{prenet_forward.2} parent=5 // pred_check
        %p2738 = pneg %p2737
      $region50: #{prenet_forward.2} parent=5 // pred_check_branch
        %2740 = sbr.rel (%p2738) target = $region52
      $region51: #{prenet_forward.2} parent=5 // pred_region
        %s2741 = ssub.s32 %s14, 2
        // Predicated region
        $region53: #{prenet_forward.2} parent=51 // pred_check
          %p2742 = pneg %p173
        $region54: #{prenet_forward.2} parent=51 // pred_check_branch
          %2744 = sbr.rel (%p2742) target = $region56
        $region55: #{prenet_forward.2} parent=51 // pred_region
          %p2745 = scmp.lt.s32.totalorder %s20, 2
          %s2746 = scalar_select %p2745, %s20, 2
          %s2747 = smul.addr %s2746, 2
          %s2748 = scalar_lea.vmem %s5, %s2747
        $region56: #{prenet_forward.2} parent=51 // pred_fallthru
          _
      $region52: #{prenet_forward.2} parent=5 // pred_fallthru
        _
    $region6: #{prenet_forward.2} parent=1 // loop_footer
      %s18 = sadd.s32 1, %s14
    $region7: #{prenet_forward.2} parent=1 // loop_footer_branch
      %13 = sbr.rel target = $region3
    $region8: #{prenet_forward.2} parent=1 // loop_exit
      _
    %2749 = vsyncpa [#allocation5], 1
    %s2750 = scalar_lea.sflag [#allocation5], 1
    %2751 = vsyncpa %s2750, 1

</llo_original>
